<compile_context>
chip_gen: v5e
topology: v5e:2x2
jax: 0.10.0
libtpu: 0.0.40
codegen_flags: <defaults>
</compile_context>

<pallas_src>
import jax
import jax.numpy as jnp
from jax.experimental import pallas as pl
from jax.experimental.pallas import tpu as pltpu

# ---------------------------------------------------------------------------
# Model dimensions (base_dim = 768)
# ---------------------------------------------------------------------------
BASE_DIM = 768
STRATEGY_DIM = max(256, BASE_DIM // 3)        # 256
EVAL_METRICS = max(20, BASE_DIM // 32)        # 24
INTER_1 = max(256, BASE_DIM // 2)             # 384
INTER_2 = max(128, BASE_DIM // 4)             # 192
RISK_DIM = max(8, min(12, BASE_DIM // 64))    # 12
HALF_2 = max(64, INTER_2 // 2)                # 96
INNO_1 = max(64, STRATEGY_DIM // 2)           # 128
INNO_2 = max(32, STRATEGY_DIM // 4)           # 64

# ---- fused layer-1 / layer-2-input layout (every head on a 128-lane boundary) ----
L1_PERF = 0          # width 384
L1_RISK = 384        # width 192 (block padded to 256)
L1_ADPT = 640        # width 192 (block padded to 256)
L1_INNO = 896        # width 128
L1_ROB = 1024        # width 192 (block padded to 256)
L1_WIDTH = 1280

L2_IN = 1024                                   # slab lanes 0:1024 (perf|risk|adapt|innov)
L2_OUT = 512                                   # 448 real middle lanes, padded to 4 vregs
L3A_IN = L2_OUT                                # 512
L3B_IN = 256                                   # rob layer-1 block (192 real + 64 pad)
L3_OUT = 128                                   # lane-dense output slab width

COL_PERF = 0
COL_RISK = EVAL_METRICS                        # 24
COL_ADPT = COL_RISK + RISK_DIM                 # 36
COL_INNO = COL_ADPT + 1                        # 37
COL_ROB = COL_INNO + 1                         # 38
COL_FIT = COL_ROB + 1                          # 39

_SQRT1_2 = 0.7071067811865476
_LN_EPS = 1e-5
_FIT_CONST = 0.3                               # from (1 - risk_mean) * 0.3


# ---------------------------------------------------------------------------
# Shared math helpers
# ---------------------------------------------------------------------------
def _gelu(x):
    # Exact GELU (torch.nn.GELU default): 0.5*x*(1+erf(x/sqrt(2)))
    return 0.5 * x * (1.0 + jax.lax.erf(x * _SQRT1_2))


def _sigmoid(x):
    # sigmoid(x) == 0.5*(tanh(x/2)+1): tanh maps onto the EUP slot in-kernel.
    return 0.5 * (jnp.tanh(0.5 * x) + 1.0)


def _layernorm_ref(x, gamma, beta):
    mu = jnp.mean(x, axis=-1, keepdims=True)
    var = jnp.mean((x - mu) * (x - mu), axis=-1, keepdims=True)
    return (x - mu) * jax.lax.rsqrt(var + _LN_EPS) * gamma + beta


# ---------------------------------------------------------------------------
# Pallas kernel
# ---------------------------------------------------------------------------
def strategy_evaluator_kernel(x_ref, w1_ref, b1_ref, gain_ref, beta_ref,
                              w2_ref, b2_ref, w3a_ref, w3b_ref, b3_ref,
                              coeff_ref, out_ref):
    xb = x_ref[...]                                                   # (TB, 256) bf16

    # --- fused layer 1: all five heads' first linears in one lane-dense matmul
    h1 = jnp.dot(xb, w1_ref[...], preferred_element_type=jnp.float32) + b1_ref[...]
    g = _gelu(h1)                                                     # (TB, 1280) f32

    # --- LayerNorm stats on aligned slices (single pass: var = E[x^2] - mu^2)
    gp = g[:, L1_PERF:L1_PERF + INTER_1]                              # (TB, 384)
    mu_p = jnp.mean(gp, axis=-1, keepdims=True)
    rs_p = jax.lax.rsqrt(jnp.mean(gp * gp, axis=-1, keepdims=True) - mu_p * mu_p + _LN_EPS)
    gr = g[:, L1_RISK:L1_RISK + INTER_2]                              # (TB, 192)
    mu_r = jnp.mean(gr, axis=-1, keepdims=True)
    rs_r = jax.lax.rsqrt(jnp.mean(gr * gr, axis=-1, keepdims=True) - mu_r * mu_r + _LN_EPS)

    # --- apply LN in place on the slab as a per-lane-group affine (no relayout)
    lane = jax.lax.broadcasted_iota(jnp.int32, g.shape, 1)
    is_perf = lane < INTER_1
    is_risk = (lane >= L1_RISK) & (lane < L1_RISK + INTER_2)
    rs = jnp.where(is_perf, rs_p, jnp.where(is_risk, rs_r, 1.0))
    mu = jnp.where(is_perf, mu_p, jnp.where(is_risk, mu_r, 0.0))
    z = ((g - mu) * rs) * gain_ref[...] + beta_ref[...]               # (TB, 1280)
    zb = z.astype(jnp.bfloat16)
    # Dropout(0.1) after the perf LayerNorm: identity in eval mode.

    # --- fused layer 2: block-diagonal middle layers on aligned slab lanes 0:1024
    h2 = _gelu(jnp.dot(zb[:, 0:L2_IN], w2_ref[...],
                       preferred_element_type=jnp.float32) + b2_ref[...])   # (TB, 512)

    # --- fused layer 3: final projections; rob branch read straight from the slab
    y = (jnp.dot(h2.astype(jnp.bfloat16), w3a_ref[...],
                 preferred_element_type=jnp.float32)
         + jnp.dot(zb[:, L1_ROB:L1_WIDTH], w3b_ref[...],
                   preferred_element_type=jnp.float32)
         + b3_ref[...])                                               # (TB, 128)
    s = _sigmoid(y)

    # --- fitness combine: single coefficient-weighted cross-lane reduction
    fit = _FIT_CONST + jnp.sum(s * coeff_ref[...], axis=-1, keepdims=True)

    lane_o = jax.lax.broadcasted_iota(jnp.int32, s.shape, 1)
    out_ref[...] = jnp.where(lane_o == COL_FIT, fit,
                             jnp.where(lane_o < COL_FIT, s, jnp.zeros_like(s)))


# ---------------------------------------------------------------------------
# Wrapper
# ---------------------------------------------------------------------------
def _round_up(n, m):
    return (n + m - 1) // m * m


@jax.jit
def strategy_evaluator(x, packed_params):
    (w1, b1, gain, beta, w2, b2, w3a, w3b, b3, coeff) = packed_params
    B = x.shape[0]
    # Batch tile: multiples of 16 (bf16 sublane packing). For B >= 32 ensure >= 2 grid
    # steps so v7x's two TensorCores both get work; cap TB at 512 to amortize the
    # ~0.35us per-step overhead while staying well inside v7x's 64 MiB VMEM.
    if B >= 32:
        TB = min(512, _round_up(-(-B // 2), 16))
    else:
        TB = 16
    B_pad = _round_up(B, TB)

    xb = x.astype(jnp.bfloat16)
    if B_pad != B:
        xb = jnp.pad(xb, ((0, B_pad - B), (0, 0)))

    const2 = lambda i: (0, 0)
    out = pl.pallas_call(
        strategy_evaluator_kernel,
        out_shape=jax.ShapeDtypeStruct((B_pad, L3_OUT), jnp.float32),
        grid_spec=pltpu.PrefetchScalarGridSpec(
            num_scalar_prefetch=0,
            grid=(B_pad // TB,),
            in_specs=[
                pl.BlockSpec((TB, STRATEGY_DIM), lambda i: (i, 0)),
                pl.BlockSpec(w1.shape, const2),    # weights: full-array blocks,
                pl.BlockSpec(b1.shape, const2),    # constant index_map => VMEM-resident
                pl.BlockSpec(gain.shape, const2),
                pl.BlockSpec(beta.shape, const2),
                pl.BlockSpec(w2.shape, const2),
                pl.BlockSpec(b2.shape, const2),
                pl.BlockSpec(w3a.shape, const2),
                pl.BlockSpec(w3b.shape, const2),
                pl.BlockSpec(b3.shape, const2),
                pl.BlockSpec(coeff.shape, const2),
            ],
            out_specs=pl.BlockSpec((TB, L3_OUT), lambda i: (i, 0)),
        ),
        compiler_params=pltpu.CompilerParams(
            dimension_semantics=("parallel",),     # v7x: shard batch tiles over both TCs
            vmem_limit_bytes=48 << 20,             # TB=512 worst-case ~18 MB; safe on v7x
        ),
    )(xb, w1, b1, gain, beta, w2, b2, w3a, w3b, b3, coeff)

    out = out[:B]
    return {
        "fitness_score": out[:, COL_FIT:COL_FIT + 1],
        "performance_scores": out[:, COL_PERF:COL_PERF + EVAL_METRICS],
        "risk_scores": out[:, COL_RISK:COL_RISK + RISK_DIM],
        "adaptability_score": out[:, COL_ADPT:COL_ADPT + 1],
        "innovation_score": out[:, COL_INNO:COL_INNO + 1],
        "robustness_score": out[:, COL_ROB:COL_ROB + 1],
    }


# ---------------------------------------------------------------------------
# Deterministic parameter construction (PyTorch nn.Linear-style uniform init)
# ---------------------------------------------------------------------------
def _init_linear(key, fan_in, fan_out):
    kw, kb = jax.random.split(key)
    bound = 1.0 / jnp.sqrt(float(fan_in))
    w = jax.random.uniform(kw, (fan_in, fan_out), jnp.float32, -bound, bound)
    b = jax.random.uniform(kb, (1, fan_out), jnp.float32, -bound, bound)
    return w, b


def build_params(key):
    keys = jax.random.split(key, 16)
    params = []
    # performance_evaluator
    w, b = _init_linear(keys[0], STRATEGY_DIM, INTER_1); params += [w, b]
    params += [jnp.ones((1, INTER_1), jnp.float32), jnp.zeros((1, INTER_1), jnp.float32)]
    w, b = _init_linear(keys[1], INTER_1, INTER_2); params += [w, b]
    w, b = _init_linear(keys[2], INTER_2, EVAL_METRICS); params += [w, b]
    # risk_evaluator
    w, b = _init_linear(keys[3], STRATEGY_DIM, INTER_2); params += [w, b]
    params += [jnp.ones((1, INTER_2), jnp.float32), jnp.zeros((1, INTER_2), jnp.float32)]
    w, b = _init_linear(keys[4], INTER_2, HALF_2); params += [w, b]
    w, b = _init_linear(keys[5], HALF_2, RISK_DIM); params += [w, b]
    # adaptability_evaluator
    w, b = _init_linear(keys[6], STRATEGY_DIM, INTER_2); params += [w, b]
    w, b = _init_linear(keys[7], INTER_2, HALF_2); params += [w, b]
    w, b = _init_linear(keys[8], HALF_2, 1); params += [w, b]
    # innovation_evaluator
    w, b = _init_linear(keys[9], STRATEGY_DIM, INNO_1); params += [w, b]
    w, b = _init_linear(keys[10], INNO_1, INNO_2); params += [w, b]
    w, b = _init_linear(keys[11], INNO_2, 1); params += [w, b]
    # robustness_evaluator
    w, b = _init_linear(keys[12], STRATEGY_DIM, INTER_2); params += [w, b]
    w, b = _init_linear(keys[13], INTER_2, 1); params += [w, b]
    return tuple(params)


def pack_params(raw):
    """Fuse the 32 per-head tensors into 10 lane-aligned kernel inputs (weights in bf16)."""
    (pw1, pb1, pg, pbt, pw2, pb2, pw3, pb3,
     rw1, rb1, rg, rbt, rw2, rb2, rw3, rb3,
     aw1, ab1, aw2, ab2, aw3, ab3,
     iw1, ib1, iw2, ib2, iw3, ib3,
     bw1, bb1, bw2, bb2) = raw

    # fused layer-1 (per-head blocks at 128-lane-aligned offsets)
    w1 = jnp.zeros((STRATEGY_DIM, L1_WIDTH), jnp.float32)
    b1 = jnp.zeros((1, L1_WIDTH), jnp.float32)
    for off, w, b in ((L1_PERF, pw1, pb1), (L1_RISK, rw1, rb1),
                      (L1_ADPT, aw1, ab1), (L1_INNO, iw1, ib1), (L1_ROB, bw1, bb1)):
        w1 = w1.at[:, off:off + w.shape[1]].set(w)
        b1 = b1.at[:, off:off + w.shape[1]].set(b)

    # LN applied in-place on the slab: gamma=1 / beta=0 on non-LN lanes.
    gain = jnp.ones((1, L1_WIDTH), jnp.float32)
    beta = jnp.zeros((1, L1_WIDTH), jnp.float32)
    gain = gain.at[:, L1_PERF:L1_PERF + INTER_1].set(pg)
    beta = beta.at[:, L1_PERF:L1_PERF + INTER_1].set(pbt)
    gain = gain.at[:, L1_RISK:L1_RISK + INTER_2].set(rg)
    beta = beta.at[:, L1_RISK:L1_RISK + INTER_2].set(rbt)

    # fused layer-2: block-diagonal (1024, 512), zero rows at pad lanes, zero pad columns
    w2 = jnp.zeros((L2_IN, L2_OUT), jnp.float32)
    b2 = jnp.zeros((1, L2_OUT), jnp.float32)
    w2 = w2.at[L1_PERF:L1_PERF + INTER_1, 0:192].set(pw2)
    w2 = w2.at[L1_RISK:L1_RISK + INTER_2, 192:288].set(rw2)
    w2 = w2.at[L1_ADPT:L1_ADPT + INTER_2, 288:384].set(aw2)
    w2 = w2.at[L1_INNO:L1_INNO + INNO_1, 384:448].set(iw2)
    b2 = b2.at[:, 0:192].set(pb2)
    b2 = b2.at[:, 192:288].set(rb2)
    b2 = b2.at[:, 288:384].set(ab2)
    b2 = b2.at[:, 384:448].set(ib2)

    # fused layer-3a: block-diagonal (512, 128) over the layer-2 output slab
    w3a = jnp.zeros((L3A_IN, L3_OUT), jnp.float32)
    w3a = w3a.at[0:192, COL_PERF:COL_PERF + EVAL_METRICS].set(pw3)
    w3a = w3a.at[192:288, COL_RISK:COL_RISK + RISK_DIM].set(rw3)
    w3a = w3a.at[288:384, COL_ADPT:COL_ADPT + 1].set(aw3)
    w3a = w3a.at[384:448, COL_INNO:COL_INNO + 1].set(iw3)
    # fused layer-3b: robustness final linear, fed straight from the layer-1 slab
    w3b = jnp.zeros((L3B_IN, L3_OUT), jnp.float32)
    w3b = w3b.at[0:INTER_2, COL_ROB:COL_ROB + 1].set(bw2)

    b3 = jnp.zeros((1, L3_OUT), jnp.float32)
    b3 = b3.at[:, COL_PERF:COL_PERF + EVAL_METRICS].set(pb3)
    b3 = b3.at[:, COL_RISK:COL_RISK + RISK_DIM].set(rb3)
    b3 = b3.at[:, COL_ADPT:COL_ADPT + 1].set(ab3)
    b3 = b3.at[:, COL_INNO:COL_INNO + 1].set(ib3)
    b3 = b3.at[:, COL_ROB:COL_ROB + 1].set(bb2)

    # fitness coefficients: fit = 0.3 + sum(s * coeff)
    coeff = jnp.zeros((1, L3_OUT), jnp.float32)
    coeff = coeff.at[:, COL_PERF:COL_PERF + EVAL_METRICS].set(0.4 / EVAL_METRICS)
    coeff = coeff.at[:, COL_RISK:COL_RISK + RISK_DIM].set(-0.3 / RISK_DIM)
    coeff = coeff.at[:, COL_ADPT].set(0.15)
    coeff = coeff.at[:, COL_INNO].set(0.1)
    coeff = coeff.at[:, COL_ROB].set(0.05)

    # bf16 weights for the MXU; biases / LN params / coeff stay f32.
    return (w1.astype(jnp.bfloat16), b1, gain, beta,
            w2.astype(jnp.bfloat16), b2,
            w3a.astype(jnp.bfloat16), w3b.astype(jnp.bfloat16), b3, coeff)


# ---------------------------------------------------------------------------
# Pure-JAX reference (unfused, mirrors the kernel's bf16-operand matmuls)
# ---------------------------------------------------------------------------
def reference(x, raw):
    (pw1, pb1, pg, pbt, pw2, pb2, pw3, pb3,
     rw1, rb1, rg, rbt, rw2, rb2, rw3, rb3,
     aw1, ab1, aw2, ab2, aw3, ab3,
     iw1, ib1, iw2, ib2, iw3, ib3,
     bw1, bb1, bw2, bb2) = raw

    def mm(a, w, b):
        return jnp.dot(a.astype(jnp.bfloat16), w.astype(jnp.bfloat16),
                       preferred_element_type=jnp.float32) + b

    h = _layernorm_ref(_gelu(mm(x, pw1, pb1)), pg, pbt)
    perf = _sigmoid(mm(_gelu(mm(h, pw2, pb2)), pw3, pb3))
    h = _layernorm_ref(_gelu(mm(x, rw1, rb1)), rg, rbt)
    risk = _sigmoid(mm(_gelu(mm(h, rw2, rb2)), rw3, rb3))
    adapt = _sigmoid(mm(_gelu(mm(_gelu(mm(x, aw1, ab1)), aw2, ab2)), aw3, ab3))
    innov = _sigmoid(mm(_gelu(mm(_gelu(mm(x, iw1, ib1)), iw2, ib2)), iw3, ib3))
    rob = _sigmoid(mm(_gelu(mm(x, bw1, bb1)), bw2, bb2))
    fit = (perf.mean(-1, keepdims=True) * 0.4
           + (1.0 - risk.mean(-1, keepdims=True)) * 0.3
           + adapt * 0.15 + innov * 0.1 + rob * 0.05)
    return {"fitness_score": fit, "performance_scores": perf, "risk_scores": risk,
            "adaptability_score": adapt, "innovation_score": innov,
            "robustness_score": rob}


if __name__ == "__main__":
    key = jax.random.PRNGKey(0)
    kx, kp = jax.random.split(key)

    B = 8
    x = jax.random.normal(kx, (B, STRATEGY_DIM), jnp.float32)
    raw = build_params(kp)
    packed = pack_params(raw)

    out = strategy_evaluator(x, packed)
    jax.block_until_ready(out)

    ref = reference(x, raw)
    for name, r in ref.items():
        o = out[name]
        assert o.shape == r.shape, (name, o.shape, r.shape)
        assert jnp.allclose(o, r, atol=5e-3, rtol=5e-3), (
            name, float(jnp.max(jnp.abs(o - r))))

    print("KERNEL_OK")
</pallas_src>

<mosaic_0001>
module attributes {stable_mosaic.version = 11 : i64} {
  func.func @strategy_evaluator_kernel(%arg0: i32, %arg1: memref<16x256xbf16, #tpu.memory_space<vmem>>, %arg2: memref<256x1280xbf16, #tpu.memory_space<vmem>>, %arg3: memref<1x1280xf32, #tpu.memory_space<vmem>>, %arg4: memref<1x1280xf32, #tpu.memory_space<vmem>>, %arg5: memref<1x1280xf32, #tpu.memory_space<vmem>>, %arg6: memref<1024x512xbf16, #tpu.memory_space<vmem>>, %arg7: memref<1x512xf32, #tpu.memory_space<vmem>>, %arg8: memref<512x128xbf16, #tpu.memory_space<vmem>>, %arg9: memref<256x128xbf16, #tpu.memory_space<vmem>>, %arg10: memref<1x128xf32, #tpu.memory_space<vmem>>, %arg11: memref<1x128xf32, #tpu.memory_space<vmem>>, %arg12: memref<16x128xf32, #tpu.memory_space<vmem>>) attributes {dimension_semantics = [#tpu.dimension_semantics<parallel>], iteration_bounds = array<i64: 1>, scalar_prefetch = 0 : i64, scratch_operands = 0 : i64, tpu.core_type = #tpu.core_type<tc>, window_params = [{transform_indices = @transform_0, window_bounds = array<i64: 16, 256>}, {pipeline_mode = #tpu.pipeline_mode<synchronous>, transform_indices = @transform_1, window_bounds = array<i64: 256, 1280>}, {pipeline_mode = #tpu.pipeline_mode<synchronous>, transform_indices = @transform_2, window_bounds = array<i64: 1, 1280>}, {pipeline_mode = #tpu.pipeline_mode<synchronous>, transform_indices = @transform_3, window_bounds = array<i64: 1, 1280>}, {pipeline_mode = #tpu.pipeline_mode<synchronous>, transform_indices = @transform_4, window_bounds = array<i64: 1, 1280>}, {pipeline_mode = #tpu.pipeline_mode<synchronous>, transform_indices = @transform_5, window_bounds = array<i64: 1024, 512>}, {pipeline_mode = #tpu.pipeline_mode<synchronous>, transform_indices = @transform_6, window_bounds = array<i64: 1, 512>}, {pipeline_mode = #tpu.pipeline_mode<synchronous>, transform_indices = @transform_7, window_bounds = array<i64: 512, 128>}, {pipeline_mode = #tpu.pipeline_mode<synchronous>, transform_indices = @transform_8, window_bounds = array<i64: 256, 128>}, {pipeline_mode = #tpu.pipeline_mode<synchronous>, transform_indices = @transform_9, window_bounds = array<i64: 1, 128>}, {pipeline_mode = #tpu.pipeline_mode<synchronous>, transform_indices = @transform_10, window_bounds = array<i64: 1, 128>}, {transform_indices = @transform_11, window_bounds = array<i64: 16, 128>}]} {
    %c0 = arith.constant 0 : index
    %c0_0 = arith.constant 0 : index
    %0 = vector.load %arg1[%c0, %c0_0] : memref<16x256xbf16, #tpu.memory_space<vmem>>, vector<16x256xbf16>
    %c0_1 = arith.constant 0 : index
    %c0_2 = arith.constant 0 : index
    %1 = vector.load %arg2[%c0_1, %c0_2] : memref<256x1280xbf16, #tpu.memory_space<vmem>>, vector<256x1280xbf16>
    %cst = arith.constant dense<0.000000e+00> : vector<16x1280xf32>
    %2 = tpu.matmul %0, %1, %cst {dimension_numbers = #tpu.dot_dimension_numbers<[1], [0], [0], [1], [0, 0, 1, 1], [], []>} : vector<16x256xbf16>, vector<256x1280xbf16>, vector<16x1280xf32> -> vector<16x1280xf32>
    %c0_3 = arith.constant 0 : index
    %c0_4 = arith.constant 0 : index
    %3 = vector.load %arg3[%c0_3, %c0_4] : memref<1x1280xf32, #tpu.memory_space<vmem>>, vector<1x1280xf32>
    %4 = vector.broadcast %3 : vector<1x1280xf32> to vector<16x1280xf32>
    %5 = arith.addf %2, %4 : vector<16x1280xf32>
    %cst_5 = arith.constant 5.000000e-01 : f32
    %6 = vector.broadcast %cst_5 : f32 to vector<16x1280xf32>
    %7 = arith.mulf %6, %5 : vector<16x1280xf32>
    %cst_6 = arith.constant 0.707106769 : f32
    %8 = vector.broadcast %cst_6 : f32 to vector<16x1280xf32>
    %9 = arith.mulf %5, %8 : vector<16x1280xf32>
    %10 = math.erf %9 : vector<16x1280xf32>
    %cst_7 = arith.constant 1.000000e+00 : f32
    %11 = vector.broadcast %cst_7 : f32 to vector<16x1280xf32>
    %12 = arith.addf %11, %10 : vector<16x1280xf32>
    %13 = arith.mulf %7, %12 : vector<16x1280xf32>
    %14 = vector.extract_strided_slice %13 {offsets = [0, 0], sizes = [16, 384], strides = [1, 1]} : vector<16x1280xf32> to vector<16x384xf32>
    %cst_8 = arith.constant dense<0.000000e+00> : vector<16xf32>
    %15 = vector.multi_reduction <add>, %14, %cst_8 [1] : vector<16x384xf32> to vector<16xf32>
    %16 = vector.shape_cast %15 : vector<16xf32> to vector<16x1xf32>
    %cst_9 = arith.constant 3.840000e+02 : f32
    %17 = vector.broadcast %cst_9 : f32 to vector<16x1xf32>
    %18 = arith.divf %16, %17 : vector<16x1xf32>
    %19 = arith.mulf %14, %14 : vector<16x384xf32>
    %cst_10 = arith.constant dense<0.000000e+00> : vector<16xf32>
    %20 = vector.multi_reduction <add>, %19, %cst_10 [1] : vector<16x384xf32> to vector<16xf32>
    %21 = vector.shape_cast %20 : vector<16xf32> to vector<16x1xf32>
    %cst_11 = arith.constant 3.840000e+02 : f32
    %22 = vector.broadcast %cst_11 : f32 to vector<16x1xf32>
    %23 = arith.divf %21, %22 : vector<16x1xf32>
    %24 = arith.mulf %18, %18 : vector<16x1xf32>
    %25 = arith.subf %23, %24 : vector<16x1xf32>
    %cst_12 = arith.constant 9.99999974E-6 : f32
    %26 = vector.broadcast %cst_12 : f32 to vector<16x1xf32>
    %27 = arith.addf %25, %26 : vector<16x1xf32>
    %28 = math.rsqrt %27 : vector<16x1xf32>
    %29 = vector.extract_strided_slice %13 {offsets = [0, 384], sizes = [16, 192], strides = [1, 1]} : vector<16x1280xf32> to vector<16x192xf32>
    %cst_13 = arith.constant dense<0.000000e+00> : vector<16xf32>
    %30 = vector.multi_reduction <add>, %29, %cst_13 [1] : vector<16x192xf32> to vector<16xf32>
    %31 = vector.shape_cast %30 : vector<16xf32> to vector<16x1xf32>
    %cst_14 = arith.constant 1.920000e+02 : f32
    %32 = vector.broadcast %cst_14 : f32 to vector<16x1xf32>
    %33 = arith.divf %31, %32 : vector<16x1xf32>
    %34 = arith.mulf %29, %29 : vector<16x192xf32>
    %cst_15 = arith.constant dense<0.000000e+00> : vector<16xf32>
    %35 = vector.multi_reduction <add>, %34, %cst_15 [1] : vector<16x192xf32> to vector<16xf32>
    %36 = vector.shape_cast %35 : vector<16xf32> to vector<16x1xf32>
    %cst_16 = arith.constant 1.920000e+02 : f32
    %37 = vector.broadcast %cst_16 : f32 to vector<16x1xf32>
    %38 = arith.divf %36, %37 : vector<16x1xf32>
    %39 = arith.mulf %33, %33 : vector<16x1xf32>
    %40 = arith.subf %38, %39 : vector<16x1xf32>
    %cst_17 = arith.constant 9.99999974E-6 : f32
    %41 = vector.broadcast %cst_17 : f32 to vector<16x1xf32>
    %42 = arith.addf %40, %41 : vector<16x1xf32>
    %43 = math.rsqrt %42 : vector<16x1xf32>
    %44 = tpu.iota {dimensions = array<i32: 1>} : vector<16x1280xi32>
    %c384_i32 = arith.constant 384 : i32
    %45 = vector.broadcast %c384_i32 : i32 to vector<16x1280xi32>
    %46 = arith.cmpi slt, %44, %45 : vector<16x1280xi32>
    %c384_i32_18 = arith.constant 384 : i32
    %47 = vector.broadcast %c384_i32_18 : i32 to vector<16x1280xi32>
    %48 = arith.cmpi sge, %44, %47 : vector<16x1280xi32>
    %c576_i32 = arith.constant 576 : i32
    %49 = vector.broadcast %c576_i32 : i32 to vector<16x1280xi32>
    %50 = arith.cmpi slt, %44, %49 : vector<16x1280xi32>
    %51 = arith.andi %48, %50 : vector<16x1280xi1>
    %cst_19 = arith.constant 1.000000e+00 : f32
    %52 = vector.shape_cast %43 : vector<16x1xf32> to vector<16x1xf32>
    %53 = vector.broadcast %52 : vector<16x1xf32> to vector<16x1280xf32>
    %54 = vector.broadcast %cst_19 : f32 to vector<16x1280xf32>
    %55 = arith.select %51, %53, %54 : vector<16x1280xi1>, vector<16x1280xf32>
    %56 = vector.shape_cast %28 : vector<16x1xf32> to vector<16x1xf32>
    %57 = vector.broadcast %56 : vector<16x1xf32> to vector<16x1280xf32>
    %58 = arith.select %46, %57, %55 : vector<16x1280xi1>, vector<16x1280xf32>
    %cst_20 = arith.constant 0.000000e+00 : f32
    %59 = vector.shape_cast %33 : vector<16x1xf32> to vector<16x1xf32>
    %60 = vector.broadcast %59 : vector<16x1xf32> to vector<16x1280xf32>
    %61 = vector.broadcast %cst_20 : f32 to vector<16x1280xf32>
    %62 = arith.select %51, %60, %61 : vector<16x1280xi1>, vector<16x1280xf32>
    %63 = vector.shape_cast %18 : vector<16x1xf32> to vector<16x1xf32>
    %64 = vector.broadcast %63 : vector<16x1xf32> to vector<16x1280xf32>
    %65 = arith.select %46, %64, %62 : vector<16x1280xi1>, vector<16x1280xf32>
    %66 = arith.subf %13, %65 : vector<16x1280xf32>
    %67 = arith.mulf %66, %58 : vector<16x1280xf32>
    %c0_21 = arith.constant 0 : index
    %c0_22 = arith.constant 0 : index
    %68 = vector.load %arg4[%c0_21, %c0_22] : memref<1x1280xf32, #tpu.memory_space<vmem>>, vector<1x1280xf32>
    %69 = vector.broadcast %68 : vector<1x1280xf32> to vector<16x1280xf32>
    %70 = arith.mulf %67, %69 : vector<16x1280xf32>
    %c0_23 = arith.constant 0 : index
    %c0_24 = arith.constant 0 : index
    %71 = vector.load %arg5[%c0_23, %c0_24] : memref<1x1280xf32, #tpu.memory_space<vmem>>, vector<1x1280xf32>
    %72 = vector.broadcast %71 : vector<1x1280xf32> to vector<16x1280xf32>
    %73 = arith.addf %70, %72 : vector<16x1280xf32>
    %74 = arith.truncf %73 : vector<16x1280xf32> to vector<16x1280xbf16>
    %75 = vector.extract_strided_slice %74 {offsets = [0, 0], sizes = [16, 1024], strides = [1, 1]} : vector<16x1280xbf16> to vector<16x1024xbf16>
    %c0_25 = arith.constant 0 : index
    %c0_26 = arith.constant 0 : index
    %76 = vector.load %arg6[%c0_25, %c0_26] : memref<1024x512xbf16, #tpu.memory_space<vmem>>, vector<1024x512xbf16>
    %cst_27 = arith.constant dense<0.000000e+00> : vector<16x512xf32>
    %77 = tpu.matmul %75, %76, %cst_27 {dimension_numbers = #tpu.dot_dimension_numbers<[1], [0], [0], [1], [0, 0, 1, 1], [], []>} : vector<16x1024xbf16>, vector<1024x512xbf16>, vector<16x512xf32> -> vector<16x512xf32>
    %c0_28 = arith.constant 0 : index
    %c0_29 = arith.constant 0 : index
    %78 = vector.load %arg7[%c0_28, %c0_29] : memref<1x512xf32, #tpu.memory_space<vmem>>, vector<1x512xf32>
    %79 = vector.broadcast %78 : vector<1x512xf32> to vector<16x512xf32>
    %80 = arith.addf %77, %79 : vector<16x512xf32>
    %cst_30 = arith.constant 5.000000e-01 : f32
    %81 = vector.broadcast %cst_30 : f32 to vector<16x512xf32>
    %82 = arith.mulf %81, %80 : vector<16x512xf32>
    %cst_31 = arith.constant 0.707106769 : f32
    %83 = vector.broadcast %cst_31 : f32 to vector<16x512xf32>
    %84 = arith.mulf %80, %83 : vector<16x512xf32>
    %85 = math.erf %84 : vector<16x512xf32>
    %cst_32 = arith.constant 1.000000e+00 : f32
    %86 = vector.broadcast %cst_32 : f32 to vector<16x512xf32>
    %87 = arith.addf %86, %85 : vector<16x512xf32>
    %88 = arith.mulf %82, %87 : vector<16x512xf32>
    %89 = arith.truncf %88 : vector<16x512xf32> to vector<16x512xbf16>
    %c0_33 = arith.constant 0 : index
    %c0_34 = arith.constant 0 : index
    %90 = vector.load %arg8[%c0_33, %c0_34] : memref<512x128xbf16, #tpu.memory_space<vmem>>, vector<512x128xbf16>
    %cst_35 = arith.constant dense<0.000000e+00> : vector<16x128xf32>
    %91 = tpu.matmul %89, %90, %cst_35 {dimension_numbers = #tpu.dot_dimension_numbers<[1], [0], [0], [1], [0, 0, 1, 1], [], []>} : vector<16x512xbf16>, vector<512x128xbf16>, vector<16x128xf32> -> vector<16x128xf32>
    %92 = vector.extract_strided_slice %74 {offsets = [0, 1024], sizes = [16, 256], strides = [1, 1]} : vector<16x1280xbf16> to vector<16x256xbf16>
    %c0_36 = arith.constant 0 : index
    %c0_37 = arith.constant 0 : index
    %93 = vector.load %arg9[%c0_36, %c0_37] : memref<256x128xbf16, #tpu.memory_space<vmem>>, vector<256x128xbf16>
    %cst_38 = arith.constant dense<0.000000e+00> : vector<16x128xf32>
    %94 = tpu.matmul %92, %93, %cst_38 {dimension_numbers = #tpu.dot_dimension_numbers<[1], [0], [0], [1], [0, 0, 1, 1], [], []>} : vector<16x256xbf16>, vector<256x128xbf16>, vector<16x128xf32> -> vector<16x128xf32>
    %95 = arith.addf %91, %94 : vector<16x128xf32>
    %c0_39 = arith.constant 0 : index
    %c0_40 = arith.constant 0 : index
    %96 = vector.load %arg10[%c0_39, %c0_40] : memref<1x128xf32, #tpu.memory_space<vmem>>, vector<1x128xf32>
    %97 = vector.broadcast %96 : vector<1x128xf32> to vector<16x128xf32>
    %98 = arith.addf %95, %97 : vector<16x128xf32>
    %cst_41 = arith.constant 5.000000e-01 : f32
    %99 = vector.broadcast %cst_41 : f32 to vector<16x128xf32>
    %100 = arith.mulf %99, %98 : vector<16x128xf32>
    %101 = math.tanh %100 : vector<16x128xf32>
    %cst_42 = arith.constant 1.000000e+00 : f32
    %102 = vector.broadcast %cst_42 : f32 to vector<16x128xf32>
    %103 = arith.addf %101, %102 : vector<16x128xf32>
    %cst_43 = arith.constant 5.000000e-01 : f32
    %104 = vector.broadcast %cst_43 : f32 to vector<16x128xf32>
    %105 = arith.mulf %104, %103 : vector<16x128xf32>
    %c0_44 = arith.constant 0 : index
    %c0_45 = arith.constant 0 : index
    %106 = vector.load %arg11[%c0_44, %c0_45] : memref<1x128xf32, #tpu.memory_space<vmem>>, vector<1x128xf32>
    %107 = vector.broadcast %106 : vector<1x128xf32> to vector<16x128xf32>
    %108 = arith.mulf %105, %107 : vector<16x128xf32>
    %cst_46 = arith.constant dense<0.000000e+00> : vector<16xf32>
    %109 = vector.multi_reduction <add>, %108, %cst_46 [1] : vector<16x128xf32> to vector<16xf32>
    %110 = vector.shape_cast %109 : vector<16xf32> to vector<16x1xf32>
    %cst_47 = arith.constant 3.000000e-01 : f32
    %111 = vector.broadcast %cst_47 : f32 to vector<16x1xf32>
    %112 = arith.addf %111, %110 : vector<16x1xf32>
    %113 = tpu.iota {dimensions = array<i32: 1>} : vector<16x128xi32>
    %c39_i32 = arith.constant 39 : i32
    %114 = vector.broadcast %c39_i32 : i32 to vector<16x128xi32>
    %115 = arith.cmpi eq, %113, %114 : vector<16x128xi32>
    %c39_i32_48 = arith.constant 39 : i32
    %116 = vector.broadcast %c39_i32_48 : i32 to vector<16x128xi32>
    %117 = arith.cmpi slt, %113, %116 : vector<16x128xi32>
    %cst_49 = arith.constant 0.000000e+00 : f32
    %118 = vector.broadcast %cst_49 : f32 to vector<16x128xf32>
    %119 = arith.select %117, %105, %118 : vector<16x128xi1>, vector<16x128xf32>
    %120 = vector.shape_cast %112 : vector<16x1xf32> to vector<16x1xf32>
    %121 = vector.broadcast %120 : vector<16x1xf32> to vector<16x128xf32>
    %122 = arith.select %115, %121, %119 : vector<16x128xi1>, vector<16x128xf32>
    %c0_50 = arith.constant 0 : index
    %c0_51 = arith.constant 0 : index
    %123 = vector.load %arg12[%c0_50, %c0_51] : memref<16x128xf32, #tpu.memory_space<vmem>>, vector<16x128xf32>
    tpu.vector_store %arg12[%c0_50, %c0_51], %122 {strides = array<i32>} : memref<16x128xf32, #tpu.memory_space<vmem>>, vector<16x128xf32>,
    return
  }
  func.func @transform_0(%arg0: i32) -> (i32, i32) {
    %c0_i32 = arith.constant 0 : i32
    %c0_i32_0 = arith.constant 0 : i32
    return %arg0, %c0_i32 : i32, i32
  }
  func.func @transform_1(%arg0: i32) -> (i32, i32) {
    %c0_i32 = arith.constant 0 : i32
    %c0_i32_0 = arith.constant 0 : i32
    %c0_i32_1 = arith.constant 0 : i32
    return %c0_i32, %c0_i32_0 : i32, i32
  }
  func.func @transform_2(%arg0: i32) -> (i32, i32) {
    %c0_i32 = arith.constant 0 : i32
    %c0_i32_0 = arith.constant 0 : i32
    %c0_i32_1 = arith.constant 0 : i32
    return %c0_i32, %c0_i32_0 : i32, i32
  }
  func.func @transform_3(%arg0: i32) -> (i32, i32) {
    %c0_i32 = arith.constant 0 : i32
    %c0_i32_0 = arith.constant 0 : i32
    %c0_i32_1 = arith.constant 0 : i32
    return %c0_i32, %c0_i32_0 : i32, i32
  }
  func.func @transform_4(%arg0: i32) -> (i32, i32) {
    %c0_i32 = arith.constant 0 : i32
    %c0_i32_0 = arith.constant 0 : i32
    %c0_i32_1 = arith.constant 0 : i32
    return %c0_i32, %c0_i32_0 : i32, i32
  }
  func.func @transform_5(%arg0: i32) -> (i32, i32) {
    %c0_i32 = arith.constant 0 : i32
    %c0_i32_0 = arith.constant 0 : i32
    %c0_i32_1 = arith.constant 0 : i32
    return %c0_i32, %c0_i32_0 : i32, i32
  }
  func.func @transform_6(%arg0: i32) -> (i32, i32) {
    %c0_i32 = arith.constant 0 : i32
    %c0_i32_0 = arith.constant 0 : i32
    %c0_i32_1 = arith.constant 0 : i32
    return %c0_i32, %c0_i32_0 : i32, i32
  }
  func.func @transform_7(%arg0: i32) -> (i32, i32) {
    %c0_i32 = arith.constant 0 : i32
    %c0_i32_0 = arith.constant 0 : i32
    %c0_i32_1 = arith.constant 0 : i32
    return %c0_i32, %c0_i32_0 : i32, i32
  }
  func.func @transform_8(%arg0: i32) -> (i32, i32) {
    %c0_i32 = arith.constant 0 : i32
    %c0_i32_0 = arith.constant 0 : i32
    %c0_i32_1 = arith.constant 0 : i32
    return %c0_i32, %c0_i32_0 : i32, i32
  }
  func.func @transform_9(%arg0: i32) -> (i32, i32) {
    %c0_i32 = arith.constant 0 : i32
    %c0_i32_0 = arith.constant 0 : i32
    %c0_i32_1 = arith.constant 0 : i32
    return %c0_i32, %c0_i32_0 : i32, i32
  }
  func.func @transform_10(%arg0: i32) -> (i32, i32) {
    %c0_i32 = arith.constant 0 : i32
    %c0_i32_0 = arith.constant 0 : i32
    %c0_i32_1 = arith.constant 0 : i32
    return %c0_i32, %c0_i32_0 : i32, i32
  }
  func.func @transform_11(%arg0: i32) -> (i32, i32) {
    %c0_i32 = arith.constant 0 : i32
    %c0_i32_0 = arith.constant 0 : i32
    return %arg0, %c0_i32 : i32, i32
  }
}

</mosaic_0001>

<llo_original>
// kernel: strategy_evaluator.1
$region0: #{strategy_evaluator.1}
  #allocation0 [shape = 'u32[]', space=smem, size = 0x4, offset = 0x4, fixed_abs, tag = 'smem constant byte address 0x4 - core index']
  #allocation1 [shape = 'u32[72,128]{1,0:T(1,128)}', space=vmem, size = 0x9000, scoped, tag = 'internal scratch']
  %s0 = inlined_call_operand.vmem [shape: bf16[16,256], index: 0, kind: input, shape index: {}]
  %s1 = inlined_call_operand.hbm [shape: bf16[256,1280], index: 1, kind: input, shape index: {}]
  %s2 = inlined_call_operand.vmem [shape: f32[1,1280], index: 2, kind: input, shape index: {}]
  %s3 = inlined_call_operand.vmem [shape: f32[1,1280], index: 3, kind: input, shape index: {}]
  %s4 = inlined_call_operand.vmem [shape: f32[1,1280], index: 4, kind: input, shape index: {}]
  %s5 = inlined_call_operand.hbm [shape: bf16[1024,512], index: 5, kind: input, shape index: {}]
  %s6 = inlined_call_operand.vmem [shape: f32[1,512], index: 6, kind: input, shape index: {}]
  %s7 = inlined_call_operand.hbm [shape: bf16[512,128], index: 7, kind: input, shape index: {}]
  %s8 = inlined_call_operand.hbm [shape: bf16[256,128], index: 8, kind: input, shape index: {}]
  %s9 = inlined_call_operand.vmem [shape: f32[1,128], index: 9, kind: input, shape index: {}]
  %s10 = inlined_call_operand.vmem [shape: f32[1,128], index: 10, kind: input, shape index: {}]
  %s11 = inlined_call_operand.vmem [shape: f32[16,128], index: 11, kind: output, shape index: {}]
  %s12 = sld [smem:[#allocation0]]
  $region70: #{strategy_evaluator.1} parent=0
    _
  %s14 = ssub.s32 1, %s12
  %s15 = scalar_select 0, %s14, %s12
  $region1: #{strategy_evaluator.1} parent=0
    #allocation2 [shape = 'u8[655360]{0}', space=vmem, size = 0xa0000, scoped, tag = 'input window, operand 1, single buffered']
    #allocation3 [shape = 's32[1]{0}', space=sflag, size = 0x4, scoped, tag = 'scoped memory for strategy_evaluator.1']
    #allocation4 [shape = 'u8[1048576]{0}', space=vmem, size = 0x100000, scoped, tag = 'input window, operand 5, single buffered']
    #allocation5 [shape = 's32[1]{0}', space=sflag, size = 0x4, scoped, tag = 'scoped memory for strategy_evaluator.1']
    #allocation6 [shape = 'u8[131072]{0}', space=vmem, size = 0x20000, scoped, tag = 'input window, operand 7, single buffered']
    #allocation7 [shape = 'u8[65536]{0}', space=vmem, size = 0x10000, scoped, tag = 'input window, operand 8, single buffered']
    #allocation8 [shape = 's32[1]{0}', space=sflag, size = 0x4, scoped, tag = 'scoped memory for strategy_evaluator.1']
    %16 = vsyncpa [#allocation3], 0
    %17 = vsyncpa [#allocation5], 0
    %18 = vsyncpa [#allocation8], 0
    // Predicated region
    $region2: #{strategy_evaluator.1} parent=1 // pred_check
      _
    $region3: #{strategy_evaluator.1} parent=1 // pred_check_branch
      %20 = sbr.rel (0) target = $region5
    $region4: #{strategy_evaluator.1} parent=1 // pred_region
      _
    $region5: #{strategy_evaluator.1} parent=1 // pred_fallthru
      _
    // Predicated region
    $region6: #{strategy_evaluator.1} parent=1 // pred_check
      _
    $region7: #{strategy_evaluator.1} parent=1 // pred_check_branch
      %22 = sbr.rel (0) target = $region9
    $region8: #{strategy_evaluator.1} parent=1 // pred_region
      %24 = vsyncadd [#allocation3], 0
      %s25 = sshll.u32 %s1, 4
      %s26 = int_to_ptr.hbm [resolvable:$true] %s25
      %s27 = sshll.u32 [#allocation2], 4
      %s28 = int_to_ptr.vmem [resolvable:$true] %s27
      %33 = dma.hbm_to_vmem [thread:$0]  %s26, 20480, %s28, [#allocation3], 640, 640, 40
    $region9: #{strategy_evaluator.1} parent=1 // pred_fallthru
      _
    // Predicated region
    $region10: #{strategy_evaluator.1} parent=1 // pred_check
      _
    $region11: #{strategy_evaluator.1} parent=1 // pred_check_branch
      %35 = sbr.rel (0) target = $region13
    $region12: #{strategy_evaluator.1} parent=1 // pred_region
      _
    $region13: #{strategy_evaluator.1} parent=1 // pred_fallthru
      _
    // Predicated region
    $region14: #{strategy_evaluator.1} parent=1 // pred_check
      _
    $region15: #{strategy_evaluator.1} parent=1 // pred_check_branch
      %37 = sbr.rel (0) target = $region17
    $region16: #{strategy_evaluator.1} parent=1 // pred_region
      _
    $region17: #{strategy_evaluator.1} parent=1 // pred_fallthru
      _
    // Predicated region
    $region18: #{strategy_evaluator.1} parent=1 // pred_check
      _
    $region19: #{strategy_evaluator.1} parent=1 // pred_check_branch
      %39 = sbr.rel (0) target = $region21
    $region20: #{strategy_evaluator.1} parent=1 // pred_region
      _
    $region21: #{strategy_evaluator.1} parent=1 // pred_fallthru
      _
    // Predicated region
    $region22: #{strategy_evaluator.1} parent=1 // pred_check
      _
    $region23: #{strategy_evaluator.1} parent=1 // pred_check_branch
      %41 = sbr.rel (0) target = $region25
    $region24: #{strategy_evaluator.1} parent=1 // pred_region
      %43 = vsyncadd [#allocation5], 0
      %s44 = sshll.u32 %s5, 4
      %s45 = int_to_ptr.hbm [resolvable:$true] %s44
      %s46 = sshll.u32 [#allocation4], 4
      %s47 = int_to_ptr.vmem [resolvable:$true] %s46
      %52 = dma.hbm_to_vmem [thread:$0]  %s45, 32768, %s47, [#allocation5], 256, 256, 16
    $region25: #{strategy_evaluator.1} parent=1 // pred_fallthru
      _
    // Predicated region
    $region26: #{strategy_evaluator.1} parent=1 // pred_check
      _
    $region27: #{strategy_evaluator.1} parent=1 // pred_check_branch
      %54 = sbr.rel (0) target = $region29
    $region28: #{strategy_evaluator.1} parent=1 // pred_region
      _
    $region29: #{strategy_evaluator.1} parent=1 // pred_fallthru
      _
    // Predicated region
    $region30: #{strategy_evaluator.1} parent=1 // pred_check
      _
    $region31: #{strategy_evaluator.1} parent=1 // pred_check_branch
      %56 = sbr.rel (0) target = $region33
    $region32: #{strategy_evaluator.1} parent=1 // pred_region
      %58 = vsyncadd [#allocation5], 0
      %s59 = sshll.u32 %s7, 4
      %s60 = int_to_ptr.hbm [resolvable:$true] %s59
      %s61 = sshll.u32 [#allocation6], 4
      %s62 = int_to_ptr.vmem [resolvable:$true] %s61
      %67 = dma.hbm_to_vmem [thread:$0]  %s60, 4096, %s62, [#allocation5], 64, 64, 4
    $region33: #{strategy_evaluator.1} parent=1 // pred_fallthru
      _
    // Predicated region
    $region34: #{strategy_evaluator.1} parent=1 // pred_check
      _
    $region35: #{strategy_evaluator.1} parent=1 // pred_check_branch
      %69 = sbr.rel (0) target = $region37
    $region36: #{strategy_evaluator.1} parent=1 // pred_region
      %71 = vsyncadd [#allocation8], 0
      %s72 = sshll.u32 %s8, 4
      %s73 = int_to_ptr.hbm [resolvable:$true] %s72
      %s74 = sshll.u32 [#allocation7], 4
      %s75 = int_to_ptr.vmem [resolvable:$true] %s74
      %80 = dma.hbm_to_vmem [thread:$0]  %s73, 2048, %s75, [#allocation8], 64, 64, 4
    $region37: #{strategy_evaluator.1} parent=1 // pred_fallthru
      _
    // Predicated region
    $region38: #{strategy_evaluator.1} parent=1 // pred_check
      _
    $region39: #{strategy_evaluator.1} parent=1 // pred_check_branch
      %82 = sbr.rel (0) target = $region41
    $region40: #{strategy_evaluator.1} parent=1 // pred_region
      _
    $region41: #{strategy_evaluator.1} parent=1 // pred_fallthru
      _
    // Predicated region
    $region42: #{strategy_evaluator.1} parent=1 // pred_check
      _
    $region43: #{strategy_evaluator.1} parent=1 // pred_check_branch
      %84 = sbr.rel (0) target = $region45
    $region44: #{strategy_evaluator.1} parent=1 // pred_region
      _
    $region45: #{strategy_evaluator.1} parent=1 // pred_fallthru
      _
    // Predicated region
    $region46: #{strategy_evaluator.1} parent=1 // pred_check
      _
    $region47: #{strategy_evaluator.1} parent=1 // pred_check_branch
      %86 = sbr.rel (0) target = $region49
    $region48: #{strategy_evaluator.1} parent=1 // pred_region
      %88 = dma.done [#allocation3], 20480
    $region49: #{strategy_evaluator.1} parent=1 // pred_fallthru
      _
    // Predicated region
    $region50: #{strategy_evaluator.1} parent=1 // pred_check
      _
    $region51: #{strategy_evaluator.1} parent=1 // pred_check_branch
      %90 = sbr.rel (0) target = $region53
    $region52: #{strategy_evaluator.1} parent=1 // pred_region
      %92 = dma.done [#allocation5], 32768
    $region53: #{strategy_evaluator.1} parent=1 // pred_fallthru
      _
    // Predicated region
    $region54: #{strategy_evaluator.1} parent=1 // pred_check
      _
    $region55: #{strategy_evaluator.1} parent=1 // pred_check_branch
      %94 = sbr.rel (0) target = $region57
    $region56: #{strategy_evaluator.1} parent=1 // pred_region
      %96 = dma.done [#allocation5], 4096
    $region57: #{strategy_evaluator.1} parent=1 // pred_fallthru
      _
    // Predicated region
    $region58: #{strategy_evaluator.1} parent=1 // pred_check
      _
    $region59: #{strategy_evaluator.1} parent=1 // pred_check_branch
      %98 = sbr.rel (0) target = $region61
    $region60: #{strategy_evaluator.1} parent=1 // pred_region
      %100 = dma.done [#allocation8], 2048
    $region61: #{strategy_evaluator.1} parent=1 // pred_fallthru
      _
    %v101 = vld [vmem:[%s0] sm:$0xff]
    %v102 = vld [vmem:[%s0 + $0x8] sm:$0xff]
    %v103 = vld [vmem:[#allocation2] sm:$0xff]
    %v104 = vld [vmem:[#allocation2 + $0x8] sm:$0xff]
    %v105 = vld [vmem:[#allocation2 + $0x10] sm:$0xff]
    %v106 = vld [vmem:[#allocation2 + $0x18] sm:$0xff]
    %v107 = vld [vmem:[#allocation2 + $0x20] sm:$0xff]
    %v108 = vld [vmem:[#allocation2 + $0x28] sm:$0xff]
    %v109 = vld [vmem:[#allocation2 + $0x30] sm:$0xff]
    %v110 = vld [vmem:[#allocation2 + $0x38] sm:$0xff]
    %v111 = vld [vmem:[#allocation2 + $0x40] sm:$0xff]
    %v112 = vld [vmem:[#allocation2 + $0x48] sm:$0xff]
    %v113 = vld [vmem:[#allocation2 + $0x50] sm:$0xff]
    %v114 = vld [vmem:[#allocation2 + $0x58] sm:$0xff]
    %v115 = vld [vmem:[#allocation2 + $0x60] sm:$0xff]
    %v116 = vld [vmem:[#allocation2 + $0x68] sm:$0xff]
    %v117 = vld [vmem:[#allocation2 + $0x70] sm:$0xff]
    %v118 = vld [vmem:[#allocation2 + $0x78] sm:$0xff]
    %v119 = vld [vmem:[#allocation2 + $0x80] sm:$0xff]
    %v120 = vld [vmem:[#allocation2 + $0x88] sm:$0xff]
    %v121 = vld [vmem:[#allocation2 + $0x90] sm:$0xff]
    %v122 = vld [vmem:[#allocation2 + $0x98] sm:$0xff]
    %v123 = vld [vmem:[#allocation2 + $0xa0] sm:$0xff]
    %v124 = vld [vmem:[#allocation2 + $0xa8] sm:$0xff]
    %v125 = vld [vmem:[#allocation2 + $0xb0] sm:$0xff]
    %v126 = vld [vmem:[#allocation2 + $0xb8] sm:$0xff]
    %v127 = vld [vmem:[#allocation2 + $0xc0] sm:$0xff]
    %v128 = vld [vmem:[#allocation2 + $0xc8] sm:$0xff]
    %v129 = vld [vmem:[#allocation2 + $0xd0] sm:$0xff]
    %v130 = vld [vmem:[#allocation2 + $0xd8] sm:$0xff]
    %v131 = vld [vmem:[#allocation2 + $0xe0] sm:$0xff]
    %v132 = vld [vmem:[#allocation2 + $0xe8] sm:$0xff]
    %v133 = vld [vmem:[#allocation2 + $0xf0] sm:$0xff]
    %v134 = vld [vmem:[#allocation2 + $0xf8] sm:$0xff]
    %v135 = vld [vmem:[#allocation2 + $0x100] sm:$0xff]
    %v136 = vld [vmem:[#allocation2 + $0x108] sm:$0xff]
    %v137 = vld [vmem:[#allocation2 + $0x110] sm:$0xff]
    %v138 = vld [vmem:[#allocation2 + $0x118] sm:$0xff]
    %v139 = vld [vmem:[#allocation2 + $0x120] sm:$0xff]
    %v140 = vld [vmem:[#allocation2 + $0x128] sm:$0xff]
    %v141 = vld [vmem:[#allocation2 + $0x130] sm:$0xff]
    %v142 = vld [vmem:[#allocation2 + $0x138] sm:$0xff]
    %v143 = vld [vmem:[#allocation2 + $0x140] sm:$0xff]
    %v144 = vld [vmem:[#allocation2 + $0x148] sm:$0xff]
    %v145 = vld [vmem:[#allocation2 + $0x150] sm:$0xff]
    %v146 = vld [vmem:[#allocation2 + $0x158] sm:$0xff]
    %v147 = vld [vmem:[#allocation2 + $0x160] sm:$0xff]
    %v148 = vld [vmem:[#allocation2 + $0x168] sm:$0xff]
    %v149 = vld [vmem:[#allocation2 + $0x170] sm:$0xff]
    %v150 = vld [vmem:[#allocation2 + $0x178] sm:$0xff]
    %v151 = vld [vmem:[#allocation2 + $0x180] sm:$0xff]
    %v152 = vld [vmem:[#allocation2 + $0x188] sm:$0xff]
    %v153 = vld [vmem:[#allocation2 + $0x190] sm:$0xff]
    %v154 = vld [vmem:[#allocation2 + $0x198] sm:$0xff]
    %v155 = vld [vmem:[#allocation2 + $0x1a0] sm:$0xff]
    %v156 = vld [vmem:[#allocation2 + $0x1a8] sm:$0xff]
    %v157 = vld [vmem:[#allocation2 + $0x1b0] sm:$0xff]
    %v158 = vld [vmem:[#allocation2 + $0x1b8] sm:$0xff]
    %v159 = vld [vmem:[#allocation2 + $0x1c0] sm:$0xff]
    %v160 = vld [vmem:[#allocation2 + $0x1c8] sm:$0xff]
    %v161 = vld [vmem:[#allocation2 + $0x1d0] sm:$0xff]
    %v162 = vld [vmem:[#allocation2 + $0x1d8] sm:$0xff]
    %v163 = vld [vmem:[#allocation2 + $0x1e0] sm:$0xff]
    %v164 = vld [vmem:[#allocation2 + $0x1e8] sm:$0xff]
    %v165 = vld [vmem:[#allocation2 + $0x1f0] sm:$0xff]
    %v166 = vld [vmem:[#allocation2 + $0x1f8] sm:$0xff]
    %v167 = vld [vmem:[#allocation2 + $0x200] sm:$0xff]
    %v168 = vld [vmem:[#allocation2 + $0x208] sm:$0xff]
    %v169 = vld [vmem:[#allocation2 + $0x210] sm:$0xff]
    %v170 = vld [vmem:[#allocation2 + $0x218] sm:$0xff]
    %v171 = vld [vmem:[#allocation2 + $0x220] sm:$0xff]
    %v172 = vld [vmem:[#allocation2 + $0x228] sm:$0xff]
    %v173 = vld [vmem:[#allocation2 + $0x230] sm:$0xff]
    %v174 = vld [vmem:[#allocation2 + $0x238] sm:$0xff]
    %v175 = vld [vmem:[#allocation2 + $0x240] sm:$0xff]
    %v176 = vld [vmem:[#allocation2 + $0x248] sm:$0xff]
    %v177 = vld [vmem:[#allocation2 + $0x250] sm:$0xff]
    %v178 = vld [vmem:[#allocation2 + $0x258] sm:$0xff]
    %v179 = vld [vmem:[#allocation2 + $0x260] sm:$0xff]
    %v180 = vld [vmem:[#allocation2 + $0x268] sm:$0xff]
    %v181 = vld [vmem:[#allocation2 + $0x270] sm:$0xff]
    %v182 = vld [vmem:[#allocation2 + $0x278] sm:$0xff]
    %v183 = vld [vmem:[#allocation2 + $0x280] sm:$0xff]
    %v184 = vld [vmem:[#allocation2 + $0x288] sm:$0xff]
    %v185 = vld [vmem:[#allocation2 + $0x290] sm:$0xff]
    %v186 = vld [vmem:[#allocation2 + $0x298] sm:$0xff]
    %v187 = vld [vmem:[#allocation2 + $0x2a0] sm:$0xff]
    %v188 = vld [vmem:[#allocation2 + $0x2a8] sm:$0xff]
    %v189 = vld [vmem:[#allocation2 + $0x2b0] sm:$0xff]
    %v190 = vld [vmem:[#allocation2 + $0x2b8] sm:$0xff]
    %v191 = vld [vmem:[#allocation2 + $0x2c0] sm:$0xff]
    %v192 = vld [vmem:[#allocation2 + $0x2c8] sm:$0xff]
    %v193 = vld [vmem:[#allocation2 + $0x2d0] sm:$0xff]
    %v194 = vld [vmem:[#allocation2 + $0x2d8] sm:$0xff]
    %v195 = vld [vmem:[#allocation2 + $0x2e0] sm:$0xff]
    %v196 = vld [vmem:[#allocation2 + $0x2e8] sm:$0xff]
    %v197 = vld [vmem:[#allocation2 + $0x2f0] sm:$0xff]
    %v198 = vld [vmem:[#allocation2 + $0x2f8] sm:$0xff]
    %v199 = vld [vmem:[#allocation2 + $0x300] sm:$0xff]
    %v200 = vld [vmem:[#allocation2 + $0x308] sm:$0xff]
    %v201 = vld [vmem:[#allocation2 + $0x310] sm:$0xff]
    %v202 = vld [vmem:[#allocation2 + $0x318] sm:$0xff]
    %v203 = vld [vmem:[#allocation2 + $0x320] sm:$0xff]
    %v204 = vld [vmem:[#allocation2 + $0x328] sm:$0xff]
    %v205 = vld [vmem:[#allocation2 + $0x330] sm:$0xff]
    %v206 = vld [vmem:[#allocation2 + $0x338] sm:$0xff]
    %v207 = vld [vmem:[#allocation2 + $0x340] sm:$0xff]
    %v208 = vld [vmem:[#allocation2 + $0x348] sm:$0xff]
    %v209 = vld [vmem:[#allocation2 + $0x350] sm:$0xff]
    %v210 = vld [vmem:[#allocation2 + $0x358] sm:$0xff]
    %v211 = vld [vmem:[#allocation2 + $0x360] sm:$0xff]
    %v212 = vld [vmem:[#allocation2 + $0x368] sm:$0xff]
    %v213 = vld [vmem:[#allocation2 + $0x370] sm:$0xff]
    %v214 = vld [vmem:[#allocation2 + $0x378] sm:$0xff]
    %v215 = vld [vmem:[#allocation2 + $0x380] sm:$0xff]
    %v216 = vld [vmem:[#allocation2 + $0x388] sm:$0xff]
    %v217 = vld [vmem:[#allocation2 + $0x390] sm:$0xff]
    %v218 = vld [vmem:[#allocation2 + $0x398] sm:$0xff]
    %v219 = vld [vmem:[#allocation2 + $0x3a0] sm:$0xff]
    %v220 = vld [vmem:[#allocation2 + $0x3a8] sm:$0xff]
    %v221 = vld [vmem:[#allocation2 + $0x3b0] sm:$0xff]
    %v222 = vld [vmem:[#allocation2 + $0x3b8] sm:$0xff]
    %v223 = vld [vmem:[#allocation2 + $0x3c0] sm:$0xff]
    %v224 = vld [vmem:[#allocation2 + $0x3c8] sm:$0xff]
    %v225 = vld [vmem:[#allocation2 + $0x3d0] sm:$0xff]
    %v226 = vld [vmem:[#allocation2 + $0x3d8] sm:$0xff]
    %v227 = vld [vmem:[#allocation2 + $0x3e0] sm:$0xff]
    %v228 = vld [vmem:[#allocation2 + $0x3e8] sm:$0xff]
    %v229 = vld [vmem:[#allocation2 + $0x3f0] sm:$0xff]
    %v230 = vld [vmem:[#allocation2 + $0x3f8] sm:$0xff]
    %v231 = vld [vmem:[#allocation2 + $0x400] sm:$0xff]
    %v232 = vld [vmem:[#allocation2 + $0x408] sm:$0xff]
    %v233 = vld [vmem:[#allocation2 + $0x410] sm:$0xff]
    %v234 = vld [vmem:[#allocation2 + $0x418] sm:$0xff]
    %v235 = vld [vmem:[#allocation2 + $0x420] sm:$0xff]
    %v236 = vld [vmem:[#allocation2 + $0x428] sm:$0xff]
    %v237 = vld [vmem:[#allocation2 + $0x430] sm:$0xff]
    %v238 = vld [vmem:[#allocation2 + $0x438] sm:$0xff]
    %v239 = vld [vmem:[#allocation2 + $0x440] sm:$0xff]
    %v240 = vld [vmem:[#allocation2 + $0x448] sm:$0xff]
    %v241 = vld [vmem:[#allocation2 + $0x450] sm:$0xff]
    %v242 = vld [vmem:[#allocation2 + $0x458] sm:$0xff]
    %v243 = vld [vmem:[#allocation2 + $0x460] sm:$0xff]
    %v244 = vld [vmem:[#allocation2 + $0x468] sm:$0xff]
    %v245 = vld [vmem:[#allocation2 + $0x470] sm:$0xff]
    %v246 = vld [vmem:[#allocation2 + $0x478] sm:$0xff]
    %v247 = vld [vmem:[#allocation2 + $0x480] sm:$0xff]
    %v248 = vld [vmem:[#allocation2 + $0x488] sm:$0xff]
    %v249 = vld [vmem:[#allocation2 + $0x490] sm:$0xff]
    %v250 = vld [vmem:[#allocation2 + $0x498] sm:$0xff]
    %v251 = vld [vmem:[#allocation2 + $0x4a0] sm:$0xff]
    %v252 = vld [vmem:[#allocation2 + $0x4a8] sm:$0xff]
    %v253 = vld [vmem:[#allocation2 + $0x4b0] sm:$0xff]
    %v254 = vld [vmem:[#allocation2 + $0x4b8] sm:$0xff]
    %v255 = vld [vmem:[#allocation2 + $0x4c0] sm:$0xff]
    %v256 = vld [vmem:[#allocation2 + $0x4c8] sm:$0xff]
    %v257 = vld [vmem:[#allocation2 + $0x4d0] sm:$0xff]
    %v258 = vld [vmem:[#allocation2 + $0x4d8] sm:$0xff]
    %v259 = vld [vmem:[#allocation2 + $0x4e0] sm:$0xff]
    %v260 = vld [vmem:[#allocation2 + $0x4e8] sm:$0xff]
    %v261 = vld [vmem:[#allocation2 + $0x4f0] sm:$0xff]
    %v262 = vld [vmem:[#allocation2 + $0x4f8] sm:$0xff]
    %v263 = vld [vmem:[%s2] sm:$0xff]
    %v264 = vld [vmem:[%s2 + $0x8] sm:$0x3]
    %v267 = vperm.slane %v263, 0
    %v268 = vperm.slane %v263, 1
    %v269 = vperm.slane %v263, 2
    %v270 = vperm.slane %v263, 3
    %v271 = vperm.slane %v263, 4
    %v272 = vperm.slane %v263, 5
    %v273 = vperm.slane %v263, 6
    %v274 = vperm.slane %v263, 7
    %v275 = vperm.slane %v264, 0
    %v276 = vperm.slane %v264, 1
    %v289 = vunpack.c.l.b16 %v101
    %v290 = vunpack.c.h.b16 %v101
    %v291 = vunpack.c.l.b16 %v102
    %v292 = vunpack.c.h.b16 %v102
    %v293 = vpack.c.b16 %v291, %v289
    %v294 = vpack.c.b16 %v292, %v290
    %v457 = vunpack.c.l.b16 %v103
    %v458 = vunpack.c.h.b16 %v103
    %v459 = vunpack.c.l.b16 %v104
    %v460 = vunpack.c.h.b16 %v104
    %v461 = vunpack.c.l.b16 %v105
    %v462 = vunpack.c.h.b16 %v105
    %v463 = vunpack.c.l.b16 %v106
    %v464 = vunpack.c.h.b16 %v106
    %v465 = vunpack.c.l.b16 %v107
    %v466 = vunpack.c.h.b16 %v107
    %v467 = vunpack.c.l.b16 %v108
    %v468 = vunpack.c.h.b16 %v108
    %v469 = vunpack.c.l.b16 %v109
    %v470 = vunpack.c.h.b16 %v109
    %v471 = vunpack.c.l.b16 %v110
    %v472 = vunpack.c.h.b16 %v110
    %v473 = vunpack.c.l.b16 %v111
    %v474 = vunpack.c.h.b16 %v111
    %v475 = vunpack.c.l.b16 %v112
    %v476 = vunpack.c.h.b16 %v112
    %v477 = vunpack.c.l.b16 %v113
    %v478 = vunpack.c.h.b16 %v113
    %v479 = vunpack.c.l.b16 %v114
    %v480 = vunpack.c.h.b16 %v114
    %v481 = vunpack.c.l.b16 %v115
    %v482 = vunpack.c.h.b16 %v115
    %v483 = vunpack.c.l.b16 %v116
    %v484 = vunpack.c.h.b16 %v116
    %v485 = vunpack.c.l.b16 %v117
    %v486 = vunpack.c.h.b16 %v117
    %v487 = vunpack.c.l.b16 %v118
    %v488 = vunpack.c.h.b16 %v118
    %v489 = vunpack.c.l.b16 %v119
    %v490 = vunpack.c.h.b16 %v119
    %v491 = vunpack.c.l.b16 %v120
    %v492 = vunpack.c.h.b16 %v120
    %v493 = vunpack.c.l.b16 %v121
    %v494 = vunpack.c.h.b16 %v121
    %v495 = vunpack.c.l.b16 %v122
    %v496 = vunpack.c.h.b16 %v122
    %v497 = vunpack.c.l.b16 %v123
    %v498 = vunpack.c.h.b16 %v123
    %v499 = vunpack.c.l.b16 %v124
    %v500 = vunpack.c.h.b16 %v124
    %v501 = vunpack.c.l.b16 %v125
    %v502 = vunpack.c.h.b16 %v125
    %v503 = vunpack.c.l.b16 %v126
    %v504 = vunpack.c.h.b16 %v126
    %v505 = vunpack.c.l.b16 %v127
    %v506 = vunpack.c.h.b16 %v127
    %v507 = vunpack.c.l.b16 %v128
    %v508 = vunpack.c.h.b16 %v128
    %v509 = vunpack.c.l.b16 %v129
    %v510 = vunpack.c.h.b16 %v129
    %v511 = vunpack.c.l.b16 %v130
    %v512 = vunpack.c.h.b16 %v130
    %v513 = vunpack.c.l.b16 %v131
    %v514 = vunpack.c.h.b16 %v131
    %v515 = vunpack.c.l.b16 %v132
    %v516 = vunpack.c.h.b16 %v132
    %v517 = vunpack.c.l.b16 %v133
    %v518 = vunpack.c.h.b16 %v133
    %v519 = vunpack.c.l.b16 %v134
    %v520 = vunpack.c.h.b16 %v134
    %v521 = vunpack.c.l.b16 %v135
    %v522 = vunpack.c.h.b16 %v135
    %v523 = vunpack.c.l.b16 %v136
    %v524 = vunpack.c.h.b16 %v136
    %v525 = vunpack.c.l.b16 %v137
    %v526 = vunpack.c.h.b16 %v137
    %v527 = vunpack.c.l.b16 %v138
    %v528 = vunpack.c.h.b16 %v138
    %v529 = vunpack.c.l.b16 %v139
    %v530 = vunpack.c.h.b16 %v139
    %v531 = vunpack.c.l.b16 %v140
    %v532 = vunpack.c.h.b16 %v140
    %v533 = vunpack.c.l.b16 %v141
    %v534 = vunpack.c.h.b16 %v141
    %v535 = vunpack.c.l.b16 %v142
    %v536 = vunpack.c.h.b16 %v142
    %v537 = vunpack.c.l.b16 %v143
    %v538 = vunpack.c.h.b16 %v143
    %v539 = vunpack.c.l.b16 %v144
    %v540 = vunpack.c.h.b16 %v144
    %v541 = vunpack.c.l.b16 %v145
    %v542 = vunpack.c.h.b16 %v145
    %v543 = vunpack.c.l.b16 %v146
    %v544 = vunpack.c.h.b16 %v146
    %v545 = vunpack.c.l.b16 %v147
    %v546 = vunpack.c.h.b16 %v147
    %v547 = vunpack.c.l.b16 %v148
    %v548 = vunpack.c.h.b16 %v148
    %v549 = vunpack.c.l.b16 %v149
    %v550 = vunpack.c.h.b16 %v149
    %v551 = vunpack.c.l.b16 %v150
    %v552 = vunpack.c.h.b16 %v150
    %v553 = vunpack.c.l.b16 %v151
    %v554 = vunpack.c.h.b16 %v151
    %v555 = vunpack.c.l.b16 %v152
    %v556 = vunpack.c.h.b16 %v152
    %v557 = vunpack.c.l.b16 %v153
    %v558 = vunpack.c.h.b16 %v153
    %v559 = vunpack.c.l.b16 %v154
    %v560 = vunpack.c.h.b16 %v154
    %v561 = vunpack.c.l.b16 %v155
    %v562 = vunpack.c.h.b16 %v155
    %v563 = vunpack.c.l.b16 %v156
    %v564 = vunpack.c.h.b16 %v156
    %v565 = vunpack.c.l.b16 %v157
    %v566 = vunpack.c.h.b16 %v157
    %v567 = vunpack.c.l.b16 %v158
    %v568 = vunpack.c.h.b16 %v158
    %v569 = vunpack.c.l.b16 %v159
    %v570 = vunpack.c.h.b16 %v159
    %v571 = vunpack.c.l.b16 %v160
    %v572 = vunpack.c.h.b16 %v160
    %v573 = vunpack.c.l.b16 %v161
    %v574 = vunpack.c.h.b16 %v161
    %v575 = vunpack.c.l.b16 %v162
    %v576 = vunpack.c.h.b16 %v162
    %v577 = vunpack.c.l.b16 %v163
    %v578 = vunpack.c.h.b16 %v163
    %v579 = vunpack.c.l.b16 %v164
    %v580 = vunpack.c.h.b16 %v164
    %v581 = vunpack.c.l.b16 %v165
    %v582 = vunpack.c.h.b16 %v165
    %v583 = vunpack.c.l.b16 %v166
    %v584 = vunpack.c.h.b16 %v166
    %v585 = vunpack.c.l.b16 %v167
    %v586 = vunpack.c.h.b16 %v167
    %v587 = vunpack.c.l.b16 %v168
    %v588 = vunpack.c.h.b16 %v168
    %v589 = vunpack.c.l.b16 %v169
    %v590 = vunpack.c.h.b16 %v169
    %v591 = vunpack.c.l.b16 %v170
    %v592 = vunpack.c.h.b16 %v170
    %v593 = vunpack.c.l.b16 %v171
    %v594 = vunpack.c.h.b16 %v171
    %v595 = vunpack.c.l.b16 %v172
    %v596 = vunpack.c.h.b16 %v172
    %v597 = vunpack.c.l.b16 %v173
    %v598 = vunpack.c.h.b16 %v173
    %v599 = vunpack.c.l.b16 %v174
    %v600 = vunpack.c.h.b16 %v174
    %v601 = vunpack.c.l.b16 %v175
    %v602 = vunpack.c.h.b16 %v175
    %v603 = vunpack.c.l.b16 %v176
    %v604 = vunpack.c.h.b16 %v176
    %v605 = vunpack.c.l.b16 %v177
    %v606 = vunpack.c.h.b16 %v177
    %v607 = vunpack.c.l.b16 %v178
    %v608 = vunpack.c.h.b16 %v178
    %v609 = vunpack.c.l.b16 %v179
    %v610 = vunpack.c.h.b16 %v179
    %v611 = vunpack.c.l.b16 %v180
    %v612 = vunpack.c.h.b16 %v180
    %v613 = vunpack.c.l.b16 %v181
    %v614 = vunpack.c.h.b16 %v181
    %v615 = vunpack.c.l.b16 %v182
    %v616 = vunpack.c.h.b16 %v182
    %v617 = vunpack.c.l.b16 %v183
    %v618 = vunpack.c.h.b16 %v183
    %v619 = vunpack.c.l.b16 %v184
    %v620 = vunpack.c.h.b16 %v184
    %v621 = vunpack.c.l.b16 %v185
    %v622 = vunpack.c.h.b16 %v185
    %v623 = vunpack.c.l.b16 %v186
    %v624 = vunpack.c.h.b16 %v186
    %v625 = vunpack.c.l.b16 %v187
    %v626 = vunpack.c.h.b16 %v187
    %v627 = vunpack.c.l.b16 %v188
    %v628 = vunpack.c.h.b16 %v188
    %v629 = vunpack.c.l.b16 %v189
    %v630 = vunpack.c.h.b16 %v189
    %v631 = vunpack.c.l.b16 %v190
    %v632 = vunpack.c.h.b16 %v190
    %v633 = vunpack.c.l.b16 %v191
    %v634 = vunpack.c.h.b16 %v191
    %v635 = vunpack.c.l.b16 %v192
    %v636 = vunpack.c.h.b16 %v192
    %v637 = vunpack.c.l.b16 %v193
    %v638 = vunpack.c.h.b16 %v193
    %v639 = vunpack.c.l.b16 %v194
    %v640 = vunpack.c.h.b16 %v194
    %v641 = vunpack.c.l.b16 %v195
    %v642 = vunpack.c.h.b16 %v195
    %v643 = vunpack.c.l.b16 %v196
    %v644 = vunpack.c.h.b16 %v196
    %v645 = vunpack.c.l.b16 %v197
    %v646 = vunpack.c.h.b16 %v197
    %v647 = vunpack.c.l.b16 %v198
    %v648 = vunpack.c.h.b16 %v198
    %v649 = vunpack.c.l.b16 %v199
    %v650 = vunpack.c.h.b16 %v199
    %v651 = vunpack.c.l.b16 %v200
    %v652 = vunpack.c.h.b16 %v200
    %v653 = vunpack.c.l.b16 %v201
    %v654 = vunpack.c.h.b16 %v201
    %v655 = vunpack.c.l.b16 %v202
    %v656 = vunpack.c.h.b16 %v202
    %v657 = vunpack.c.l.b16 %v203
    %v658 = vunpack.c.h.b16 %v203
    %v659 = vunpack.c.l.b16 %v204
    %v660 = vunpack.c.h.b16 %v204
    %v661 = vunpack.c.l.b16 %v205
    %v662 = vunpack.c.h.b16 %v205
    %v663 = vunpack.c.l.b16 %v206
    %v664 = vunpack.c.h.b16 %v206
    %v665 = vunpack.c.l.b16 %v207
    %v666 = vunpack.c.h.b16 %v207
    %v667 = vunpack.c.l.b16 %v208
    %v668 = vunpack.c.h.b16 %v208
    %v669 = vunpack.c.l.b16 %v209
    %v670 = vunpack.c.h.b16 %v209
    %v671 = vunpack.c.l.b16 %v210
    %v672 = vunpack.c.h.b16 %v210
    %v673 = vunpack.c.l.b16 %v211
    %v674 = vunpack.c.h.b16 %v211
    %v675 = vunpack.c.l.b16 %v212
    %v676 = vunpack.c.h.b16 %v212
    %v677 = vunpack.c.l.b16 %v213
    %v678 = vunpack.c.h.b16 %v213
    %v679 = vunpack.c.l.b16 %v214
    %v680 = vunpack.c.h.b16 %v214
    %v681 = vunpack.c.l.b16 %v215
    %v682 = vunpack.c.h.b16 %v215
    %v683 = vunpack.c.l.b16 %v216
    %v684 = vunpack.c.h.b16 %v216
    %v685 = vunpack.c.l.b16 %v217
    %v686 = vunpack.c.h.b16 %v217
    %v687 = vunpack.c.l.b16 %v218
    %v688 = vunpack.c.h.b16 %v218
    %v689 = vunpack.c.l.b16 %v219
    %v690 = vunpack.c.h.b16 %v219
    %v691 = vunpack.c.l.b16 %v220
    %v692 = vunpack.c.h.b16 %v220
    %v693 = vunpack.c.l.b16 %v221
    %v694 = vunpack.c.h.b16 %v221
    %v695 = vunpack.c.l.b16 %v222
    %v696 = vunpack.c.h.b16 %v222
    %v697 = vunpack.c.l.b16 %v223
    %v698 = vunpack.c.h.b16 %v223
    %v699 = vunpack.c.l.b16 %v224
    %v700 = vunpack.c.h.b16 %v224
    %v701 = vunpack.c.l.b16 %v225
    %v702 = vunpack.c.h.b16 %v225
    %v703 = vunpack.c.l.b16 %v226
    %v704 = vunpack.c.h.b16 %v226
    %v705 = vunpack.c.l.b16 %v227
    %v706 = vunpack.c.h.b16 %v227
    %v707 = vunpack.c.l.b16 %v228
    %v708 = vunpack.c.h.b16 %v228
    %v709 = vunpack.c.l.b16 %v229
    %v710 = vunpack.c.h.b16 %v229
    %v711 = vunpack.c.l.b16 %v230
    %v712 = vunpack.c.h.b16 %v230
    %v713 = vunpack.c.l.b16 %v231
    %v714 = vunpack.c.h.b16 %v231
    %v715 = vunpack.c.l.b16 %v232
    %v716 = vunpack.c.h.b16 %v232
    %v717 = vunpack.c.l.b16 %v233
    %v718 = vunpack.c.h.b16 %v233
    %v719 = vunpack.c.l.b16 %v234
    %v720 = vunpack.c.h.b16 %v234
    %v721 = vunpack.c.l.b16 %v235
    %v722 = vunpack.c.h.b16 %v235
    %v723 = vunpack.c.l.b16 %v236
    %v724 = vunpack.c.h.b16 %v236
    %v725 = vunpack.c.l.b16 %v237
    %v726 = vunpack.c.h.b16 %v237
    %v727 = vunpack.c.l.b16 %v238
    %v728 = vunpack.c.h.b16 %v238
    %v729 = vunpack.c.l.b16 %v239
    %v730 = vunpack.c.h.b16 %v239
    %v731 = vunpack.c.l.b16 %v240
    %v732 = vunpack.c.h.b16 %v240
    %v733 = vunpack.c.l.b16 %v241
    %v734 = vunpack.c.h.b16 %v241
    %v735 = vunpack.c.l.b16 %v242
    %v736 = vunpack.c.h.b16 %v242
    %v737 = vunpack.c.l.b16 %v243
    %v738 = vunpack.c.h.b16 %v243
    %v739 = vunpack.c.l.b16 %v244
    %v740 = vunpack.c.h.b16 %v244
    %v741 = vunpack.c.l.b16 %v245
    %v742 = vunpack.c.h.b16 %v245
    %v743 = vunpack.c.l.b16 %v246
    %v744 = vunpack.c.h.b16 %v246
    %v745 = vunpack.c.l.b16 %v247
    %v746 = vunpack.c.h.b16 %v247
    %v747 = vunpack.c.l.b16 %v248
    %v748 = vunpack.c.h.b16 %v248
    %v749 = vunpack.c.l.b16 %v249
    %v750 = vunpack.c.h.b16 %v249
    %v751 = vunpack.c.l.b16 %v250
    %v752 = vunpack.c.h.b16 %v250
    %v753 = vunpack.c.l.b16 %v251
    %v754 = vunpack.c.h.b16 %v251
    %v755 = vunpack.c.l.b16 %v252
    %v756 = vunpack.c.h.b16 %v252
    %v757 = vunpack.c.l.b16 %v253
    %v758 = vunpack.c.h.b16 %v253
    %v759 = vunpack.c.l.b16 %v254
    %v760 = vunpack.c.h.b16 %v254
    %v761 = vunpack.c.l.b16 %v255
    %v762 = vunpack.c.h.b16 %v255
    %v763 = vunpack.c.l.b16 %v256
    %v764 = vunpack.c.h.b16 %v256
    %v765 = vunpack.c.l.b16 %v257
    %v766 = vunpack.c.h.b16 %v257
    %v767 = vunpack.c.l.b16 %v258
    %v768 = vunpack.c.h.b16 %v258
    %v769 = vunpack.c.l.b16 %v259
    %v770 = vunpack.c.h.b16 %v259
    %v771 = vunpack.c.l.b16 %v260
    %v772 = vunpack.c.h.b16 %v260
    %v773 = vunpack.c.l.b16 %v261
    %v774 = vunpack.c.h.b16 %v261
    %v775 = vunpack.c.l.b16 %v262
    %v776 = vunpack.c.h.b16 %v262
    %v777 = vpack.c.b16 %v467, %v457
    %v778 = vpack.c.b16 %v468, %v458
    %v779 = vpack.c.b16 %v469, %v459
    %v780 = vpack.c.b16 %v470, %v460
    %v781 = vpack.c.b16 %v471, %v461
    %v782 = vpack.c.b16 %v472, %v462
    %v783 = vpack.c.b16 %v473, %v463
    %v784 = vpack.c.b16 %v474, %v464
    %v785 = vpack.c.b16 %v475, %v465
    %v786 = vpack.c.b16 %v476, %v466
    %v787 = vpack.c.b16 %v487, %v477
    %v788 = vpack.c.b16 %v488, %v478
    %v789 = vpack.c.b16 %v489, %v479
    %v790 = vpack.c.b16 %v490, %v480
    %v791 = vpack.c.b16 %v491, %v481
    %v792 = vpack.c.b16 %v492, %v482
    %v793 = vpack.c.b16 %v493, %v483
    %v794 = vpack.c.b16 %v494, %v484
    %v795 = vpack.c.b16 %v495, %v485
    %v796 = vpack.c.b16 %v496, %v486
    %v797 = vpack.c.b16 %v507, %v497
    %v798 = vpack.c.b16 %v508, %v498
    %v799 = vpack.c.b16 %v509, %v499
    %v800 = vpack.c.b16 %v510, %v500
    %v801 = vpack.c.b16 %v511, %v501
    %v802 = vpack.c.b16 %v512, %v502
    %v803 = vpack.c.b16 %v513, %v503
    %v804 = vpack.c.b16 %v514, %v504
    %v805 = vpack.c.b16 %v515, %v505
    %v806 = vpack.c.b16 %v516, %v506
    %v807 = vpack.c.b16 %v527, %v517
    %v808 = vpack.c.b16 %v528, %v518
    %v809 = vpack.c.b16 %v529, %v519
    %v810 = vpack.c.b16 %v530, %v520
    %v811 = vpack.c.b16 %v531, %v521
    %v812 = vpack.c.b16 %v532, %v522
    %v813 = vpack.c.b16 %v533, %v523
    %v814 = vpack.c.b16 %v534, %v524
    %v815 = vpack.c.b16 %v535, %v525
    %v816 = vpack.c.b16 %v536, %v526
    %v817 = vpack.c.b16 %v547, %v537
    %v818 = vpack.c.b16 %v548, %v538
    %v819 = vpack.c.b16 %v549, %v539
    %v820 = vpack.c.b16 %v550, %v540
    %v821 = vpack.c.b16 %v551, %v541
    %v822 = vpack.c.b16 %v552, %v542
    %v823 = vpack.c.b16 %v553, %v543
    %v824 = vpack.c.b16 %v554, %v544
    %v825 = vpack.c.b16 %v555, %v545
    %v826 = vpack.c.b16 %v556, %v546
    %v827 = vpack.c.b16 %v567, %v557
    %v828 = vpack.c.b16 %v568, %v558
    %v829 = vpack.c.b16 %v569, %v559
    %v830 = vpack.c.b16 %v570, %v560
    %v831 = vpack.c.b16 %v571, %v561
    %v832 = vpack.c.b16 %v572, %v562
    %v833 = vpack.c.b16 %v573, %v563
    %v834 = vpack.c.b16 %v574, %v564
    %v835 = vpack.c.b16 %v575, %v565
    %v836 = vpack.c.b16 %v576, %v566
    %v837 = vpack.c.b16 %v587, %v577
    %v838 = vpack.c.b16 %v588, %v578
    %v839 = vpack.c.b16 %v589, %v579
    %v840 = vpack.c.b16 %v590, %v580
    %v841 = vpack.c.b16 %v591, %v581
    %v842 = vpack.c.b16 %v592, %v582
    %v843 = vpack.c.b16 %v593, %v583
    %v844 = vpack.c.b16 %v594, %v584
    %v845 = vpack.c.b16 %v595, %v585
    %v846 = vpack.c.b16 %v596, %v586
    %v847 = vpack.c.b16 %v607, %v597
    %v848 = vpack.c.b16 %v608, %v598
    %v849 = vpack.c.b16 %v609, %v599
    %v850 = vpack.c.b16 %v610, %v600
    %v851 = vpack.c.b16 %v611, %v601
    %v852 = vpack.c.b16 %v612, %v602
    %v853 = vpack.c.b16 %v613, %v603
    %v854 = vpack.c.b16 %v614, %v604
    %v855 = vpack.c.b16 %v615, %v605
    %v856 = vpack.c.b16 %v616, %v606
    %v857 = vpack.c.b16 %v627, %v617
    %v858 = vpack.c.b16 %v628, %v618
    %v859 = vpack.c.b16 %v629, %v619
    %v860 = vpack.c.b16 %v630, %v620
    %v861 = vpack.c.b16 %v631, %v621
    %v862 = vpack.c.b16 %v632, %v622
    %v863 = vpack.c.b16 %v633, %v623
    %v864 = vpack.c.b16 %v634, %v624
    %v865 = vpack.c.b16 %v635, %v625
    %v866 = vpack.c.b16 %v636, %v626
    %v867 = vpack.c.b16 %v647, %v637
    %v868 = vpack.c.b16 %v648, %v638
    %v869 = vpack.c.b16 %v649, %v639
    %v870 = vpack.c.b16 %v650, %v640
    %v871 = vpack.c.b16 %v651, %v641
    %v872 = vpack.c.b16 %v652, %v642
    %v873 = vpack.c.b16 %v653, %v643
    %v874 = vpack.c.b16 %v654, %v644
    %v875 = vpack.c.b16 %v655, %v645
    %v876 = vpack.c.b16 %v656, %v646
    %v877 = vpack.c.b16 %v667, %v657
    %v878 = vpack.c.b16 %v668, %v658
    %v879 = vpack.c.b16 %v669, %v659
    %v880 = vpack.c.b16 %v670, %v660
    %v881 = vpack.c.b16 %v671, %v661
    %v882 = vpack.c.b16 %v672, %v662
    %v883 = vpack.c.b16 %v673, %v663
    %v884 = vpack.c.b16 %v674, %v664
    %v885 = vpack.c.b16 %v675, %v665
    %v886 = vpack.c.b16 %v676, %v666
    %v887 = vpack.c.b16 %v687, %v677
    %v888 = vpack.c.b16 %v688, %v678
    %v889 = vpack.c.b16 %v689, %v679
    %v890 = vpack.c.b16 %v690, %v680
    %v891 = vpack.c.b16 %v691, %v681
    %v892 = vpack.c.b16 %v692, %v682
    %v893 = vpack.c.b16 %v693, %v683
    %v894 = vpack.c.b16 %v694, %v684
    %v895 = vpack.c.b16 %v695, %v685
    %v896 = vpack.c.b16 %v696, %v686
    %v897 = vpack.c.b16 %v707, %v697
    %v898 = vpack.c.b16 %v708, %v698
    %v899 = vpack.c.b16 %v709, %v699
    %v900 = vpack.c.b16 %v710, %v700
    %v901 = vpack.c.b16 %v711, %v701
    %v902 = vpack.c.b16 %v712, %v702
    %v903 = vpack.c.b16 %v713, %v703
    %v904 = vpack.c.b16 %v714, %v704
    %v905 = vpack.c.b16 %v715, %v705
    %v906 = vpack.c.b16 %v716, %v706
    %v907 = vpack.c.b16 %v727, %v717
    %v908 = vpack.c.b16 %v728, %v718
    %v909 = vpack.c.b16 %v729, %v719
    %v910 = vpack.c.b16 %v730, %v720
    %v911 = vpack.c.b16 %v731, %v721
    %v912 = vpack.c.b16 %v732, %v722
    %v913 = vpack.c.b16 %v733, %v723
    %v914 = vpack.c.b16 %v734, %v724
    %v915 = vpack.c.b16 %v735, %v725
    %v916 = vpack.c.b16 %v736, %v726
    %v917 = vpack.c.b16 %v747, %v737
    %v918 = vpack.c.b16 %v748, %v738
    %v919 = vpack.c.b16 %v749, %v739
    %v920 = vpack.c.b16 %v750, %v740
    %v921 = vpack.c.b16 %v751, %v741
    %v922 = vpack.c.b16 %v752, %v742
    %v923 = vpack.c.b16 %v753, %v743
    %v924 = vpack.c.b16 %v754, %v744
    %v925 = vpack.c.b16 %v755, %v745
    %v926 = vpack.c.b16 %v756, %v746
    %v927 = vpack.c.b16 %v767, %v757
    %v928 = vpack.c.b16 %v768, %v758
    %v929 = vpack.c.b16 %v769, %v759
    %v930 = vpack.c.b16 %v770, %v760
    %v931 = vpack.c.b16 %v771, %v761
    %v932 = vpack.c.b16 %v772, %v762
    %v933 = vpack.c.b16 %v773, %v763
    %v934 = vpack.c.b16 %v774, %v764
    %v935 = vpack.c.b16 %v775, %v765
    %v936 = vpack.c.b16 %v776, %v766
    %1097 = vmatpush.bf16.msra.mxu0 %v847
    %1098 = vmatpush.bf16.msra.mxu0 %v837
    %1099 = vmatpush.bf16.msra.mxu0 %v827
    %1100 = vmatpush.bf16.msra.mxu0 %v817
    %1101 = vmatpush.bf16.msra.mxu0 %v807
    %1102 = vmatpush.bf16.msra.mxu0 %v797
    %1103 = vmatpush.bf16.msra.mxu0 %v787
    %1104 = vmatpush.bf16.msra.mxu0 %v777
    %1105 = vmatmul.bf16.gmra.mxu0 %v293
    %v1106 = vpop.f32.mrf.mxu0
    %v1107 = vadd.f32 %v267, %v1106
    %v1108 = vpop.f32.mrf.mxu0
    %v1109 = vadd.f32 %v267, %v1108
    %1110 = vdwg.mxu0
    %1111 = vmatpush.bf16.msra.mxu0 %v927
    %1112 = vmatpush.bf16.msra.mxu0 %v917
    %1113 = vmatpush.bf16.msra.mxu0 %v907
    %1114 = vmatpush.bf16.msra.mxu0 %v897
    %1115 = vmatpush.bf16.msra.mxu0 %v887
    %1116 = vmatpush.bf16.msra.mxu0 %v877
    %1117 = vmatpush.bf16.msra.mxu0 %v867
    %1118 = vmatpush.bf16.msra.mxu0 %v857
    %1119 = vmatmul.bf16.gmra.mxu0 %v294
    %v1120 = vpop.f32.mrf.mxu0
    %v1121 = vadd.f32 %v1107, %v1120
    %v1122 = vpop.f32.mrf.mxu0
    %v1123 = vadd.f32 %v1109, %v1122
    %1124 = vdwg.mxu0
    %1125 = vmatpush.bf16.msra.mxu0 %v848
    %1126 = vmatpush.bf16.msra.mxu0 %v838
    %1127 = vmatpush.bf16.msra.mxu0 %v828
    %1128 = vmatpush.bf16.msra.mxu0 %v818
    %1129 = vmatpush.bf16.msra.mxu0 %v808
    %1130 = vmatpush.bf16.msra.mxu0 %v798
    %1131 = vmatpush.bf16.msra.mxu0 %v788
    %1132 = vmatpush.bf16.msra.mxu0 %v778
    %1133 = vmatmul.bf16.gmra.mxu0 %v293
    %v1134 = vpop.f32.mrf.mxu0
    %v1135 = vadd.f32 %v268, %v1134
    %v1136 = vpop.f32.mrf.mxu0
    %v1137 = vadd.f32 %v268, %v1136
    %1138 = vdwg.mxu0
    %1139 = vmatpush.bf16.msra.mxu0 %v928
    %1140 = vmatpush.bf16.msra.mxu0 %v918
    %1141 = vmatpush.bf16.msra.mxu0 %v908
    %1142 = vmatpush.bf16.msra.mxu0 %v898
    %1143 = vmatpush.bf16.msra.mxu0 %v888
    %1144 = vmatpush.bf16.msra.mxu0 %v878
    %1145 = vmatpush.bf16.msra.mxu0 %v868
    %1146 = vmatpush.bf16.msra.mxu0 %v858
    %1147 = vmatmul.bf16.gmra.mxu0 %v294
    %v1148 = vpop.f32.mrf.mxu0
    %v1149 = vadd.f32 %v1135, %v1148
    %v1150 = vpop.f32.mrf.mxu0
    %v1151 = vadd.f32 %v1137, %v1150
    %1152 = vdwg.mxu0
    %1153 = vmatpush.bf16.msra.mxu0 %v849
    %1154 = vmatpush.bf16.msra.mxu0 %v839
    %1155 = vmatpush.bf16.msra.mxu0 %v829
    %1156 = vmatpush.bf16.msra.mxu0 %v819
    %1157 = vmatpush.bf16.msra.mxu0 %v809
    %1158 = vmatpush.bf16.msra.mxu0 %v799
    %1159 = vmatpush.bf16.msra.mxu0 %v789
    %1160 = vmatpush.bf16.msra.mxu0 %v779
    %1161 = vmatmul.bf16.gmra.mxu0 %v293
    %v1162 = vpop.f32.mrf.mxu0
    %v1163 = vadd.f32 %v269, %v1162
    %v1164 = vpop.f32.mrf.mxu0
    %v1165 = vadd.f32 %v269, %v1164
    %1166 = vdwg.mxu0
    %1167 = vmatpush.bf16.msra.mxu0 %v929
    %1168 = vmatpush.bf16.msra.mxu0 %v919
    %1169 = vmatpush.bf16.msra.mxu0 %v909
    %1170 = vmatpush.bf16.msra.mxu0 %v899
    %1171 = vmatpush.bf16.msra.mxu0 %v889
    %1172 = vmatpush.bf16.msra.mxu0 %v879
    %1173 = vmatpush.bf16.msra.mxu0 %v869
    %1174 = vmatpush.bf16.msra.mxu0 %v859
    %1175 = vmatmul.bf16.gmra.mxu0 %v294
    %v1176 = vpop.f32.mrf.mxu0
    %v1177 = vadd.f32 %v1163, %v1176
    %v1178 = vpop.f32.mrf.mxu0
    %v1179 = vadd.f32 %v1165, %v1178
    %1180 = vdwg.mxu0
    %1181 = vmatpush.bf16.msra.mxu0 %v850
    %1182 = vmatpush.bf16.msra.mxu0 %v840
    %1183 = vmatpush.bf16.msra.mxu0 %v830
    %1184 = vmatpush.bf16.msra.mxu0 %v820
    %1185 = vmatpush.bf16.msra.mxu0 %v810
    %1186 = vmatpush.bf16.msra.mxu0 %v800
    %1187 = vmatpush.bf16.msra.mxu0 %v790
    %1188 = vmatpush.bf16.msra.mxu0 %v780
    %1189 = vmatmul.bf16.gmra.mxu0 %v293
    %v1190 = vpop.f32.mrf.mxu0
    %v1191 = vadd.f32 %v270, %v1190
    %v1192 = vpop.f32.mrf.mxu0
    %v1193 = vadd.f32 %v270, %v1192
    %1194 = vdwg.mxu0
    %1195 = vmatpush.bf16.msra.mxu0 %v930
    %1196 = vmatpush.bf16.msra.mxu0 %v920
    %1197 = vmatpush.bf16.msra.mxu0 %v910
    %1198 = vmatpush.bf16.msra.mxu0 %v900
    %1199 = vmatpush.bf16.msra.mxu0 %v890
    %1200 = vmatpush.bf16.msra.mxu0 %v880
    %1201 = vmatpush.bf16.msra.mxu0 %v870
    %1202 = vmatpush.bf16.msra.mxu0 %v860
    %1203 = vmatmul.bf16.gmra.mxu0 %v294
    %v1204 = vpop.f32.mrf.mxu0
    %v1205 = vadd.f32 %v1191, %v1204
    %v1206 = vpop.f32.mrf.mxu0
    %v1207 = vadd.f32 %v1193, %v1206
    %1208 = vdwg.mxu0
    %1209 = vmatpush.bf16.msra.mxu0 %v851
    %1210 = vmatpush.bf16.msra.mxu0 %v841
    %1211 = vmatpush.bf16.msra.mxu0 %v831
    %1212 = vmatpush.bf16.msra.mxu0 %v821
    %1213 = vmatpush.bf16.msra.mxu0 %v811
    %1214 = vmatpush.bf16.msra.mxu0 %v801
    %1215 = vmatpush.bf16.msra.mxu0 %v791
    %1216 = vmatpush.bf16.msra.mxu0 %v781
    %1217 = vmatmul.bf16.gmra.mxu0 %v293
    %v1218 = vpop.f32.mrf.mxu0
    %v1219 = vadd.f32 %v271, %v1218
    %v1220 = vpop.f32.mrf.mxu0
    %v1221 = vadd.f32 %v271, %v1220
    %1222 = vdwg.mxu0
    %1223 = vmatpush.bf16.msra.mxu0 %v931
    %1224 = vmatpush.bf16.msra.mxu0 %v921
    %1225 = vmatpush.bf16.msra.mxu0 %v911
    %1226 = vmatpush.bf16.msra.mxu0 %v901
    %1227 = vmatpush.bf16.msra.mxu0 %v891
    %1228 = vmatpush.bf16.msra.mxu0 %v881
    %1229 = vmatpush.bf16.msra.mxu0 %v871
    %1230 = vmatpush.bf16.msra.mxu0 %v861
    %1231 = vmatmul.bf16.gmra.mxu0 %v294
    %v1232 = vpop.f32.mrf.mxu0
    %v1233 = vadd.f32 %v1219, %v1232
    %v1234 = vpop.f32.mrf.mxu0
    %v1235 = vadd.f32 %v1221, %v1234
    %1236 = vdwg.mxu0
    %1237 = vmatpush.bf16.msra.mxu0 %v852
    %1238 = vmatpush.bf16.msra.mxu0 %v842
    %1239 = vmatpush.bf16.msra.mxu0 %v832
    %1240 = vmatpush.bf16.msra.mxu0 %v822
    %1241 = vmatpush.bf16.msra.mxu0 %v812
    %1242 = vmatpush.bf16.msra.mxu0 %v802
    %1243 = vmatpush.bf16.msra.mxu0 %v792
    %1244 = vmatpush.bf16.msra.mxu0 %v782
    %1245 = vmatmul.bf16.gmra.mxu0 %v293
    %v1246 = vpop.f32.mrf.mxu0
    %v1247 = vadd.f32 %v272, %v1246
    %v1248 = vpop.f32.mrf.mxu0
    %v1249 = vadd.f32 %v272, %v1248
    %1250 = vdwg.mxu0
    %1251 = vmatpush.bf16.msra.mxu0 %v932
    %1252 = vmatpush.bf16.msra.mxu0 %v922
    %1253 = vmatpush.bf16.msra.mxu0 %v912
    %1254 = vmatpush.bf16.msra.mxu0 %v902
    %1255 = vmatpush.bf16.msra.mxu0 %v892
    %1256 = vmatpush.bf16.msra.mxu0 %v882
    %1257 = vmatpush.bf16.msra.mxu0 %v872
    %1258 = vmatpush.bf16.msra.mxu0 %v862
    %1259 = vmatmul.bf16.gmra.mxu0 %v294
    %v1260 = vpop.f32.mrf.mxu0
    %v1261 = vadd.f32 %v1247, %v1260
    %v1262 = vpop.f32.mrf.mxu0
    %v1263 = vadd.f32 %v1249, %v1262
    %1264 = vdwg.mxu0
    %1265 = vmatpush.bf16.msra.mxu0 %v853
    %1266 = vmatpush.bf16.msra.mxu0 %v843
    %1267 = vmatpush.bf16.msra.mxu0 %v833
    %1268 = vmatpush.bf16.msra.mxu0 %v823
    %1269 = vmatpush.bf16.msra.mxu0 %v813
    %1270 = vmatpush.bf16.msra.mxu0 %v803
    %1271 = vmatpush.bf16.msra.mxu0 %v793
    %1272 = vmatpush.bf16.msra.mxu0 %v783
    %1273 = vmatmul.bf16.gmra.mxu0 %v293
    %v1274 = vpop.f32.mrf.mxu0
    %v1275 = vadd.f32 %v273, %v1274
    %v1276 = vpop.f32.mrf.mxu0
    %v1277 = vadd.f32 %v273, %v1276
    %1278 = vdwg.mxu0
    %1279 = vmatpush.bf16.msra.mxu0 %v933
    %1280 = vmatpush.bf16.msra.mxu0 %v923
    %1281 = vmatpush.bf16.msra.mxu0 %v913
    %1282 = vmatpush.bf16.msra.mxu0 %v903
    %1283 = vmatpush.bf16.msra.mxu0 %v893
    %1284 = vmatpush.bf16.msra.mxu0 %v883
    %1285 = vmatpush.bf16.msra.mxu0 %v873
    %1286 = vmatpush.bf16.msra.mxu0 %v863
    %1287 = vmatmul.bf16.gmra.mxu0 %v294
    %v1288 = vpop.f32.mrf.mxu0
    %v1289 = vadd.f32 %v1275, %v1288
    %v1290 = vpop.f32.mrf.mxu0
    %v1291 = vadd.f32 %v1277, %v1290
    %1292 = vdwg.mxu0
    %1293 = vmatpush.bf16.msra.mxu0 %v854
    %1294 = vmatpush.bf16.msra.mxu0 %v844
    %1295 = vmatpush.bf16.msra.mxu0 %v834
    %1296 = vmatpush.bf16.msra.mxu0 %v824
    %1297 = vmatpush.bf16.msra.mxu0 %v814
    %1298 = vmatpush.bf16.msra.mxu0 %v804
    %1299 = vmatpush.bf16.msra.mxu0 %v794
    %1300 = vmatpush.bf16.msra.mxu0 %v784
    %1301 = vmatmul.bf16.gmra.mxu0 %v293
    %v1302 = vpop.f32.mrf.mxu0
    %v1303 = vadd.f32 %v274, %v1302
    %v1304 = vpop.f32.mrf.mxu0
    %v1305 = vadd.f32 %v274, %v1304
    %1306 = vdwg.mxu0
    %1307 = vmatpush.bf16.msra.mxu0 %v934
    %1308 = vmatpush.bf16.msra.mxu0 %v924
    %1309 = vmatpush.bf16.msra.mxu0 %v914
    %1310 = vmatpush.bf16.msra.mxu0 %v904
    %1311 = vmatpush.bf16.msra.mxu0 %v894
    %1312 = vmatpush.bf16.msra.mxu0 %v884
    %1313 = vmatpush.bf16.msra.mxu0 %v874
    %1314 = vmatpush.bf16.msra.mxu0 %v864
    %1315 = vmatmul.bf16.gmra.mxu0 %v294
    %v1316 = vpop.f32.mrf.mxu0
    %v1317 = vadd.f32 %v1303, %v1316
    %v1318 = vpop.f32.mrf.mxu0
    %v1319 = vadd.f32 %v1305, %v1318
    %1320 = vdwg.mxu0
    %1321 = vmatpush.bf16.msra.mxu0 %v855
    %1322 = vmatpush.bf16.msra.mxu0 %v845
    %1323 = vmatpush.bf16.msra.mxu0 %v835
    %1324 = vmatpush.bf16.msra.mxu0 %v825
    %1325 = vmatpush.bf16.msra.mxu0 %v815
    %1326 = vmatpush.bf16.msra.mxu0 %v805
    %1327 = vmatpush.bf16.msra.mxu0 %v795
    %1328 = vmatpush.bf16.msra.mxu0 %v785
    %1329 = vmatmul.bf16.gmra.mxu0 %v293
    %v1330 = vpop.f32.mrf.mxu0
    %v1331 = vadd.f32 %v275, %v1330
    %v1332 = vpop.f32.mrf.mxu0
    %v1333 = vadd.f32 %v275, %v1332
    %1334 = vdwg.mxu0
    %1335 = vmatpush.bf16.msra.mxu0 %v935
    %1336 = vmatpush.bf16.msra.mxu0 %v925
    %1337 = vmatpush.bf16.msra.mxu0 %v915
    %1338 = vmatpush.bf16.msra.mxu0 %v905
    %1339 = vmatpush.bf16.msra.mxu0 %v895
    %1340 = vmatpush.bf16.msra.mxu0 %v885
    %1341 = vmatpush.bf16.msra.mxu0 %v875
    %1342 = vmatpush.bf16.msra.mxu0 %v865
    %1343 = vmatmul.bf16.gmra.mxu0 %v294
    %v1344 = vpop.f32.mrf.mxu0
    %v1345 = vadd.f32 %v1331, %v1344
    %v1346 = vpop.f32.mrf.mxu0
    %v1347 = vadd.f32 %v1333, %v1346
    %1348 = vdwg.mxu0
    %1349 = vmatpush.bf16.msra.mxu0 %v856
    %1350 = vmatpush.bf16.msra.mxu0 %v846
    %1351 = vmatpush.bf16.msra.mxu0 %v836
    %1352 = vmatpush.bf16.msra.mxu0 %v826
    %1353 = vmatpush.bf16.msra.mxu0 %v816
    %1354 = vmatpush.bf16.msra.mxu0 %v806
    %1355 = vmatpush.bf16.msra.mxu0 %v796
    %1356 = vmatpush.bf16.msra.mxu0 %v786
    %1357 = vmatmul.bf16.gmra.mxu0 %v293
    %v1358 = vpop.f32.mrf.mxu0
    %v1359 = vadd.f32 %v276, %v1358
    %v1360 = vpop.f32.mrf.mxu0
    %v1361 = vadd.f32 %v276, %v1360
    %1362 = vdwg.mxu0
    %1363 = vmatpush.bf16.msra.mxu0 %v936
    %1364 = vmatpush.bf16.msra.mxu0 %v926
    %1365 = vmatpush.bf16.msra.mxu0 %v916
    %1366 = vmatpush.bf16.msra.mxu0 %v906
    %1367 = vmatpush.bf16.msra.mxu0 %v896
    %1368 = vmatpush.bf16.msra.mxu0 %v886
    %1369 = vmatpush.bf16.msra.mxu0 %v876
    %1370 = vmatpush.bf16.msra.mxu0 %v866
    %1371 = vmatmul.bf16.gmra.mxu0 %v294
    %v1372 = vpop.f32.mrf.mxu0
    %v1373 = vadd.f32 %v1359, %v1372
    %v1374 = vpop.f32.mrf.mxu0
    %v1375 = vadd.f32 %v1361, %v1374
    %1376 = vdwg.mxu0
    %v1377 = vmul.f32 %v1121, 0.5
    %v1378 = vmul.f32 %v1149, 0.5
    %v1379 = vmul.f32 %v1177, 0.5
    %v1380 = vmul.f32 %v1205, 0.5
    %v1381 = vmul.f32 %v1233, 0.5
    %v1382 = vmul.f32 %v1261, 0.5
    %v1383 = vmul.f32 %v1289, 0.5
    %v1384 = vmul.f32 %v1317, 0.5
    %v1385 = vmul.f32 %v1345, 0.5
    %v1386 = vmul.f32 %v1373, 0.5
    %v1387 = vmul.f32 %v1123, 0.5
    %v1388 = vmul.f32 %v1151, 0.5
    %v1389 = vmul.f32 %v1179, 0.5
    %v1390 = vmul.f32 %v1207, 0.5
    %v1391 = vmul.f32 %v1235, 0.5
    %v1392 = vmul.f32 %v1263, 0.5
    %v1393 = vmul.f32 %v1291, 0.5
    %v1394 = vmul.f32 %v1319, 0.5
    %v1395 = vmul.f32 %v1347, 0.5
    %v1396 = vmul.f32 %v1375, 0.5
    %v1397 = vmul.f32 %v1121, 0.70710677
    %v1398 = vmul.f32 %v1149, 0.70710677
    %v1399 = vmul.f32 %v1177, 0.70710677
    %v1400 = vmul.f32 %v1205, 0.70710677
    %v1401 = vmul.f32 %v1233, 0.70710677
    %v1402 = vmul.f32 %v1261, 0.70710677
    %v1403 = vmul.f32 %v1289, 0.70710677
    %v1404 = vmul.f32 %v1317, 0.70710677
    %v1405 = vmul.f32 %v1345, 0.70710677
    %v1406 = vmul.f32 %v1373, 0.70710677
    %v1407 = vmul.f32 %v1123, 0.70710677
    %v1408 = vmul.f32 %v1151, 0.70710677
    %v1409 = vmul.f32 %v1179, 0.70710677
    %v1410 = vmul.f32 %v1207, 0.70710677
    %v1411 = vmul.f32 %v1235, 0.70710677
    %v1412 = vmul.f32 %v1263, 0.70710677
    %v1413 = vmul.f32 %v1291, 0.70710677
    %v1414 = vmul.f32 %v1319, 0.70710677
    %v1415 = vmul.f32 %v1347, 0.70710677
    %v1416 = vmul.f32 %v1375, 0.70710677
    %v1417 = vmul.f32 %v1397, %v1397
    %v1418 = vmin.f32 16.0, %v1417
    %v1419 = vmul.f32 %v1418, 2.1237322e-06
    %v1420 = vadd.f32 %v1419, 0.00028619796
    %v1421 = vmul.f32 %v1418, %v1420
    %v1422 = vadd.f32 %v1421, 0.0036580483
    %v1423 = vmul.f32 %v1418, %v1422
    %v1424 = vadd.f32 %v1423, 0.05243302
    %v1425 = vmul.f32 %v1418, %v1424
    %v1426 = vadd.f32 %v1425, 0.18741608
    %v1427 = vmul.f32 %v1418, %v1426
    %v1428 = vadd.f32 %v1427, 1.1283791
    %v1429 = vmul.f32 %v1397, %v1428
    %v1430 = vmul.f32 %v1418, 3.8918573e-05
    %v1431 = vadd.f32 %v1430, 0.001143296
    %v1432 = vmul.f32 %v1418, %v1431
    %v1433 = vadd.f32 %v1432, 0.014752088
    %v1434 = vmul.f32 %v1418, %v1433
    %v1435 = vadd.f32 %v1434, 0.112945676
    %v1436 = vmul.f32 %v1418, %v1435
    %v1437 = vadd.f32 %v1436, 0.4994258
    %v1438 = vmul.f32 %v1418, %v1437
    %v1439 = vadd.f32 %v1438, 1.0
    %v1440 = vrcp.pop %v1439
    %v1441 = vmul.f32 %v1439, %v1440
    %v1442 = vsub.f32 1.0, %v1441
    %v1443 = vmul.f32 %v1440, %v1442
    %v1444 = vadd.f32 %v1440, %v1443
    %vm1445 = vweird.f32 %v1439
    %vm1446 = vweird.f32 %v1440
    %vm1447 = vmor %vm1445, %vm1446
    %v1448 = vsel %vm1447, %v1440, %v1444
    %v1449 = vand.u32 2147483647, %v1439
    %vm1450 = vcmp.eq.f32.partialorder %v1449, 8.507059e+37
    %v1451 = vand.u32 %v1439, 2147483648
    %v1452 = vor.u32 1.1754944e-38, %v1451
    %v1453 = vsel %vm1450, %v1452, %v1448
    %v1454 = vmul.f32 %v1429, %v1453
    %v1455 = vmin.f32 %v1454, 1.0
    %v1456 = vmax.f32 %v1455, -1.0
    %v1457 = vmul.f32 %v1398, %v1398
    %v1458 = vmin.f32 16.0, %v1457
    %v1459 = vmul.f32 %v1458, 2.1237322e-06
    %v1460 = vadd.f32 %v1459, 0.00028619796
    %v1461 = vmul.f32 %v1458, %v1460
    %v1462 = vadd.f32 %v1461, 0.0036580483
    %v1463 = vmul.f32 %v1458, %v1462
    %v1464 = vadd.f32 %v1463, 0.05243302
    %v1465 = vmul.f32 %v1458, %v1464
    %v1466 = vadd.f32 %v1465, 0.18741608
    %v1467 = vmul.f32 %v1458, %v1466
    %v1468 = vadd.f32 %v1467, 1.1283791
    %v1469 = vmul.f32 %v1398, %v1468
    %v1470 = vmul.f32 %v1458, 3.8918573e-05
    %v1471 = vadd.f32 %v1470, 0.001143296
    %v1472 = vmul.f32 %v1458, %v1471
    %v1473 = vadd.f32 %v1472, 0.014752088
    %v1474 = vmul.f32 %v1458, %v1473
    %v1475 = vadd.f32 %v1474, 0.112945676
    %v1476 = vmul.f32 %v1458, %v1475
    %v1477 = vadd.f32 %v1476, 0.4994258
    %v1478 = vmul.f32 %v1458, %v1477
    %v1479 = vadd.f32 %v1478, 1.0
    %v1480 = vrcp.pop %v1479
    %v1481 = vmul.f32 %v1479, %v1480
    %v1482 = vsub.f32 1.0, %v1481
    %v1483 = vmul.f32 %v1480, %v1482
    %v1484 = vadd.f32 %v1480, %v1483
    %vm1485 = vweird.f32 %v1479
    %vm1486 = vweird.f32 %v1480
    %vm1487 = vmor %vm1485, %vm1486
    %v1488 = vsel %vm1487, %v1480, %v1484
    %v1489 = vand.u32 2147483647, %v1479
    %vm1490 = vcmp.eq.f32.partialorder %v1489, 8.507059e+37
    %v1491 = vand.u32 %v1479, 2147483648
    %v1492 = vor.u32 1.1754944e-38, %v1491
    %v1493 = vsel %vm1490, %v1492, %v1488
    %v1494 = vmul.f32 %v1469, %v1493
    %v1495 = vmin.f32 %v1494, 1.0
    %v1496 = vmax.f32 %v1495, -1.0
    %v1497 = vmul.f32 %v1399, %v1399
    %v1498 = vmin.f32 16.0, %v1497
    %v1499 = vmul.f32 %v1498, 2.1237322e-06
    %v1500 = vadd.f32 %v1499, 0.00028619796
    %v1501 = vmul.f32 %v1498, %v1500
    %v1502 = vadd.f32 %v1501, 0.0036580483
    %v1503 = vmul.f32 %v1498, %v1502
    %v1504 = vadd.f32 %v1503, 0.05243302
    %v1505 = vmul.f32 %v1498, %v1504
    %v1506 = vadd.f32 %v1505, 0.18741608
    %v1507 = vmul.f32 %v1498, %v1506
    %v1508 = vadd.f32 %v1507, 1.1283791
    %v1509 = vmul.f32 %v1399, %v1508
    %v1510 = vmul.f32 %v1498, 3.8918573e-05
    %v1511 = vadd.f32 %v1510, 0.001143296
    %v1512 = vmul.f32 %v1498, %v1511
    %v1513 = vadd.f32 %v1512, 0.014752088
    %v1514 = vmul.f32 %v1498, %v1513
    %v1515 = vadd.f32 %v1514, 0.112945676
    %v1516 = vmul.f32 %v1498, %v1515
    %v1517 = vadd.f32 %v1516, 0.4994258
    %v1518 = vmul.f32 %v1498, %v1517
    %v1519 = vadd.f32 %v1518, 1.0
    %v1520 = vrcp.pop %v1519
    %v1521 = vmul.f32 %v1519, %v1520
    %v1522 = vsub.f32 1.0, %v1521
    %v1523 = vmul.f32 %v1520, %v1522
    %v1524 = vadd.f32 %v1520, %v1523
    %vm1525 = vweird.f32 %v1519
    %vm1526 = vweird.f32 %v1520
    %vm1527 = vmor %vm1525, %vm1526
    %v1528 = vsel %vm1527, %v1520, %v1524
    %v1529 = vand.u32 2147483647, %v1519
    %vm1530 = vcmp.eq.f32.partialorder %v1529, 8.507059e+37
    %v1531 = vand.u32 %v1519, 2147483648
    %v1532 = vor.u32 1.1754944e-38, %v1531
    %v1533 = vsel %vm1530, %v1532, %v1528
    %v1534 = vmul.f32 %v1509, %v1533
    %v1535 = vmin.f32 %v1534, 1.0
    %v1536 = vmax.f32 %v1535, -1.0
    %v1537 = vmul.f32 %v1400, %v1400
    %v1538 = vmin.f32 16.0, %v1537
    %v1539 = vmul.f32 %v1538, 2.1237322e-06
    %v1540 = vadd.f32 %v1539, 0.00028619796
    %v1541 = vmul.f32 %v1538, %v1540
    %v1542 = vadd.f32 %v1541, 0.0036580483
    %v1543 = vmul.f32 %v1538, %v1542
    %v1544 = vadd.f32 %v1543, 0.05243302
    %v1545 = vmul.f32 %v1538, %v1544
    %v1546 = vadd.f32 %v1545, 0.18741608
    %v1547 = vmul.f32 %v1538, %v1546
    %v1548 = vadd.f32 %v1547, 1.1283791
    %v1549 = vmul.f32 %v1400, %v1548
    %v1550 = vmul.f32 %v1538, 3.8918573e-05
    %v1551 = vadd.f32 %v1550, 0.001143296
    %v1552 = vmul.f32 %v1538, %v1551
    %v1553 = vadd.f32 %v1552, 0.014752088
    %v1554 = vmul.f32 %v1538, %v1553
    %v1555 = vadd.f32 %v1554, 0.112945676
    %v1556 = vmul.f32 %v1538, %v1555
    %v1557 = vadd.f32 %v1556, 0.4994258
    %v1558 = vmul.f32 %v1538, %v1557
    %v1559 = vadd.f32 %v1558, 1.0
    %v1560 = vrcp.pop %v1559
    %v1561 = vmul.f32 %v1559, %v1560
    %v1562 = vsub.f32 1.0, %v1561
    %v1563 = vmul.f32 %v1560, %v1562
    %v1564 = vadd.f32 %v1560, %v1563
    %vm1565 = vweird.f32 %v1559
    %vm1566 = vweird.f32 %v1560
    %vm1567 = vmor %vm1565, %vm1566
    %v1568 = vsel %vm1567, %v1560, %v1564
    %v1569 = vand.u32 2147483647, %v1559
    %vm1570 = vcmp.eq.f32.partialorder %v1569, 8.507059e+37
    %v1571 = vand.u32 %v1559, 2147483648
    %v1572 = vor.u32 1.1754944e-38, %v1571
    %v1573 = vsel %vm1570, %v1572, %v1568
    %v1574 = vmul.f32 %v1549, %v1573
    %v1575 = vmin.f32 %v1574, 1.0
    %v1576 = vmax.f32 %v1575, -1.0
    %v1577 = vmul.f32 %v1401, %v1401
    %v1578 = vmin.f32 16.0, %v1577
    %v1579 = vmul.f32 %v1578, 2.1237322e-06
    %v1580 = vadd.f32 %v1579, 0.00028619796
    %v1581 = vmul.f32 %v1578, %v1580
    %v1582 = vadd.f32 %v1581, 0.0036580483
    %v1583 = vmul.f32 %v1578, %v1582
    %v1584 = vadd.f32 %v1583, 0.05243302
    %v1585 = vmul.f32 %v1578, %v1584
    %v1586 = vadd.f32 %v1585, 0.18741608
    %v1587 = vmul.f32 %v1578, %v1586
    %v1588 = vadd.f32 %v1587, 1.1283791
    %v1589 = vmul.f32 %v1401, %v1588
    %v1590 = vmul.f32 %v1578, 3.8918573e-05
    %v1591 = vadd.f32 %v1590, 0.001143296
    %v1592 = vmul.f32 %v1578, %v1591
    %v1593 = vadd.f32 %v1592, 0.014752088
    %v1594 = vmul.f32 %v1578, %v1593
    %v1595 = vadd.f32 %v1594, 0.112945676
    %v1596 = vmul.f32 %v1578, %v1595
    %v1597 = vadd.f32 %v1596, 0.4994258
    %v1598 = vmul.f32 %v1578, %v1597
    %v1599 = vadd.f32 %v1598, 1.0
    %v1600 = vrcp.pop %v1599
    %v1601 = vmul.f32 %v1599, %v1600
    %v1602 = vsub.f32 1.0, %v1601
    %v1603 = vmul.f32 %v1600, %v1602
    %v1604 = vadd.f32 %v1600, %v1603
    %vm1605 = vweird.f32 %v1599
    %vm1606 = vweird.f32 %v1600
    %vm1607 = vmor %vm1605, %vm1606
    %v1608 = vsel %vm1607, %v1600, %v1604
    %v1609 = vand.u32 2147483647, %v1599
    %vm1610 = vcmp.eq.f32.partialorder %v1609, 8.507059e+37
    %v1611 = vand.u32 %v1599, 2147483648
    %v1612 = vor.u32 1.1754944e-38, %v1611
    %v1613 = vsel %vm1610, %v1612, %v1608
    %v1614 = vmul.f32 %v1589, %v1613
    %v1615 = vmin.f32 %v1614, 1.0
    %v1616 = vmax.f32 %v1615, -1.0
    %v1617 = vmul.f32 %v1402, %v1402
    %v1618 = vmin.f32 16.0, %v1617
    %v1619 = vmul.f32 %v1618, 2.1237322e-06
    %v1620 = vadd.f32 %v1619, 0.00028619796
    %v1621 = vmul.f32 %v1618, %v1620
    %v1622 = vadd.f32 %v1621, 0.0036580483
    %v1623 = vmul.f32 %v1618, %v1622
    %v1624 = vadd.f32 %v1623, 0.05243302
    %v1625 = vmul.f32 %v1618, %v1624
    %v1626 = vadd.f32 %v1625, 0.18741608
    %v1627 = vmul.f32 %v1618, %v1626
    %v1628 = vadd.f32 %v1627, 1.1283791
    %v1629 = vmul.f32 %v1402, %v1628
    %v1630 = vmul.f32 %v1618, 3.8918573e-05
    %v1631 = vadd.f32 %v1630, 0.001143296
    %v1632 = vmul.f32 %v1618, %v1631
    %v1633 = vadd.f32 %v1632, 0.014752088
    %v1634 = vmul.f32 %v1618, %v1633
    %v1635 = vadd.f32 %v1634, 0.112945676
    %v1636 = vmul.f32 %v1618, %v1635
    %v1637 = vadd.f32 %v1636, 0.4994258
    %v1638 = vmul.f32 %v1618, %v1637
    %v1639 = vadd.f32 %v1638, 1.0
    %v1640 = vrcp.pop %v1639
    %v1641 = vmul.f32 %v1639, %v1640
    %v1642 = vsub.f32 1.0, %v1641
    %v1643 = vmul.f32 %v1640, %v1642
    %v1644 = vadd.f32 %v1640, %v1643
    %vm1645 = vweird.f32 %v1639
    %vm1646 = vweird.f32 %v1640
    %vm1647 = vmor %vm1645, %vm1646
    %v1648 = vsel %vm1647, %v1640, %v1644
    %v1649 = vand.u32 2147483647, %v1639
    %vm1650 = vcmp.eq.f32.partialorder %v1649, 8.507059e+37
    %v1651 = vand.u32 %v1639, 2147483648
    %v1652 = vor.u32 1.1754944e-38, %v1651
    %v1653 = vsel %vm1650, %v1652, %v1648
    %v1654 = vmul.f32 %v1629, %v1653
    %v1655 = vmin.f32 %v1654, 1.0
    %v1656 = vmax.f32 %v1655, -1.0
    %v1657 = vmul.f32 %v1403, %v1403
    %v1658 = vmin.f32 16.0, %v1657
    %v1659 = vmul.f32 %v1658, 2.1237322e-06
    %v1660 = vadd.f32 %v1659, 0.00028619796
    %v1661 = vmul.f32 %v1658, %v1660
    %v1662 = vadd.f32 %v1661, 0.0036580483
    %v1663 = vmul.f32 %v1658, %v1662
    %v1664 = vadd.f32 %v1663, 0.05243302
    %v1665 = vmul.f32 %v1658, %v1664
    %v1666 = vadd.f32 %v1665, 0.18741608
    %v1667 = vmul.f32 %v1658, %v1666
    %v1668 = vadd.f32 %v1667, 1.1283791
    %v1669 = vmul.f32 %v1403, %v1668
    %v1670 = vmul.f32 %v1658, 3.8918573e-05
    %v1671 = vadd.f32 %v1670, 0.001143296
    %v1672 = vmul.f32 %v1658, %v1671
    %v1673 = vadd.f32 %v1672, 0.014752088
    %v1674 = vmul.f32 %v1658, %v1673
    %v1675 = vadd.f32 %v1674, 0.112945676
    %v1676 = vmul.f32 %v1658, %v1675
    %v1677 = vadd.f32 %v1676, 0.4994258
    %v1678 = vmul.f32 %v1658, %v1677
    %v1679 = vadd.f32 %v1678, 1.0
    %v1680 = vrcp.pop %v1679
    %v1681 = vmul.f32 %v1679, %v1680
    %v1682 = vsub.f32 1.0, %v1681
    %v1683 = vmul.f32 %v1680, %v1682
    %v1684 = vadd.f32 %v1680, %v1683
    %vm1685 = vweird.f32 %v1679
    %vm1686 = vweird.f32 %v1680
    %vm1687 = vmor %vm1685, %vm1686
    %v1688 = vsel %vm1687, %v1680, %v1684
    %v1689 = vand.u32 2147483647, %v1679
    %vm1690 = vcmp.eq.f32.partialorder %v1689, 8.507059e+37
    %v1691 = vand.u32 %v1679, 2147483648
    %v1692 = vor.u32 1.1754944e-38, %v1691
    %v1693 = vsel %vm1690, %v1692, %v1688
    %v1694 = vmul.f32 %v1669, %v1693
    %v1695 = vmin.f32 %v1694, 1.0
    %v1696 = vmax.f32 %v1695, -1.0
    %v1697 = vmul.f32 %v1404, %v1404
    %v1698 = vmin.f32 16.0, %v1697
    %v1699 = vmul.f32 %v1698, 2.1237322e-06
    %v1700 = vadd.f32 %v1699, 0.00028619796
    %v1701 = vmul.f32 %v1698, %v1700
    %v1702 = vadd.f32 %v1701, 0.0036580483
    %v1703 = vmul.f32 %v1698, %v1702
    %v1704 = vadd.f32 %v1703, 0.05243302
    %v1705 = vmul.f32 %v1698, %v1704
    %v1706 = vadd.f32 %v1705, 0.18741608
    %v1707 = vmul.f32 %v1698, %v1706
    %v1708 = vadd.f32 %v1707, 1.1283791
    %v1709 = vmul.f32 %v1404, %v1708
    %v1710 = vmul.f32 %v1698, 3.8918573e-05
    %v1711 = vadd.f32 %v1710, 0.001143296
    %v1712 = vmul.f32 %v1698, %v1711
    %v1713 = vadd.f32 %v1712, 0.014752088
    %v1714 = vmul.f32 %v1698, %v1713
    %v1715 = vadd.f32 %v1714, 0.112945676
    %v1716 = vmul.f32 %v1698, %v1715
    %v1717 = vadd.f32 %v1716, 0.4994258
    %v1718 = vmul.f32 %v1698, %v1717
    %v1719 = vadd.f32 %v1718, 1.0
    %v1720 = vrcp.pop %v1719
    %v1721 = vmul.f32 %v1719, %v1720
    %v1722 = vsub.f32 1.0, %v1721
    %v1723 = vmul.f32 %v1720, %v1722
    %v1724 = vadd.f32 %v1720, %v1723
    %vm1725 = vweird.f32 %v1719
    %vm1726 = vweird.f32 %v1720
    %vm1727 = vmor %vm1725, %vm1726
    %v1728 = vsel %vm1727, %v1720, %v1724
    %v1729 = vand.u32 2147483647, %v1719
    %vm1730 = vcmp.eq.f32.partialorder %v1729, 8.507059e+37
    %v1731 = vand.u32 %v1719, 2147483648
    %v1732 = vor.u32 1.1754944e-38, %v1731
    %v1733 = vsel %vm1730, %v1732, %v1728
    %v1734 = vmul.f32 %v1709, %v1733
    %v1735 = vmin.f32 %v1734, 1.0
    %v1736 = vmax.f32 %v1735, -1.0
    %v1737 = vmul.f32 %v1405, %v1405
    %v1738 = vmin.f32 16.0, %v1737
    %v1739 = vmul.f32 %v1738, 2.1237322e-06
    %v1740 = vadd.f32 %v1739, 0.00028619796
    %v1741 = vmul.f32 %v1738, %v1740
    %v1742 = vadd.f32 %v1741, 0.0036580483
    %v1743 = vmul.f32 %v1738, %v1742
    %v1744 = vadd.f32 %v1743, 0.05243302
    %v1745 = vmul.f32 %v1738, %v1744
    %v1746 = vadd.f32 %v1745, 0.18741608
    %v1747 = vmul.f32 %v1738, %v1746
    %v1748 = vadd.f32 %v1747, 1.1283791
    %v1749 = vmul.f32 %v1405, %v1748
    %v1750 = vmul.f32 %v1738, 3.8918573e-05
    %v1751 = vadd.f32 %v1750, 0.001143296
    %v1752 = vmul.f32 %v1738, %v1751
    %v1753 = vadd.f32 %v1752, 0.014752088
    %v1754 = vmul.f32 %v1738, %v1753
    %v1755 = vadd.f32 %v1754, 0.112945676
    %v1756 = vmul.f32 %v1738, %v1755
    %v1757 = vadd.f32 %v1756, 0.4994258
    %v1758 = vmul.f32 %v1738, %v1757
    %v1759 = vadd.f32 %v1758, 1.0
    %v1760 = vrcp.pop %v1759
    %v1761 = vmul.f32 %v1759, %v1760
    %v1762 = vsub.f32 1.0, %v1761
    %v1763 = vmul.f32 %v1760, %v1762
    %v1764 = vadd.f32 %v1760, %v1763
    %vm1765 = vweird.f32 %v1759
    %vm1766 = vweird.f32 %v1760
    %vm1767 = vmor %vm1765, %vm1766
    %v1768 = vsel %vm1767, %v1760, %v1764
    %v1769 = vand.u32 2147483647, %v1759
    %vm1770 = vcmp.eq.f32.partialorder %v1769, 8.507059e+37
    %v1771 = vand.u32 %v1759, 2147483648
    %v1772 = vor.u32 1.1754944e-38, %v1771
    %v1773 = vsel %vm1770, %v1772, %v1768
    %v1774 = vmul.f32 %v1749, %v1773
    %v1775 = vmin.f32 %v1774, 1.0
    %v1776 = vmax.f32 %v1775, -1.0
    %v1777 = vmul.f32 %v1406, %v1406
    %v1778 = vmin.f32 16.0, %v1777
    %v1779 = vmul.f32 %v1778, 2.1237322e-06
    %v1780 = vadd.f32 %v1779, 0.00028619796
    %v1781 = vmul.f32 %v1778, %v1780
    %v1782 = vadd.f32 %v1781, 0.0036580483
    %v1783 = vmul.f32 %v1778, %v1782
    %v1784 = vadd.f32 %v1783, 0.05243302
    %v1785 = vmul.f32 %v1778, %v1784
    %v1786 = vadd.f32 %v1785, 0.18741608
    %v1787 = vmul.f32 %v1778, %v1786
    %v1788 = vadd.f32 %v1787, 1.1283791
    %v1789 = vmul.f32 %v1406, %v1788
    %v1790 = vmul.f32 %v1778, 3.8918573e-05
    %v1791 = vadd.f32 %v1790, 0.001143296
    %v1792 = vmul.f32 %v1778, %v1791
    %v1793 = vadd.f32 %v1792, 0.014752088
    %v1794 = vmul.f32 %v1778, %v1793
    %v1795 = vadd.f32 %v1794, 0.112945676
    %v1796 = vmul.f32 %v1778, %v1795
    %v1797 = vadd.f32 %v1796, 0.4994258
    %v1798 = vmul.f32 %v1778, %v1797
    %v1799 = vadd.f32 %v1798, 1.0
    %v1800 = vrcp.pop %v1799
    %v1801 = vmul.f32 %v1799, %v1800
    %v1802 = vsub.f32 1.0, %v1801
    %v1803 = vmul.f32 %v1800, %v1802
    %v1804 = vadd.f32 %v1800, %v1803
    %vm1805 = vweird.f32 %v1799
    %vm1806 = vweird.f32 %v1800
    %vm1807 = vmor %vm1805, %vm1806
    %v1808 = vsel %vm1807, %v1800, %v1804
    %v1809 = vand.u32 2147483647, %v1799
    %vm1810 = vcmp.eq.f32.partialorder %v1809, 8.507059e+37
    %v1811 = vand.u32 %v1799, 2147483648
    %v1812 = vor.u32 1.1754944e-38, %v1811
    %v1813 = vsel %vm1810, %v1812, %v1808
    %v1814 = vmul.f32 %v1789, %v1813
    %v1815 = vmin.f32 %v1814, 1.0
    %v1816 = vmax.f32 %v1815, -1.0
    %v1817 = vmul.f32 %v1407, %v1407
    %v1818 = vmin.f32 16.0, %v1817
    %v1819 = vmul.f32 %v1818, 2.1237322e-06
    %v1820 = vadd.f32 %v1819, 0.00028619796
    %v1821 = vmul.f32 %v1818, %v1820
    %v1822 = vadd.f32 %v1821, 0.0036580483
    %v1823 = vmul.f32 %v1818, %v1822
    %v1824 = vadd.f32 %v1823, 0.05243302
    %v1825 = vmul.f32 %v1818, %v1824
    %v1826 = vadd.f32 %v1825, 0.18741608
    %v1827 = vmul.f32 %v1818, %v1826
    %v1828 = vadd.f32 %v1827, 1.1283791
    %v1829 = vmul.f32 %v1407, %v1828
    %v1830 = vmul.f32 %v1818, 3.8918573e-05
    %v1831 = vadd.f32 %v1830, 0.001143296
    %v1832 = vmul.f32 %v1818, %v1831
    %v1833 = vadd.f32 %v1832, 0.014752088
    %v1834 = vmul.f32 %v1818, %v1833
    %v1835 = vadd.f32 %v1834, 0.112945676
    %v1836 = vmul.f32 %v1818, %v1835
    %v1837 = vadd.f32 %v1836, 0.4994258
    %v1838 = vmul.f32 %v1818, %v1837
    %v1839 = vadd.f32 %v1838, 1.0
    %v1840 = vrcp.pop %v1839
    %v1841 = vmul.f32 %v1839, %v1840
    %v1842 = vsub.f32 1.0, %v1841
    %v1843 = vmul.f32 %v1840, %v1842
    %v1844 = vadd.f32 %v1840, %v1843
    %vm1845 = vweird.f32 %v1839
    %vm1846 = vweird.f32 %v1840
    %vm1847 = vmor %vm1845, %vm1846
    %v1848 = vsel %vm1847, %v1840, %v1844
    %v1849 = vand.u32 2147483647, %v1839
    %vm1850 = vcmp.eq.f32.partialorder %v1849, 8.507059e+37
    %v1851 = vand.u32 %v1839, 2147483648
    %v1852 = vor.u32 1.1754944e-38, %v1851
    %v1853 = vsel %vm1850, %v1852, %v1848
    %v1854 = vmul.f32 %v1829, %v1853
    %v1855 = vmin.f32 %v1854, 1.0
    %v1856 = vmax.f32 %v1855, -1.0
    %v1857 = vmul.f32 %v1408, %v1408
    %v1858 = vmin.f32 16.0, %v1857
    %v1859 = vmul.f32 %v1858, 2.1237322e-06
    %v1860 = vadd.f32 %v1859, 0.00028619796
    %v1861 = vmul.f32 %v1858, %v1860
    %v1862 = vadd.f32 %v1861, 0.0036580483
    %v1863 = vmul.f32 %v1858, %v1862
    %v1864 = vadd.f32 %v1863, 0.05243302
    %v1865 = vmul.f32 %v1858, %v1864
    %v1866 = vadd.f32 %v1865, 0.18741608
    %v1867 = vmul.f32 %v1858, %v1866
    %v1868 = vadd.f32 %v1867, 1.1283791
    %v1869 = vmul.f32 %v1408, %v1868
    %v1870 = vmul.f32 %v1858, 3.8918573e-05
    %v1871 = vadd.f32 %v1870, 0.001143296
    %v1872 = vmul.f32 %v1858, %v1871
    %v1873 = vadd.f32 %v1872, 0.014752088
    %v1874 = vmul.f32 %v1858, %v1873
    %v1875 = vadd.f32 %v1874, 0.112945676
    %v1876 = vmul.f32 %v1858, %v1875
    %v1877 = vadd.f32 %v1876, 0.4994258
    %v1878 = vmul.f32 %v1858, %v1877
    %v1879 = vadd.f32 %v1878, 1.0
    %v1880 = vrcp.pop %v1879
    %v1881 = vmul.f32 %v1879, %v1880
    %v1882 = vsub.f32 1.0, %v1881
    %v1883 = vmul.f32 %v1880, %v1882
    %v1884 = vadd.f32 %v1880, %v1883
    %vm1885 = vweird.f32 %v1879
    %vm1886 = vweird.f32 %v1880
    %vm1887 = vmor %vm1885, %vm1886
    %v1888 = vsel %vm1887, %v1880, %v1884
    %v1889 = vand.u32 2147483647, %v1879
    %vm1890 = vcmp.eq.f32.partialorder %v1889, 8.507059e+37
    %v1891 = vand.u32 %v1879, 2147483648
    %v1892 = vor.u32 1.1754944e-38, %v1891
    %v1893 = vsel %vm1890, %v1892, %v1888
    %v1894 = vmul.f32 %v1869, %v1893
    %v1895 = vmin.f32 %v1894, 1.0
    %v1896 = vmax.f32 %v1895, -1.0
    %v1897 = vmul.f32 %v1409, %v1409
    %v1898 = vmin.f32 16.0, %v1897
    %v1899 = vmul.f32 %v1898, 2.1237322e-06
    %v1900 = vadd.f32 %v1899, 0.00028619796
    %v1901 = vmul.f32 %v1898, %v1900
    %v1902 = vadd.f32 %v1901, 0.0036580483
    %v1903 = vmul.f32 %v1898, %v1902
    %v1904 = vadd.f32 %v1903, 0.05243302
    %v1905 = vmul.f32 %v1898, %v1904
    %v1906 = vadd.f32 %v1905, 0.18741608
    %v1907 = vmul.f32 %v1898, %v1906
    %v1908 = vadd.f32 %v1907, 1.1283791
    %v1909 = vmul.f32 %v1409, %v1908
    %v1910 = vmul.f32 %v1898, 3.8918573e-05
    %v1911 = vadd.f32 %v1910, 0.001143296
    %v1912 = vmul.f32 %v1898, %v1911
    %v1913 = vadd.f32 %v1912, 0.014752088
    %v1914 = vmul.f32 %v1898, %v1913
    %v1915 = vadd.f32 %v1914, 0.112945676
    %v1916 = vmul.f32 %v1898, %v1915
    %v1917 = vadd.f32 %v1916, 0.4994258
    %v1918 = vmul.f32 %v1898, %v1917
    %v1919 = vadd.f32 %v1918, 1.0
    %v1920 = vrcp.pop %v1919
    %v1921 = vmul.f32 %v1919, %v1920
    %v1922 = vsub.f32 1.0, %v1921
    %v1923 = vmul.f32 %v1920, %v1922
    %v1924 = vadd.f32 %v1920, %v1923
    %vm1925 = vweird.f32 %v1919
    %vm1926 = vweird.f32 %v1920
    %vm1927 = vmor %vm1925, %vm1926
    %v1928 = vsel %vm1927, %v1920, %v1924
    %v1929 = vand.u32 2147483647, %v1919
    %vm1930 = vcmp.eq.f32.partialorder %v1929, 8.507059e+37
    %v1931 = vand.u32 %v1919, 2147483648
    %v1932 = vor.u32 1.1754944e-38, %v1931
    %v1933 = vsel %vm1930, %v1932, %v1928
    %v1934 = vmul.f32 %v1909, %v1933
    %v1935 = vmin.f32 %v1934, 1.0
    %v1936 = vmax.f32 %v1935, -1.0
    %v1937 = vmul.f32 %v1410, %v1410
    %v1938 = vmin.f32 16.0, %v1937
    %v1939 = vmul.f32 %v1938, 2.1237322e-06
    %v1940 = vadd.f32 %v1939, 0.00028619796
    %v1941 = vmul.f32 %v1938, %v1940
    %v1942 = vadd.f32 %v1941, 0.0036580483
    %v1943 = vmul.f32 %v1938, %v1942
    %v1944 = vadd.f32 %v1943, 0.05243302
    %v1945 = vmul.f32 %v1938, %v1944
    %v1946 = vadd.f32 %v1945, 0.18741608
    %v1947 = vmul.f32 %v1938, %v1946
    %v1948 = vadd.f32 %v1947, 1.1283791
    %v1949 = vmul.f32 %v1410, %v1948
    %v1950 = vmul.f32 %v1938, 3.8918573e-05
    %v1951 = vadd.f32 %v1950, 0.001143296
    %v1952 = vmul.f32 %v1938, %v1951
    %v1953 = vadd.f32 %v1952, 0.014752088
    %v1954 = vmul.f32 %v1938, %v1953
    %v1955 = vadd.f32 %v1954, 0.112945676
    %v1956 = vmul.f32 %v1938, %v1955
    %v1957 = vadd.f32 %v1956, 0.4994258
    %v1958 = vmul.f32 %v1938, %v1957
    %v1959 = vadd.f32 %v1958, 1.0
    %v1960 = vrcp.pop %v1959
    %v1961 = vmul.f32 %v1959, %v1960
    %v1962 = vsub.f32 1.0, %v1961
    %v1963 = vmul.f32 %v1960, %v1962
    %v1964 = vadd.f32 %v1960, %v1963
    %vm1965 = vweird.f32 %v1959
    %vm1966 = vweird.f32 %v1960
    %vm1967 = vmor %vm1965, %vm1966
    %v1968 = vsel %vm1967, %v1960, %v1964
    %v1969 = vand.u32 2147483647, %v1959
    %vm1970 = vcmp.eq.f32.partialorder %v1969, 8.507059e+37
    %v1971 = vand.u32 %v1959, 2147483648
    %v1972 = vor.u32 1.1754944e-38, %v1971
    %v1973 = vsel %vm1970, %v1972, %v1968
    %v1974 = vmul.f32 %v1949, %v1973
    %v1975 = vmin.f32 %v1974, 1.0
    %v1976 = vmax.f32 %v1975, -1.0
    %v1977 = vmul.f32 %v1411, %v1411
    %v1978 = vmin.f32 16.0, %v1977
    %v1979 = vmul.f32 %v1978, 2.1237322e-06
    %v1980 = vadd.f32 %v1979, 0.00028619796
    %v1981 = vmul.f32 %v1978, %v1980
    %v1982 = vadd.f32 %v1981, 0.0036580483
    %v1983 = vmul.f32 %v1978, %v1982
    %v1984 = vadd.f32 %v1983, 0.05243302
    %v1985 = vmul.f32 %v1978, %v1984
    %v1986 = vadd.f32 %v1985, 0.18741608
    %v1987 = vmul.f32 %v1978, %v1986
    %v1988 = vadd.f32 %v1987, 1.1283791
    %v1989 = vmul.f32 %v1411, %v1988
    %v1990 = vmul.f32 %v1978, 3.8918573e-05
    %v1991 = vadd.f32 %v1990, 0.001143296
    %v1992 = vmul.f32 %v1978, %v1991
    %v1993 = vadd.f32 %v1992, 0.014752088
    %v1994 = vmul.f32 %v1978, %v1993
    %v1995 = vadd.f32 %v1994, 0.112945676
    %v1996 = vmul.f32 %v1978, %v1995
    %v1997 = vadd.f32 %v1996, 0.4994258
    %v1998 = vmul.f32 %v1978, %v1997
    %v1999 = vadd.f32 %v1998, 1.0
    %v2000 = vrcp.pop %v1999
    %v2001 = vmul.f32 %v1999, %v2000
    %v2002 = vsub.f32 1.0, %v2001
    %v2003 = vmul.f32 %v2000, %v2002
    %v2004 = vadd.f32 %v2000, %v2003
    %vm2005 = vweird.f32 %v1999
    %vm2006 = vweird.f32 %v2000
    %vm2007 = vmor %vm2005, %vm2006
    %v2008 = vsel %vm2007, %v2000, %v2004
    %v2009 = vand.u32 2147483647, %v1999
    %vm2010 = vcmp.eq.f32.partialorder %v2009, 8.507059e+37
    %v2011 = vand.u32 %v1999, 2147483648
    %v2012 = vor.u32 1.1754944e-38, %v2011
    %v2013 = vsel %vm2010, %v2012, %v2008
    %v2014 = vmul.f32 %v1989, %v2013
    %v2015 = vmin.f32 %v2014, 1.0
    %v2016 = vmax.f32 %v2015, -1.0
    %v2017 = vmul.f32 %v1412, %v1412
    %v2018 = vmin.f32 16.0, %v2017
    %v2019 = vmul.f32 %v2018, 2.1237322e-06
    %v2020 = vadd.f32 %v2019, 0.00028619796
    %v2021 = vmul.f32 %v2018, %v2020
    %v2022 = vadd.f32 %v2021, 0.0036580483
    %v2023 = vmul.f32 %v2018, %v2022
    %v2024 = vadd.f32 %v2023, 0.05243302
    %v2025 = vmul.f32 %v2018, %v2024
    %v2026 = vadd.f32 %v2025, 0.18741608
    %v2027 = vmul.f32 %v2018, %v2026
    %v2028 = vadd.f32 %v2027, 1.1283791
    %v2029 = vmul.f32 %v1412, %v2028
    %v2030 = vmul.f32 %v2018, 3.8918573e-05
    %v2031 = vadd.f32 %v2030, 0.001143296
    %v2032 = vmul.f32 %v2018, %v2031
    %v2033 = vadd.f32 %v2032, 0.014752088
    %v2034 = vmul.f32 %v2018, %v2033
    %v2035 = vadd.f32 %v2034, 0.112945676
    %v2036 = vmul.f32 %v2018, %v2035
    %v2037 = vadd.f32 %v2036, 0.4994258
    %v2038 = vmul.f32 %v2018, %v2037
    %v2039 = vadd.f32 %v2038, 1.0
    %v2040 = vrcp.pop %v2039
    %v2041 = vmul.f32 %v2039, %v2040
    %v2042 = vsub.f32 1.0, %v2041
    %v2043 = vmul.f32 %v2040, %v2042
    %v2044 = vadd.f32 %v2040, %v2043
    %vm2045 = vweird.f32 %v2039
    %vm2046 = vweird.f32 %v2040
    %vm2047 = vmor %vm2045, %vm2046
    %v2048 = vsel %vm2047, %v2040, %v2044
    %v2049 = vand.u32 2147483647, %v2039
    %vm2050 = vcmp.eq.f32.partialorder %v2049, 8.507059e+37
    %v2051 = vand.u32 %v2039, 2147483648
    %v2052 = vor.u32 1.1754944e-38, %v2051
    %v2053 = vsel %vm2050, %v2052, %v2048
    %v2054 = vmul.f32 %v2029, %v2053
    %v2055 = vmin.f32 %v2054, 1.0
    %v2056 = vmax.f32 %v2055, -1.0
    %v2057 = vmul.f32 %v1413, %v1413
    %v2058 = vmin.f32 16.0, %v2057
    %v2059 = vmul.f32 %v2058, 2.1237322e-06
    %v2060 = vadd.f32 %v2059, 0.00028619796
    %v2061 = vmul.f32 %v2058, %v2060
    %v2062 = vadd.f32 %v2061, 0.0036580483
    %v2063 = vmul.f32 %v2058, %v2062
    %v2064 = vadd.f32 %v2063, 0.05243302
    %v2065 = vmul.f32 %v2058, %v2064
    %v2066 = vadd.f32 %v2065, 0.18741608
    %v2067 = vmul.f32 %v2058, %v2066
    %v2068 = vadd.f32 %v2067, 1.1283791
    %v2069 = vmul.f32 %v1413, %v2068
    %v2070 = vmul.f32 %v2058, 3.8918573e-05
    %v2071 = vadd.f32 %v2070, 0.001143296
    %v2072 = vmul.f32 %v2058, %v2071
    %v2073 = vadd.f32 %v2072, 0.014752088
    %v2074 = vmul.f32 %v2058, %v2073
    %v2075 = vadd.f32 %v2074, 0.112945676
    %v2076 = vmul.f32 %v2058, %v2075
    %v2077 = vadd.f32 %v2076, 0.4994258
    %v2078 = vmul.f32 %v2058, %v2077
    %v2079 = vadd.f32 %v2078, 1.0
    %v2080 = vrcp.pop %v2079
    %v2081 = vmul.f32 %v2079, %v2080
    %v2082 = vsub.f32 1.0, %v2081
    %v2083 = vmul.f32 %v2080, %v2082
    %v2084 = vadd.f32 %v2080, %v2083
    %vm2085 = vweird.f32 %v2079
    %vm2086 = vweird.f32 %v2080
    %vm2087 = vmor %vm2085, %vm2086
    %v2088 = vsel %vm2087, %v2080, %v2084
    %v2089 = vand.u32 2147483647, %v2079
    %vm2090 = vcmp.eq.f32.partialorder %v2089, 8.507059e+37
    %v2091 = vand.u32 %v2079, 2147483648
    %v2092 = vor.u32 1.1754944e-38, %v2091
    %v2093 = vsel %vm2090, %v2092, %v2088
    %v2094 = vmul.f32 %v2069, %v2093
    %v2095 = vmin.f32 %v2094, 1.0
    %v2096 = vmax.f32 %v2095, -1.0
    %v2097 = vmul.f32 %v1414, %v1414
    %v2098 = vmin.f32 16.0, %v2097
    %v2099 = vmul.f32 %v2098, 2.1237322e-06
    %v2100 = vadd.f32 %v2099, 0.00028619796
    %v2101 = vmul.f32 %v2098, %v2100
    %v2102 = vadd.f32 %v2101, 0.0036580483
    %v2103 = vmul.f32 %v2098, %v2102
    %v2104 = vadd.f32 %v2103, 0.05243302
    %v2105 = vmul.f32 %v2098, %v2104
    %v2106 = vadd.f32 %v2105, 0.18741608
    %v2107 = vmul.f32 %v2098, %v2106
    %v2108 = vadd.f32 %v2107, 1.1283791
    %v2109 = vmul.f32 %v1414, %v2108
    %v2110 = vmul.f32 %v2098, 3.8918573e-05
    %v2111 = vadd.f32 %v2110, 0.001143296
    %v2112 = vmul.f32 %v2098, %v2111
    %v2113 = vadd.f32 %v2112, 0.014752088
    %v2114 = vmul.f32 %v2098, %v2113
    %v2115 = vadd.f32 %v2114, 0.112945676
    %v2116 = vmul.f32 %v2098, %v2115
    %v2117 = vadd.f32 %v2116, 0.4994258
    %v2118 = vmul.f32 %v2098, %v2117
    %v2119 = vadd.f32 %v2118, 1.0
    %v2120 = vrcp.pop %v2119
    %v2121 = vmul.f32 %v2119, %v2120
    %v2122 = vsub.f32 1.0, %v2121
    %v2123 = vmul.f32 %v2120, %v2122
    %v2124 = vadd.f32 %v2120, %v2123
    %vm2125 = vweird.f32 %v2119
    %vm2126 = vweird.f32 %v2120
    %vm2127 = vmor %vm2125, %vm2126
    %v2128 = vsel %vm2127, %v2120, %v2124
    %v2129 = vand.u32 2147483647, %v2119
    %vm2130 = vcmp.eq.f32.partialorder %v2129, 8.507059e+37
    %v2131 = vand.u32 %v2119, 2147483648
    %v2132 = vor.u32 1.1754944e-38, %v2131
    %v2133 = vsel %vm2130, %v2132, %v2128
    %v2134 = vmul.f32 %v2109, %v2133
    %v2135 = vmin.f32 %v2134, 1.0
    %v2136 = vmax.f32 %v2135, -1.0
    %v2137 = vmul.f32 %v1415, %v1415
    %v2138 = vmin.f32 16.0, %v2137
    %v2139 = vmul.f32 %v2138, 2.1237322e-06
    %v2140 = vadd.f32 %v2139, 0.00028619796
    %v2141 = vmul.f32 %v2138, %v2140
    %v2142 = vadd.f32 %v2141, 0.0036580483
    %v2143 = vmul.f32 %v2138, %v2142
    %v2144 = vadd.f32 %v2143, 0.05243302
    %v2145 = vmul.f32 %v2138, %v2144
    %v2146 = vadd.f32 %v2145, 0.18741608
    %v2147 = vmul.f32 %v2138, %v2146
    %v2148 = vadd.f32 %v2147, 1.1283791
    %v2149 = vmul.f32 %v1415, %v2148
    %v2150 = vmul.f32 %v2138, 3.8918573e-05
    %v2151 = vadd.f32 %v2150, 0.001143296
    %v2152 = vmul.f32 %v2138, %v2151
    %v2153 = vadd.f32 %v2152, 0.014752088
    %v2154 = vmul.f32 %v2138, %v2153
    %v2155 = vadd.f32 %v2154, 0.112945676
    %v2156 = vmul.f32 %v2138, %v2155
    %v2157 = vadd.f32 %v2156, 0.4994258
    %v2158 = vmul.f32 %v2138, %v2157
    %v2159 = vadd.f32 %v2158, 1.0
    %v2160 = vrcp.pop %v2159
    %v2161 = vmul.f32 %v2159, %v2160
    %v2162 = vsub.f32 1.0, %v2161
    %v2163 = vmul.f32 %v2160, %v2162
    %v2164 = vadd.f32 %v2160, %v2163
    %vm2165 = vweird.f32 %v2159
    %vm2166 = vweird.f32 %v2160
    %vm2167 = vmor %vm2165, %vm2166
    %v2168 = vsel %vm2167, %v2160, %v2164
    %v2169 = vand.u32 2147483647, %v2159
    %vm2170 = vcmp.eq.f32.partialorder %v2169, 8.507059e+37
    %v2171 = vand.u32 %v2159, 2147483648
    %v2172 = vor.u32 1.1754944e-38, %v2171
    %v2173 = vsel %vm2170, %v2172, %v2168
    %v2174 = vmul.f32 %v2149, %v2173
    %v2175 = vmin.f32 %v2174, 1.0
    %v2176 = vmax.f32 %v2175, -1.0
    %v2177 = vmul.f32 %v1416, %v1416
    %v2178 = vmin.f32 16.0, %v2177
    %v2179 = vmul.f32 %v2178, 2.1237322e-06
    %v2180 = vadd.f32 %v2179, 0.00028619796
    %v2181 = vmul.f32 %v2178, %v2180
    %v2182 = vadd.f32 %v2181, 0.0036580483
    %v2183 = vmul.f32 %v2178, %v2182
    %v2184 = vadd.f32 %v2183, 0.05243302
    %v2185 = vmul.f32 %v2178, %v2184
    %v2186 = vadd.f32 %v2185, 0.18741608
    %v2187 = vmul.f32 %v2178, %v2186
    %v2188 = vadd.f32 %v2187, 1.1283791
    %v2189 = vmul.f32 %v1416, %v2188
    %v2190 = vmul.f32 %v2178, 3.8918573e-05
    %v2191 = vadd.f32 %v2190, 0.001143296
    %v2192 = vmul.f32 %v2178, %v2191
    %v2193 = vadd.f32 %v2192, 0.014752088
    %v2194 = vmul.f32 %v2178, %v2193
    %v2195 = vadd.f32 %v2194, 0.112945676
    %v2196 = vmul.f32 %v2178, %v2195
    %v2197 = vadd.f32 %v2196, 0.4994258
    %v2198 = vmul.f32 %v2178, %v2197
    %v2199 = vadd.f32 %v2198, 1.0
    %v2200 = vrcp.pop %v2199
    %v2201 = vmul.f32 %v2199, %v2200
    %v2202 = vsub.f32 1.0, %v2201
    %v2203 = vmul.f32 %v2200, %v2202
    %v2204 = vadd.f32 %v2200, %v2203
    %vm2205 = vweird.f32 %v2199
    %vm2206 = vweird.f32 %v2200
    %vm2207 = vmor %vm2205, %vm2206
    %v2208 = vsel %vm2207, %v2200, %v2204
    %v2209 = vand.u32 2147483647, %v2199
    %vm2210 = vcmp.eq.f32.partialorder %v2209, 8.507059e+37
    %v2211 = vand.u32 %v2199, 2147483648
    %v2212 = vor.u32 1.1754944e-38, %v2211
    %v2213 = vsel %vm2210, %v2212, %v2208
    %v2214 = vmul.f32 %v2189, %v2213
    %v2215 = vmin.f32 %v2214, 1.0
    %v2216 = vmax.f32 %v2215, -1.0
    %v2217 = vadd.f32 %v1456, 1.0
    %v2218 = vadd.f32 %v1496, 1.0
    %v2219 = vadd.f32 %v1536, 1.0
    %v2220 = vadd.f32 %v1576, 1.0
    %v2221 = vadd.f32 %v1616, 1.0
    %v2222 = vadd.f32 %v1656, 1.0
    %v2223 = vadd.f32 %v1696, 1.0
    %v2224 = vadd.f32 %v1736, 1.0
    %v2225 = vadd.f32 %v1776, 1.0
    %v2226 = vadd.f32 %v1816, 1.0
    %v2227 = vadd.f32 %v1856, 1.0
    %v2228 = vadd.f32 %v1896, 1.0
    %v2229 = vadd.f32 %v1936, 1.0
    %v2230 = vadd.f32 %v1976, 1.0
    %v2231 = vadd.f32 %v2016, 1.0
    %v2232 = vadd.f32 %v2056, 1.0
    %v2233 = vadd.f32 %v2096, 1.0
    %v2234 = vadd.f32 %v2136, 1.0
    %v2235 = vadd.f32 %v2176, 1.0
    %v2236 = vadd.f32 %v2216, 1.0
    %v2237 = vmul.f32 %v1377, %v2217
    %v2238 = vmul.f32 %v1378, %v2218
    %v2239 = vmul.f32 %v1379, %v2219
    %v2240 = vmul.f32 %v1380, %v2220
    %v2241 = vmul.f32 %v1381, %v2221
    %v2242 = vmul.f32 %v1382, %v2222
    %v2243 = vmul.f32 %v1383, %v2223
    %v2244 = vmul.f32 %v1384, %v2224
    %v2245 = vmul.f32 %v1385, %v2225
    %v2246 = vmul.f32 %v1386, %v2226
    %v2247 = vmul.f32 %v1387, %v2227
    %v2248 = vmul.f32 %v1388, %v2228
    %v2249 = vmul.f32 %v1389, %v2229
    %v2250 = vmul.f32 %v1390, %v2230
    %v2251 = vmul.f32 %v1391, %v2231
    %v2252 = vmul.f32 %v1392, %v2232
    %v2253 = vmul.f32 %v1393, %v2233
    %v2254 = vmul.f32 %v1394, %v2234
    %v2255 = vmul.f32 %v1395, %v2235
    %v2256 = vmul.f32 %v1396, %v2236
    %v2257 = vadd.f32 %v2237, %v2238
    %v2258 = vadd.f32 %v2257, %v2239
    %2259 = vadd.xlane.f32.xlu0 %v2258
    %v2260 = vpop.xlane.xlu0 %2259
    %v2261 = vadd.f32 %v2247, %v2248
    %v2262 = vadd.f32 %v2261, %v2249
    %2263 = vadd.xlane.f32.xlu0 %v2262
    %v2264 = vpop.xlane.xlu0 %2263
    %v2265 = vrcp.pop 384.0
    %v2266 = vmul.f32 384.0, %v2265
    %v2267 = vsub.f32 1.0, %v2266
    %v2268 = vmul.f32 %v2265, %v2267
    %v2269 = vadd.f32 %v2265, %v2268
    %vm2270 = vweird.f32 %v2265
    %v2271 = vsel %vm2270, %v2265, %v2269
    %v2272 = vmul.f32 %v2260, %v2271
    %v2273 = vmul.f32 %v2264, %v2271
    %v2274 = vmul.f32 %v2237, %v2237
    %v2275 = vmul.f32 %v2238, %v2238
    %v2276 = vmul.f32 %v2239, %v2239
    %v2277 = vmul.f32 %v2247, %v2247
    %v2278 = vmul.f32 %v2248, %v2248
    %v2279 = vmul.f32 %v2249, %v2249
    %v2280 = vadd.f32 %v2274, %v2275
    %v2281 = vadd.f32 %v2280, %v2276
    %2282 = vadd.xlane.f32.xlu0 %v2281
    %v2283 = vpop.xlane.xlu0 %2282
    %v2284 = vadd.f32 %v2277, %v2278
    %v2285 = vadd.f32 %v2284, %v2279
    %2286 = vadd.xlane.f32.xlu0 %v2285
    %v2287 = vpop.xlane.xlu0 %2286
    %v2288 = vmul.f32 %v2283, %v2271
    %v2289 = vmul.f32 %v2287, %v2271
    %v2290 = vmul.f32 %v2272, %v2272
    %v2291 = vmul.f32 %v2273, %v2273
    %v2292 = vsub.f32 %v2288, %v2290
    %v2293 = vsub.f32 %v2289, %v2291
    %v2294 = vadd.f32 %v2292, 1e-05
    %v2295 = vadd.f32 %v2293, 1e-05
    %v2296 = vrsqrt.pop %v2294
    %v2297 = vmul.f32 %v2296, %v2294
    %v2298 = vmul.f32 %v2297, %v2296
    %v2299 = vmul.f32 0.5, %v2298
    %v2300 = vsub.f32 1.5, %v2299
    %v2301 = vmul.f32 %v2296, %v2300
    %vm2302 = vweird.f32 %v2294
    %vm2303 = vweird.f32 %v2296
    %vm2304 = vmor %vm2302, %vm2303
    %v2305 = vsel %vm2304, %v2296, %v2301
    %v2306 = vrsqrt.pop %v2295
    %v2307 = vmul.f32 %v2306, %v2295
    %v2308 = vmul.f32 %v2307, %v2306
    %v2309 = vmul.f32 0.5, %v2308
    %v2310 = vsub.f32 1.5, %v2309
    %v2311 = vmul.f32 %v2306, %v2310
    %vm2312 = vweird.f32 %v2295
    %vm2313 = vweird.f32 %v2306
    %vm2314 = vmor %vm2312, %vm2313
    %v2315 = vsel %vm2314, %v2306, %v2311
    %vm2316 = vcmask 523264
    %v2317 = vsel %vm2316, %v2241, 0.0
    %v2318 = vadd.f32 %v2240, %v2317
    %2319 = vadd.xlane.f32.xlu0 %v2318
    %v2320 = vpop.xlane.xlu0 %2319
    %v2321 = vsel %vm2316, %v2251, 0.0
    %v2322 = vadd.f32 %v2250, %v2321
    %2323 = vadd.xlane.f32.xlu0 %v2322
    %v2324 = vpop.xlane.xlu0 %2323
    %v2325 = vrcp.pop 192.0
    %v2326 = vmul.f32 192.0, %v2325
    %v2327 = vsub.f32 1.0, %v2326
    %v2328 = vmul.f32 %v2325, %v2327
    %v2329 = vadd.f32 %v2325, %v2328
    %vm2330 = vweird.f32 %v2325
    %v2331 = vsel %vm2330, %v2325, %v2329
    %v2332 = vmul.f32 %v2320, %v2331
    %v2333 = vmul.f32 %v2324, %v2331
    %v2334 = vmul.f32 %v2240, %v2240
    %v2335 = vmul.f32 %v2241, %v2241
    %v2336 = vmul.f32 %v2250, %v2250
    %v2337 = vmul.f32 %v2251, %v2251
    %v2338 = vsel %vm2316, %v2335, 0.0
    %v2339 = vadd.f32 %v2334, %v2338
    %2340 = vadd.xlane.f32.xlu0 %v2339
    %v2341 = vpop.xlane.xlu0 %2340
    %v2342 = vsel %vm2316, %v2337, 0.0
    %v2343 = vadd.f32 %v2336, %v2342
    %2344 = vadd.xlane.f32.xlu0 %v2343
    %v2345 = vpop.xlane.xlu0 %2344
    %v2346 = vmul.f32 %v2341, %v2331
    %v2347 = vmul.f32 %v2345, %v2331
    %v2348 = vmul.f32 %v2332, %v2332
    %v2349 = vmul.f32 %v2333, %v2333
    %v2350 = vsub.f32 %v2346, %v2348
    %v2351 = vsub.f32 %v2347, %v2349
    %v2352 = vadd.f32 %v2350, 1e-05
    %v2353 = vadd.f32 %v2351, 1e-05
    %v2354 = vrsqrt.pop %v2352
    %v2355 = vmul.f32 %v2354, %v2352
    %v2356 = vmul.f32 %v2355, %v2354
    %v2357 = vmul.f32 0.5, %v2356
    %v2358 = vsub.f32 1.5, %v2357
    %v2359 = vmul.f32 %v2354, %v2358
    %vm2360 = vweird.f32 %v2352
    %vm2361 = vweird.f32 %v2354
    %vm2362 = vmor %vm2360, %vm2361
    %v2363 = vsel %vm2362, %v2354, %v2359
    %v2364 = vrsqrt.pop %v2353
    %v2365 = vmul.f32 %v2364, %v2353
    %v2366 = vmul.f32 %v2365, %v2364
    %v2367 = vmul.f32 0.5, %v2366
    %v2368 = vsub.f32 1.5, %v2367
    %v2369 = vmul.f32 %v2364, %v2368
    %vm2370 = vweird.f32 %v2353
    %vm2371 = vweird.f32 %v2364
    %vm2372 = vmor %vm2370, %vm2371
    %v2373 = vsel %vm2372, %v2364, %v2369
    %v2374 = vlaneseq
    %v2375 = vand.u32 %v2374, 127
    %v2376 = vadd.s32 %v2375, 128
    %v2377 = vadd.s32 %v2375, 256
    %v2378 = vadd.s32 %v2375, 384
    %v2379 = vadd.s32 %v2375, 512
    %v2380 = vadd.s32 %v2375, 640
    %v2381 = vadd.s32 %v2375, 768
    %v2382 = vadd.s32 %v2375, 896
    %v2383 = vadd.s32 %v2375, 1024
    %v2384 = vadd.s32 %v2375, 1152
    %vm2385 = vcmp.lt.s32.totalorder %v2375, 384
    %vm2386 = vcmp.lt.s32.totalorder %v2376, 384
    %vm2387 = vcmp.lt.s32.totalorder %v2377, 384
    %vm2388 = vcmp.lt.s32.totalorder %v2378, 384
    %vm2389 = vcmp.lt.s32.totalorder %v2379, 384
    %vm2390 = vcmp.lt.s32.totalorder %v2380, 384
    %vm2391 = vcmp.lt.s32.totalorder %v2381, 384
    %vm2392 = vcmp.lt.s32.totalorder %v2382, 384
    %vm2393 = vcmp.lt.s32.totalorder %v2383, 384
    %vm2394 = vcmp.lt.s32.totalorder %v2384, 384
    %vm2395 = vcmp.ge.s32.totalorder %v2375, 384
    %vm2396 = vcmp.ge.s32.totalorder %v2376, 384
    %vm2397 = vcmp.ge.s32.totalorder %v2377, 384
    %vm2398 = vcmp.ge.s32.totalorder %v2378, 384
    %vm2399 = vcmp.ge.s32.totalorder %v2379, 384
    %vm2400 = vcmp.ge.s32.totalorder %v2380, 384
    %vm2401 = vcmp.ge.s32.totalorder %v2381, 384
    %vm2402 = vcmp.ge.s32.totalorder %v2382, 384
    %vm2403 = vcmp.ge.s32.totalorder %v2383, 384
    %vm2404 = vcmp.ge.s32.totalorder %v2384, 384
    %vm2405 = vcmp.lt.s32.totalorder %v2375, 576
    %vm2406 = vcmp.lt.s32.totalorder %v2376, 576
    %vm2407 = vcmp.lt.s32.totalorder %v2377, 576
    %vm2408 = vcmp.lt.s32.totalorder %v2378, 576
    %vm2409 = vcmp.lt.s32.totalorder %v2379, 576
    %vm2410 = vcmp.lt.s32.totalorder %v2380, 576
    %vm2411 = vcmp.lt.s32.totalorder %v2381, 576
    %vm2412 = vcmp.lt.s32.totalorder %v2382, 576
    %vm2413 = vcmp.lt.s32.totalorder %v2383, 576
    %vm2414 = vcmp.lt.s32.totalorder %v2384, 576
    %vm2415 = vmand %vm2395, %vm2405
    %vm2416 = vmand %vm2396, %vm2406
    %vm2417 = vmand %vm2397, %vm2407
    %vm2418 = vmand %vm2398, %vm2408
    %vm2419 = vmand %vm2399, %vm2409
    %vm2420 = vmand %vm2400, %vm2410
    %vm2421 = vmand %vm2401, %vm2411
    %vm2422 = vmand %vm2402, %vm2412
    %vm2423 = vmand %vm2403, %vm2413
    %vm2424 = vmand %vm2404, %vm2414
    %v2425 = vsel %vm2415, %v2363, 1.0
    %v2426 = vsel %vm2416, %v2363, 1.0
    %v2427 = vsel %vm2417, %v2363, 1.0
    %v2428 = vsel %vm2418, %v2363, 1.0
    %v2429 = vsel %vm2419, %v2363, 1.0
    %v2430 = vsel %vm2420, %v2363, 1.0
    %v2431 = vsel %vm2421, %v2363, 1.0
    %v2432 = vsel %vm2422, %v2363, 1.0
    %v2433 = vsel %vm2423, %v2363, 1.0
    %v2434 = vsel %vm2424, %v2363, 1.0
    %v2435 = vsel %vm2415, %v2373, 1.0
    %v2436 = vsel %vm2416, %v2373, 1.0
    %v2437 = vsel %vm2417, %v2373, 1.0
    %v2438 = vsel %vm2418, %v2373, 1.0
    %v2439 = vsel %vm2419, %v2373, 1.0
    %v2440 = vsel %vm2420, %v2373, 1.0
    %v2441 = vsel %vm2421, %v2373, 1.0
    %v2442 = vsel %vm2422, %v2373, 1.0
    %v2443 = vsel %vm2423, %v2373, 1.0
    %v2444 = vsel %vm2424, %v2373, 1.0
    %v2445 = vsel %vm2385, %v2305, %v2425
    %v2446 = vsel %vm2386, %v2305, %v2426
    %v2447 = vsel %vm2387, %v2305, %v2427
    %v2448 = vsel %vm2388, %v2305, %v2428
    %v2449 = vsel %vm2389, %v2305, %v2429
    %v2450 = vsel %vm2390, %v2305, %v2430
    %v2451 = vsel %vm2391, %v2305, %v2431
    %v2452 = vsel %vm2392, %v2305, %v2432
    %v2453 = vsel %vm2393, %v2305, %v2433
    %v2454 = vsel %vm2394, %v2305, %v2434
    %v2455 = vsel %vm2385, %v2315, %v2435
    %v2456 = vsel %vm2386, %v2315, %v2436
    %v2457 = vsel %vm2387, %v2315, %v2437
    %v2458 = vsel %vm2388, %v2315, %v2438
    %v2459 = vsel %vm2389, %v2315, %v2439
    %v2460 = vsel %vm2390, %v2315, %v2440
    %v2461 = vsel %vm2391, %v2315, %v2441
    %v2462 = vsel %vm2392, %v2315, %v2442
    %v2463 = vsel %vm2393, %v2315, %v2443
    %v2464 = vsel %vm2394, %v2315, %v2444
    %v2465 = vsel %vm2415, %v2332, 0.0
    %v2466 = vsel %vm2416, %v2332, 0.0
    %v2467 = vsel %vm2417, %v2332, 0.0
    %v2468 = vsel %vm2418, %v2332, 0.0
    %v2469 = vsel %vm2419, %v2332, 0.0
    %v2470 = vsel %vm2420, %v2332, 0.0
    %v2471 = vsel %vm2421, %v2332, 0.0
    %v2472 = vsel %vm2422, %v2332, 0.0
    %v2473 = vsel %vm2423, %v2332, 0.0
    %v2474 = vsel %vm2424, %v2332, 0.0
    %v2475 = vsel %vm2415, %v2333, 0.0
    %v2476 = vsel %vm2416, %v2333, 0.0
    %v2477 = vsel %vm2417, %v2333, 0.0
    %v2478 = vsel %vm2418, %v2333, 0.0
    %v2479 = vsel %vm2419, %v2333, 0.0
    %v2480 = vsel %vm2420, %v2333, 0.0
    %v2481 = vsel %vm2421, %v2333, 0.0
    %v2482 = vsel %vm2422, %v2333, 0.0
    %v2483 = vsel %vm2423, %v2333, 0.0
    %v2484 = vsel %vm2424, %v2333, 0.0
    %v2485 = vsel %vm2385, %v2272, %v2465
    %v2486 = vsel %vm2386, %v2272, %v2466
    %v2487 = vsel %vm2387, %v2272, %v2467
    %v2488 = vsel %vm2388, %v2272, %v2468
    %v2489 = vsel %vm2389, %v2272, %v2469
    %v2490 = vsel %vm2390, %v2272, %v2470
    %v2491 = vsel %vm2391, %v2272, %v2471
    %v2492 = vsel %vm2392, %v2272, %v2472
    %v2493 = vsel %vm2393, %v2272, %v2473
    %v2494 = vsel %vm2394, %v2272, %v2474
    %v2495 = vsel %vm2385, %v2273, %v2475
    %v2496 = vsel %vm2386, %v2273, %v2476
    %v2497 = vsel %vm2387, %v2273, %v2477
    %v2498 = vsel %vm2388, %v2273, %v2478
    %v2499 = vsel %vm2389, %v2273, %v2479
    %v2500 = vsel %vm2390, %v2273, %v2480
    %v2501 = vsel %vm2391, %v2273, %v2481
    %v2502 = vsel %vm2392, %v2273, %v2482
    %v2503 = vsel %vm2393, %v2273, %v2483
    %v2504 = vsel %vm2394, %v2273, %v2484
    %v2505 = vsub.f32 %v2237, %v2485
    %v2506 = vsub.f32 %v2238, %v2486
    %v2507 = vsub.f32 %v2239, %v2487
    %v2508 = vsub.f32 %v2240, %v2488
    %v2509 = vsub.f32 %v2241, %v2489
    %v2510 = vsub.f32 %v2242, %v2490
    %v2511 = vsub.f32 %v2243, %v2491
    %v2512 = vsub.f32 %v2244, %v2492
    %v2513 = vsub.f32 %v2245, %v2493
    %v2514 = vsub.f32 %v2246, %v2494
    %v2515 = vsub.f32 %v2247, %v2495
    %v2516 = vsub.f32 %v2248, %v2496
    %v2517 = vsub.f32 %v2249, %v2497
    %v2518 = vsub.f32 %v2250, %v2498
    %v2519 = vsub.f32 %v2251, %v2499
    %v2520 = vsub.f32 %v2252, %v2500
    %v2521 = vsub.f32 %v2253, %v2501
    %v2522 = vsub.f32 %v2254, %v2502
    %v2523 = vsub.f32 %v2255, %v2503
    %v2524 = vsub.f32 %v2256, %v2504
    %v2525 = vmul.f32 %v2505, %v2445
    %v2526 = vmul.f32 %v2506, %v2446
    %v2527 = vmul.f32 %v2507, %v2447
    %v2528 = vmul.f32 %v2508, %v2448
    %v2529 = vmul.f32 %v2509, %v2449
    %v2530 = vmul.f32 %v2510, %v2450
    %v2531 = vmul.f32 %v2511, %v2451
    %v2532 = vmul.f32 %v2512, %v2452
    %v2533 = vmul.f32 %v2513, %v2453
    %v2534 = vmul.f32 %v2514, %v2454
    %v2535 = vmul.f32 %v2515, %v2455
    %v2536 = vmul.f32 %v2516, %v2456
    %v2537 = vmul.f32 %v2517, %v2457
    %v2538 = vmul.f32 %v2518, %v2458
    %v2539 = vmul.f32 %v2519, %v2459
    %v2540 = vmul.f32 %v2520, %v2460
    %v2541 = vmul.f32 %v2521, %v2461
    %v2542 = vmul.f32 %v2522, %v2462
    %v2543 = vmul.f32 %v2523, %v2463
    %v2544 = vmul.f32 %v2524, %v2464
    %v2545 = vld [vmem:[%s3] sm:$0xff]
    %v2546 = vld [vmem:[%s3 + $0x8] sm:$0x3]
    %v2549 = vperm.slane %v2545, 0
    %v2550 = vperm.slane %v2545, 1
    %v2551 = vperm.slane %v2545, 2
    %v2552 = vperm.slane %v2545, 3
    %v2553 = vperm.slane %v2545, 4
    %v2554 = vperm.slane %v2545, 5
    %v2555 = vperm.slane %v2545, 6
    %v2556 = vperm.slane %v2545, 7
    %v2557 = vperm.slane %v2546, 0
    %v2558 = vperm.slane %v2546, 1
    %v2569 = vmul.f32 %v2525, %v2549
    %v2570 = vmul.f32 %v2526, %v2550
    %v2571 = vmul.f32 %v2527, %v2551
    %v2572 = vmul.f32 %v2528, %v2552
    %v2573 = vmul.f32 %v2529, %v2553
    %v2574 = vmul.f32 %v2530, %v2554
    %v2575 = vmul.f32 %v2531, %v2555
    %v2576 = vmul.f32 %v2532, %v2556
    %v2577 = vmul.f32 %v2533, %v2557
    %v2578 = vmul.f32 %v2534, %v2558
    %v2579 = vmul.f32 %v2535, %v2549
    %v2580 = vmul.f32 %v2536, %v2550
    %v2581 = vmul.f32 %v2537, %v2551
    %v2582 = vmul.f32 %v2538, %v2552
    %v2583 = vmul.f32 %v2539, %v2553
    %v2584 = vmul.f32 %v2540, %v2554
    %v2585 = vmul.f32 %v2541, %v2555
    %v2586 = vmul.f32 %v2542, %v2556
    %v2587 = vmul.f32 %v2543, %v2557
    %v2588 = vmul.f32 %v2544, %v2558
    %v2589 = vld [vmem:[%s4] sm:$0xff]
    %v2590 = vld [vmem:[%s4 + $0x8] sm:$0x3]
    %v2593 = vperm.slane %v2589, 0
    %v2594 = vperm.slane %v2589, 1
    %v2595 = vperm.slane %v2589, 2
    %v2596 = vperm.slane %v2589, 3
    %v2597 = vperm.slane %v2589, 4
    %v2598 = vperm.slane %v2589, 5
    %v2599 = vperm.slane %v2589, 6
    %v2600 = vperm.slane %v2589, 7
    %v2601 = vperm.slane %v2590, 0
    %v2602 = vperm.slane %v2590, 1
    %v2613 = vadd.f32 %v2569, %v2593
    %v2614 = vadd.f32 %v2570, %v2594
    %v2615 = vadd.f32 %v2571, %v2595
    %v2616 = vadd.f32 %v2572, %v2596
    %v2617 = vadd.f32 %v2573, %v2597
    %v2618 = vadd.f32 %v2574, %v2598
    %v2619 = vadd.f32 %v2575, %v2599
    %v2620 = vadd.f32 %v2576, %v2600
    %v2621 = vadd.f32 %v2577, %v2601
    %v2622 = vadd.f32 %v2578, %v2602
    %v2623 = vadd.f32 %v2579, %v2593
    %v2624 = vadd.f32 %v2580, %v2594
    %v2625 = vadd.f32 %v2581, %v2595
    %v2626 = vadd.f32 %v2582, %v2596
    %v2627 = vadd.f32 %v2583, %v2597
    %v2628 = vadd.f32 %v2584, %v2598
    %v2629 = vadd.f32 %v2585, %v2599
    %v2630 = vadd.f32 %v2586, %v2600
    %v2631 = vadd.f32 %v2587, %v2601
    %v2632 = vadd.f32 %v2588, %v2602
    %v2633 = vpack.c.bf16 %v2614, %v2613
    %v2634 = vpack.c.bf16 %v2616, %v2615
    %v2635 = vpack.c.bf16 %v2618, %v2617
    %v2636 = vpack.c.bf16 %v2620, %v2619
    %v2637 = vpack.c.bf16 %v2622, %v2621
    %v2638 = vpack.c.bf16 %v2624, %v2623
    %v2639 = vpack.c.bf16 %v2626, %v2625
    %v2640 = vpack.c.bf16 %v2628, %v2627
    %v2641 = vpack.c.bf16 %v2630, %v2629
    %v2642 = vpack.c.bf16 %v2632, %v2631
    %v2643 = vld [vmem:[#allocation4] sm:$0xff]
    %v2644 = vld [vmem:[#allocation4 + $0x8] sm:$0xff]
    %v2645 = vld [vmem:[#allocation4 + $0x10] sm:$0xff]
    %v2646 = vld [vmem:[#allocation4 + $0x18] sm:$0xff]
    %v2647 = vld [vmem:[#allocation4 + $0x20] sm:$0xff]
    %v2648 = vld [vmem:[#allocation4 + $0x28] sm:$0xff]
    %v2649 = vld [vmem:[#allocation4 + $0x30] sm:$0xff]
    %v2650 = vld [vmem:[#allocation4 + $0x38] sm:$0xff]
    %v2651 = vld [vmem:[#allocation4 + $0x40] sm:$0xff]
    %v2652 = vld [vmem:[#allocation4 + $0x48] sm:$0xff]
    %v2653 = vld [vmem:[#allocation4 + $0x50] sm:$0xff]
    %v2654 = vld [vmem:[#allocation4 + $0x58] sm:$0xff]
    %v2655 = vld [vmem:[#allocation4 + $0x60] sm:$0xff]
    %v2656 = vld [vmem:[#allocation4 + $0x68] sm:$0xff]
    %v2657 = vld [vmem:[#allocation4 + $0x70] sm:$0xff]
    %v2658 = vld [vmem:[#allocation4 + $0x78] sm:$0xff]
    %v2659 = vld [vmem:[#allocation4 + $0x80] sm:$0xff]
    %v2660 = vld [vmem:[#allocation4 + $0x88] sm:$0xff]
    %v2661 = vld [vmem:[#allocation4 + $0x90] sm:$0xff]
    %v2662 = vld [vmem:[#allocation4 + $0x98] sm:$0xff]
    %v2663 = vld [vmem:[#allocation4 + $0xa0] sm:$0xff]
    %v2664 = vld [vmem:[#allocation4 + $0xa8] sm:$0xff]
    %v2665 = vld [vmem:[#allocation4 + $0xb0] sm:$0xff]
    %v2666 = vld [vmem:[#allocation4 + $0xb8] sm:$0xff]
    %v2667 = vld [vmem:[#allocation4 + $0xc0] sm:$0xff]
    %v2668 = vld [vmem:[#allocation4 + $0xc8] sm:$0xff]
    %v2669 = vld [vmem:[#allocation4 + $0xd0] sm:$0xff]
    %v2670 = vld [vmem:[#allocation4 + $0xd8] sm:$0xff]
    %v2671 = vld [vmem:[#allocation4 + $0xe0] sm:$0xff]
    %v2672 = vld [vmem:[#allocation4 + $0xe8] sm:$0xff]
    %v2673 = vld [vmem:[#allocation4 + $0xf0] sm:$0xff]
    %v2674 = vld [vmem:[#allocation4 + $0xf8] sm:$0xff]
    %v2675 = vld [vmem:[#allocation4 + $0x100] sm:$0xff]
    %v2676 = vld [vmem:[#allocation4 + $0x108] sm:$0xff]
    %v2677 = vld [vmem:[#allocation4 + $0x110] sm:$0xff]
    %v2678 = vld [vmem:[#allocation4 + $0x118] sm:$0xff]
    %v2679 = vld [vmem:[#allocation4 + $0x120] sm:$0xff]
    %v2680 = vld [vmem:[#allocation4 + $0x128] sm:$0xff]
    %v2681 = vld [vmem:[#allocation4 + $0x130] sm:$0xff]
    %v2682 = vld [vmem:[#allocation4 + $0x138] sm:$0xff]
    %v2683 = vld [vmem:[#allocation4 + $0x140] sm:$0xff]
    %v2684 = vld [vmem:[#allocation4 + $0x148] sm:$0xff]
    %v2685 = vld [vmem:[#allocation4 + $0x150] sm:$0xff]
    %v2686 = vld [vmem:[#allocation4 + $0x158] sm:$0xff]
    %v2687 = vld [vmem:[#allocation4 + $0x160] sm:$0xff]
    %v2688 = vld [vmem:[#allocation4 + $0x168] sm:$0xff]
    %v2689 = vld [vmem:[#allocation4 + $0x170] sm:$0xff]
    %v2690 = vld [vmem:[#allocation4 + $0x178] sm:$0xff]
    %v2691 = vld [vmem:[#allocation4 + $0x180] sm:$0xff]
    %v2692 = vld [vmem:[#allocation4 + $0x188] sm:$0xff]
    %v2693 = vld [vmem:[#allocation4 + $0x190] sm:$0xff]
    %v2694 = vld [vmem:[#allocation4 + $0x198] sm:$0xff]
    %v2695 = vld [vmem:[#allocation4 + $0x1a0] sm:$0xff]
    %v2696 = vld [vmem:[#allocation4 + $0x1a8] sm:$0xff]
    %v2697 = vld [vmem:[#allocation4 + $0x1b0] sm:$0xff]
    %v2698 = vld [vmem:[#allocation4 + $0x1b8] sm:$0xff]
    %v2699 = vld [vmem:[#allocation4 + $0x1c0] sm:$0xff]
    %v2700 = vld [vmem:[#allocation4 + $0x1c8] sm:$0xff]
    %v2701 = vld [vmem:[#allocation4 + $0x1d0] sm:$0xff]
    %v2702 = vld [vmem:[#allocation4 + $0x1d8] sm:$0xff]
    %v2703 = vld [vmem:[#allocation4 + $0x1e0] sm:$0xff]
    %v2704 = vld [vmem:[#allocation4 + $0x1e8] sm:$0xff]
    %v2705 = vld [vmem:[#allocation4 + $0x1f0] sm:$0xff]
    %v2706 = vld [vmem:[#allocation4 + $0x1f8] sm:$0xff]
    %v2707 = vld [vmem:[#allocation4 + $0x200] sm:$0xff]
    %v2708 = vld [vmem:[#allocation4 + $0x208] sm:$0xff]
    %v2709 = vld [vmem:[#allocation4 + $0x210] sm:$0xff]
    %v2710 = vld [vmem:[#allocation4 + $0x218] sm:$0xff]
    %v2711 = vld [vmem:[#allocation4 + $0x220] sm:$0xff]
    %v2712 = vld [vmem:[#allocation4 + $0x228] sm:$0xff]
    %v2713 = vld [vmem:[#allocation4 + $0x230] sm:$0xff]
    %v2714 = vld [vmem:[#allocation4 + $0x238] sm:$0xff]
    %v2715 = vld [vmem:[#allocation4 + $0x240] sm:$0xff]
    %v2716 = vld [vmem:[#allocation4 + $0x248] sm:$0xff]
    %v2717 = vld [vmem:[#allocation4 + $0x250] sm:$0xff]
    %v2718 = vld [vmem:[#allocation4 + $0x258] sm:$0xff]
    %v2719 = vld [vmem:[#allocation4 + $0x260] sm:$0xff]
    %v2720 = vld [vmem:[#allocation4 + $0x268] sm:$0xff]
    %v2721 = vld [vmem:[#allocation4 + $0x270] sm:$0xff]
    %v2722 = vld [vmem:[#allocation4 + $0x278] sm:$0xff]
    %v2723 = vld [vmem:[#allocation4 + $0x280] sm:$0xff]
    %v2724 = vld [vmem:[#allocation4 + $0x288] sm:$0xff]
    %v2725 = vld [vmem:[#allocation4 + $0x290] sm:$0xff]
    %v2726 = vld [vmem:[#allocation4 + $0x298] sm:$0xff]
    %v2727 = vld [vmem:[#allocation4 + $0x2a0] sm:$0xff]
    %v2728 = vld [vmem:[#allocation4 + $0x2a8] sm:$0xff]
    %v2729 = vld [vmem:[#allocation4 + $0x2b0] sm:$0xff]
    %v2730 = vld [vmem:[#allocation4 + $0x2b8] sm:$0xff]
    %v2731 = vld [vmem:[#allocation4 + $0x2c0] sm:$0xff]
    %v2732 = vld [vmem:[#allocation4 + $0x2c8] sm:$0xff]
    %v2733 = vld [vmem:[#allocation4 + $0x2d0] sm:$0xff]
    %v2734 = vld [vmem:[#allocation4 + $0x2d8] sm:$0xff]
    %v2735 = vld [vmem:[#allocation4 + $0x2e0] sm:$0xff]
    %v2736 = vld [vmem:[#allocation4 + $0x2e8] sm:$0xff]
    %v2737 = vld [vmem:[#allocation4 + $0x2f0] sm:$0xff]
    %v2738 = vld [vmem:[#allocation4 + $0x2f8] sm:$0xff]
    %v2739 = vld [vmem:[#allocation4 + $0x300] sm:$0xff]
    %v2740 = vld [vmem:[#allocation4 + $0x308] sm:$0xff]
    %v2741 = vld [vmem:[#allocation4 + $0x310] sm:$0xff]
    %v2742 = vld [vmem:[#allocation4 + $0x318] sm:$0xff]
    %v2743 = vld [vmem:[#allocation4 + $0x320] sm:$0xff]
    %v2744 = vld [vmem:[#allocation4 + $0x328] sm:$0xff]
    %v2745 = vld [vmem:[#allocation4 + $0x330] sm:$0xff]
    %v2746 = vld [vmem:[#allocation4 + $0x338] sm:$0xff]
    %v2747 = vld [vmem:[#allocation4 + $0x340] sm:$0xff]
    %v2748 = vld [vmem:[#allocation4 + $0x348] sm:$0xff]
    %v2749 = vld [vmem:[#allocation4 + $0x350] sm:$0xff]
    %v2750 = vld [vmem:[#allocation4 + $0x358] sm:$0xff]
    %v2751 = vld [vmem:[#allocation4 + $0x360] sm:$0xff]
    %v2752 = vld [vmem:[#allocation4 + $0x368] sm:$0xff]
    %v2753 = vld [vmem:[#allocation4 + $0x370] sm:$0xff]
    %v2754 = vld [vmem:[#allocation4 + $0x378] sm:$0xff]
    %v2755 = vld [vmem:[#allocation4 + $0x380] sm:$0xff]
    %v2756 = vld [vmem:[#allocation4 + $0x388] sm:$0xff]
    %v2757 = vld [vmem:[#allocation4 + $0x390] sm:$0xff]
    %v2758 = vld [vmem:[#allocation4 + $0x398] sm:$0xff]
    %v2759 = vld [vmem:[#allocation4 + $0x3a0] sm:$0xff]
    %v2760 = vld [vmem:[#allocation4 + $0x3a8] sm:$0xff]
    %v2761 = vld [vmem:[#allocation4 + $0x3b0] sm:$0xff]
    %v2762 = vld [vmem:[#allocation4 + $0x3b8] sm:$0xff]
    %v2763 = vld [vmem:[#allocation4 + $0x3c0] sm:$0xff]
    %v2764 = vld [vmem:[#allocation4 + $0x3c8] sm:$0xff]
    %v2765 = vld [vmem:[#allocation4 + $0x3d0] sm:$0xff]
    %v2766 = vld [vmem:[#allocation4 + $0x3d8] sm:$0xff]
    %v2767 = vld [vmem:[#allocation4 + $0x3e0] sm:$0xff]
    %v2768 = vld [vmem:[#allocation4 + $0x3e8] sm:$0xff]
    %v2769 = vld [vmem:[#allocation4 + $0x3f0] sm:$0xff]
    %v2770 = vld [vmem:[#allocation4 + $0x3f8] sm:$0xff]
    %v2771 = vld [vmem:[#allocation4 + $0x400] sm:$0xff]
    %v2772 = vld [vmem:[#allocation4 + $0x408] sm:$0xff]
    %v2773 = vld [vmem:[#allocation4 + $0x410] sm:$0xff]
    %v2774 = vld [vmem:[#allocation4 + $0x418] sm:$0xff]
    %v2775 = vld [vmem:[#allocation4 + $0x420] sm:$0xff]
    %v2776 = vld [vmem:[#allocation4 + $0x428] sm:$0xff]
    %v2777 = vld [vmem:[#allocation4 + $0x430] sm:$0xff]
    %v2778 = vld [vmem:[#allocation4 + $0x438] sm:$0xff]
    %v2779 = vld [vmem:[#allocation4 + $0x440] sm:$0xff]
    %v2780 = vld [vmem:[#allocation4 + $0x448] sm:$0xff]
    %v2781 = vld [vmem:[#allocation4 + $0x450] sm:$0xff]
    %v2782 = vld [vmem:[#allocation4 + $0x458] sm:$0xff]
    %v2783 = vld [vmem:[#allocation4 + $0x460] sm:$0xff]
    %v2784 = vld [vmem:[#allocation4 + $0x468] sm:$0xff]
    %v2785 = vld [vmem:[#allocation4 + $0x470] sm:$0xff]
    %v2786 = vld [vmem:[#allocation4 + $0x478] sm:$0xff]
    %v2787 = vld [vmem:[#allocation4 + $0x480] sm:$0xff]
    %v2788 = vld [vmem:[#allocation4 + $0x488] sm:$0xff]
    %v2789 = vld [vmem:[#allocation4 + $0x490] sm:$0xff]
    %v2790 = vld [vmem:[#allocation4 + $0x498] sm:$0xff]
    %v2791 = vld [vmem:[#allocation4 + $0x4a0] sm:$0xff]
    %v2792 = vld [vmem:[#allocation4 + $0x4a8] sm:$0xff]
    %v2793 = vld [vmem:[#allocation4 + $0x4b0] sm:$0xff]
    %v2794 = vld [vmem:[#allocation4 + $0x4b8] sm:$0xff]
    %v2795 = vld [vmem:[#allocation4 + $0x4c0] sm:$0xff]
    %v2796 = vld [vmem:[#allocation4 + $0x4c8] sm:$0xff]
    %v2797 = vld [vmem:[#allocation4 + $0x4d0] sm:$0xff]
    %v2798 = vld [vmem:[#allocation4 + $0x4d8] sm:$0xff]
    %v2799 = vld [vmem:[#allocation4 + $0x4e0] sm:$0xff]
    %v2800 = vld [vmem:[#allocation4 + $0x4e8] sm:$0xff]
    %v2801 = vld [vmem:[#allocation4 + $0x4f0] sm:$0xff]
    %v2802 = vld [vmem:[#allocation4 + $0x4f8] sm:$0xff]
    %v2803 = vld [vmem:[#allocation4 + $0x500] sm:$0xff]
    %v2804 = vld [vmem:[#allocation4 + $0x508] sm:$0xff]
    %v2805 = vld [vmem:[#allocation4 + $0x510] sm:$0xff]
    %v2806 = vld [vmem:[#allocation4 + $0x518] sm:$0xff]
    %v2807 = vld [vmem:[#allocation4 + $0x520] sm:$0xff]
    %v2808 = vld [vmem:[#allocation4 + $0x528] sm:$0xff]
    %v2809 = vld [vmem:[#allocation4 + $0x530] sm:$0xff]
    %v2810 = vld [vmem:[#allocation4 + $0x538] sm:$0xff]
    %v2811 = vld [vmem:[#allocation4 + $0x540] sm:$0xff]
    %v2812 = vld [vmem:[#allocation4 + $0x548] sm:$0xff]
    %v2813 = vld [vmem:[#allocation4 + $0x550] sm:$0xff]
    %v2814 = vld [vmem:[#allocation4 + $0x558] sm:$0xff]
    %v2815 = vld [vmem:[#allocation4 + $0x560] sm:$0xff]
    %v2816 = vld [vmem:[#allocation4 + $0x568] sm:$0xff]
    %v2817 = vld [vmem:[#allocation4 + $0x570] sm:$0xff]
    %v2818 = vld [vmem:[#allocation4 + $0x578] sm:$0xff]
    %v2819 = vld [vmem:[#allocation4 + $0x580] sm:$0xff]
    %v2820 = vld [vmem:[#allocation4 + $0x588] sm:$0xff]
    %v2821 = vld [vmem:[#allocation4 + $0x590] sm:$0xff]
    %v2822 = vld [vmem:[#allocation4 + $0x598] sm:$0xff]
    %v2823 = vld [vmem:[#allocation4 + $0x5a0] sm:$0xff]
    %v2824 = vld [vmem:[#allocation4 + $0x5a8] sm:$0xff]
    %v2825 = vld [vmem:[#allocation4 + $0x5b0] sm:$0xff]
    %v2826 = vld [vmem:[#allocation4 + $0x5b8] sm:$0xff]
    %v2827 = vld [vmem:[#allocation4 + $0x5c0] sm:$0xff]
    %v2828 = vld [vmem:[#allocation4 + $0x5c8] sm:$0xff]
    %v2829 = vld [vmem:[#allocation4 + $0x5d0] sm:$0xff]
    %v2830 = vld [vmem:[#allocation4 + $0x5d8] sm:$0xff]
    %v2831 = vld [vmem:[#allocation4 + $0x5e0] sm:$0xff]
    %v2832 = vld [vmem:[#allocation4 + $0x5e8] sm:$0xff]
    %v2833 = vld [vmem:[#allocation4 + $0x5f0] sm:$0xff]
    %v2834 = vld [vmem:[#allocation4 + $0x5f8] sm:$0xff]
    %v2835 = vld [vmem:[#allocation4 + $0x600] sm:$0xff]
    %v2836 = vld [vmem:[#allocation4 + $0x608] sm:$0xff]
    %v2837 = vld [vmem:[#allocation4 + $0x610] sm:$0xff]
    %v2838 = vld [vmem:[#allocation4 + $0x618] sm:$0xff]
    %v2839 = vld [vmem:[#allocation4 + $0x620] sm:$0xff]
    %v2840 = vld [vmem:[#allocation4 + $0x628] sm:$0xff]
    %v2841 = vld [vmem:[#allocation4 + $0x630] sm:$0xff]
    %v2842 = vld [vmem:[#allocation4 + $0x638] sm:$0xff]
    %v2843 = vld [vmem:[#allocation4 + $0x640] sm:$0xff]
    %v2844 = vld [vmem:[#allocation4 + $0x648] sm:$0xff]
    %v2845 = vld [vmem:[#allocation4 + $0x650] sm:$0xff]
    %v2846 = vld [vmem:[#allocation4 + $0x658] sm:$0xff]
    %v2847 = vld [vmem:[#allocation4 + $0x660] sm:$0xff]
    %v2848 = vld [vmem:[#allocation4 + $0x668] sm:$0xff]
    %v2849 = vld [vmem:[#allocation4 + $0x670] sm:$0xff]
    %v2850 = vld [vmem:[#allocation4 + $0x678] sm:$0xff]
    %v2851 = vld [vmem:[#allocation4 + $0x680] sm:$0xff]
    %v2852 = vld [vmem:[#allocation4 + $0x688] sm:$0xff]
    %v2853 = vld [vmem:[#allocation4 + $0x690] sm:$0xff]
    %v2854 = vld [vmem:[#allocation4 + $0x698] sm:$0xff]
    %v2855 = vld [vmem:[#allocation4 + $0x6a0] sm:$0xff]
    %v2856 = vld [vmem:[#allocation4 + $0x6a8] sm:$0xff]
    %v2857 = vld [vmem:[#allocation4 + $0x6b0] sm:$0xff]
    %v2858 = vld [vmem:[#allocation4 + $0x6b8] sm:$0xff]
    %v2859 = vld [vmem:[#allocation4 + $0x6c0] sm:$0xff]
    %v2860 = vld [vmem:[#allocation4 + $0x6c8] sm:$0xff]
    %v2861 = vld [vmem:[#allocation4 + $0x6d0] sm:$0xff]
    %v2862 = vld [vmem:[#allocation4 + $0x6d8] sm:$0xff]
    %v2863 = vld [vmem:[#allocation4 + $0x6e0] sm:$0xff]
    %v2864 = vld [vmem:[#allocation4 + $0x6e8] sm:$0xff]
    %v2865 = vld [vmem:[#allocation4 + $0x6f0] sm:$0xff]
    %v2866 = vld [vmem:[#allocation4 + $0x6f8] sm:$0xff]
    %v2867 = vld [vmem:[#allocation4 + $0x700] sm:$0xff]
    %v2868 = vld [vmem:[#allocation4 + $0x708] sm:$0xff]
    %v2869 = vld [vmem:[#allocation4 + $0x710] sm:$0xff]
    %v2870 = vld [vmem:[#allocation4 + $0x718] sm:$0xff]
    %v2871 = vld [vmem:[#allocation4 + $0x720] sm:$0xff]
    %v2872 = vld [vmem:[#allocation4 + $0x728] sm:$0xff]
    %v2873 = vld [vmem:[#allocation4 + $0x730] sm:$0xff]
    %v2874 = vld [vmem:[#allocation4 + $0x738] sm:$0xff]
    %v2875 = vld [vmem:[#allocation4 + $0x740] sm:$0xff]
    %v2876 = vld [vmem:[#allocation4 + $0x748] sm:$0xff]
    %v2877 = vld [vmem:[#allocation4 + $0x750] sm:$0xff]
    %v2878 = vld [vmem:[#allocation4 + $0x758] sm:$0xff]
    %v2879 = vld [vmem:[#allocation4 + $0x760] sm:$0xff]
    %v2880 = vld [vmem:[#allocation4 + $0x768] sm:$0xff]
    %v2881 = vld [vmem:[#allocation4 + $0x770] sm:$0xff]
    %v2882 = vld [vmem:[#allocation4 + $0x778] sm:$0xff]
    %v2883 = vld [vmem:[#allocation4 + $0x780] sm:$0xff]
    %v2884 = vld [vmem:[#allocation4 + $0x788] sm:$0xff]
    %v2885 = vld [vmem:[#allocation4 + $0x790] sm:$0xff]
    %v2886 = vld [vmem:[#allocation4 + $0x798] sm:$0xff]
    %v2887 = vld [vmem:[#allocation4 + $0x7a0] sm:$0xff]
    %v2888 = vld [vmem:[#allocation4 + $0x7a8] sm:$0xff]
    %v2889 = vld [vmem:[#allocation4 + $0x7b0] sm:$0xff]
    %v2890 = vld [vmem:[#allocation4 + $0x7b8] sm:$0xff]
    %v2891 = vld [vmem:[#allocation4 + $0x7c0] sm:$0xff]
    %v2892 = vld [vmem:[#allocation4 + $0x7c8] sm:$0xff]
    %v2893 = vld [vmem:[#allocation4 + $0x7d0] sm:$0xff]
    %v2894 = vld [vmem:[#allocation4 + $0x7d8] sm:$0xff]
    %v2895 = vld [vmem:[#allocation4 + $0x7e0] sm:$0xff]
    %v2896 = vld [vmem:[#allocation4 + $0x7e8] sm:$0xff]
    %v2897 = vld [vmem:[#allocation4 + $0x7f0] sm:$0xff]
    %v2898 = vld [vmem:[#allocation4 + $0x7f8] sm:$0xff]
    %v2899 = vld [vmem:[%s6] sm:$0xf]
    %v2901 = vperm.slane %v2899, 0
    %v2902 = vperm.slane %v2899, 1
    %v2903 = vperm.slane %v2899, 2
    %v2904 = vperm.slane %v2899, 3
    %v2917 = vunpack.c.l.b16 %v2633
    %v2918 = vunpack.c.h.b16 %v2633
    %v2919 = vunpack.c.l.b16 %v2634
    %v2920 = vunpack.c.h.b16 %v2634
    %v2921 = vunpack.c.l.b16 %v2635
    %v2922 = vunpack.c.h.b16 %v2635
    %v2923 = vunpack.c.l.b16 %v2636
    %v2924 = vunpack.c.h.b16 %v2636
    %v2925 = vunpack.c.l.b16 %v2638
    %v2926 = vunpack.c.h.b16 %v2638
    %v2927 = vunpack.c.l.b16 %v2639
    %v2928 = vunpack.c.h.b16 %v2639
    %v2929 = vunpack.c.l.b16 %v2640
    %v2930 = vunpack.c.h.b16 %v2640
    %v2931 = vunpack.c.l.b16 %v2641
    %v2932 = vunpack.c.h.b16 %v2641
    %v2933 = vpack.c.b16 %v2925, %v2917
    %v2934 = vpack.c.b16 %v2926, %v2918
    %v2935 = vpack.c.b16 %v2927, %v2919
    %v2936 = vpack.c.b16 %v2928, %v2920
    %v2937 = vpack.c.b16 %v2929, %v2921
    %v2938 = vpack.c.b16 %v2930, %v2922
    %v2939 = vpack.c.b16 %v2931, %v2923
    %v2940 = vpack.c.b16 %v2932, %v2924
    %v3205 = vunpack.c.l.b16 %v2643
    %v3206 = vunpack.c.h.b16 %v2643
    %v3207 = vunpack.c.l.b16 %v2644
    %v3208 = vunpack.c.h.b16 %v2644
    %v3209 = vunpack.c.l.b16 %v2645
    %v3210 = vunpack.c.h.b16 %v2645
    %v3211 = vunpack.c.l.b16 %v2646
    %v3212 = vunpack.c.h.b16 %v2646
    %v3213 = vunpack.c.l.b16 %v2647
    %v3214 = vunpack.c.h.b16 %v2647
    %v3215 = vunpack.c.l.b16 %v2648
    %v3216 = vunpack.c.h.b16 %v2648
    %v3217 = vunpack.c.l.b16 %v2649
    %v3218 = vunpack.c.h.b16 %v2649
    %v3219 = vunpack.c.l.b16 %v2650
    %v3220 = vunpack.c.h.b16 %v2650
    %v3221 = vunpack.c.l.b16 %v2651
    %v3222 = vunpack.c.h.b16 %v2651
    %v3223 = vunpack.c.l.b16 %v2652
    %v3224 = vunpack.c.h.b16 %v2652
    %v3225 = vunpack.c.l.b16 %v2653
    %v3226 = vunpack.c.h.b16 %v2653
    %v3227 = vunpack.c.l.b16 %v2654
    %v3228 = vunpack.c.h.b16 %v2654
    %v3229 = vunpack.c.l.b16 %v2655
    %v3230 = vunpack.c.h.b16 %v2655
    %v3231 = vunpack.c.l.b16 %v2656
    %v3232 = vunpack.c.h.b16 %v2656
    %v3233 = vunpack.c.l.b16 %v2657
    %v3234 = vunpack.c.h.b16 %v2657
    %v3235 = vunpack.c.l.b16 %v2658
    %v3236 = vunpack.c.h.b16 %v2658
    %v3237 = vunpack.c.l.b16 %v2659
    %v3238 = vunpack.c.h.b16 %v2659
    %v3239 = vunpack.c.l.b16 %v2660
    %v3240 = vunpack.c.h.b16 %v2660
    %v3241 = vunpack.c.l.b16 %v2661
    %v3242 = vunpack.c.h.b16 %v2661
    %v3243 = vunpack.c.l.b16 %v2662
    %v3244 = vunpack.c.h.b16 %v2662
    %v3245 = vunpack.c.l.b16 %v2663
    %v3246 = vunpack.c.h.b16 %v2663
    %v3247 = vunpack.c.l.b16 %v2664
    %v3248 = vunpack.c.h.b16 %v2664
    %v3249 = vunpack.c.l.b16 %v2665
    %v3250 = vunpack.c.h.b16 %v2665
    %v3251 = vunpack.c.l.b16 %v2666
    %v3252 = vunpack.c.h.b16 %v2666
    %v3253 = vunpack.c.l.b16 %v2667
    %v3254 = vunpack.c.h.b16 %v2667
    %v3255 = vunpack.c.l.b16 %v2668
    %v3256 = vunpack.c.h.b16 %v2668
    %v3257 = vunpack.c.l.b16 %v2669
    %v3258 = vunpack.c.h.b16 %v2669
    %v3259 = vunpack.c.l.b16 %v2670
    %v3260 = vunpack.c.h.b16 %v2670
    %v3261 = vunpack.c.l.b16 %v2671
    %v3262 = vunpack.c.h.b16 %v2671
    %v3263 = vunpack.c.l.b16 %v2672
    %v3264 = vunpack.c.h.b16 %v2672
    %v3265 = vunpack.c.l.b16 %v2673
    %v3266 = vunpack.c.h.b16 %v2673
    %v3267 = vunpack.c.l.b16 %v2674
    %v3268 = vunpack.c.h.b16 %v2674
    %v3269 = vunpack.c.l.b16 %v2675
    %v3270 = vunpack.c.h.b16 %v2675
    %v3271 = vunpack.c.l.b16 %v2676
    %v3272 = vunpack.c.h.b16 %v2676
    %v3273 = vunpack.c.l.b16 %v2677
    %v3274 = vunpack.c.h.b16 %v2677
    %v3275 = vunpack.c.l.b16 %v2678
    %v3276 = vunpack.c.h.b16 %v2678
    %v3277 = vunpack.c.l.b16 %v2679
    %v3278 = vunpack.c.h.b16 %v2679
    %v3279 = vunpack.c.l.b16 %v2680
    %v3280 = vunpack.c.h.b16 %v2680
    %v3281 = vunpack.c.l.b16 %v2681
    %v3282 = vunpack.c.h.b16 %v2681
    %v3283 = vunpack.c.l.b16 %v2682
    %v3284 = vunpack.c.h.b16 %v2682
    %v3285 = vunpack.c.l.b16 %v2683
    %v3286 = vunpack.c.h.b16 %v2683
    %v3287 = vunpack.c.l.b16 %v2684
    %v3288 = vunpack.c.h.b16 %v2684
    %v3289 = vunpack.c.l.b16 %v2685
    %v3290 = vunpack.c.h.b16 %v2685
    %v3291 = vunpack.c.l.b16 %v2686
    %v3292 = vunpack.c.h.b16 %v2686
    %v3293 = vunpack.c.l.b16 %v2687
    %v3294 = vunpack.c.h.b16 %v2687
    %v3295 = vunpack.c.l.b16 %v2688
    %v3296 = vunpack.c.h.b16 %v2688
    %v3297 = vunpack.c.l.b16 %v2689
    %v3298 = vunpack.c.h.b16 %v2689
    %v3299 = vunpack.c.l.b16 %v2690
    %v3300 = vunpack.c.h.b16 %v2690
    %v3301 = vunpack.c.l.b16 %v2691
    %v3302 = vunpack.c.h.b16 %v2691
    %v3303 = vunpack.c.l.b16 %v2692
    %v3304 = vunpack.c.h.b16 %v2692
    %v3305 = vunpack.c.l.b16 %v2693
    %v3306 = vunpack.c.h.b16 %v2693
    %v3307 = vunpack.c.l.b16 %v2694
    %v3308 = vunpack.c.h.b16 %v2694
    %v3309 = vunpack.c.l.b16 %v2695
    %v3310 = vunpack.c.h.b16 %v2695
    %v3311 = vunpack.c.l.b16 %v2696
    %v3312 = vunpack.c.h.b16 %v2696
    %v3313 = vunpack.c.l.b16 %v2697
    %v3314 = vunpack.c.h.b16 %v2697
    %v3315 = vunpack.c.l.b16 %v2698
    %v3316 = vunpack.c.h.b16 %v2698
    %v3317 = vunpack.c.l.b16 %v2699
    %v3318 = vunpack.c.h.b16 %v2699
    %v3319 = vunpack.c.l.b16 %v2700
    %v3320 = vunpack.c.h.b16 %v2700
    %v3321 = vunpack.c.l.b16 %v2701
    %v3322 = vunpack.c.h.b16 %v2701
    %v3323 = vunpack.c.l.b16 %v2702
    %v3324 = vunpack.c.h.b16 %v2702
    %v3325 = vunpack.c.l.b16 %v2703
    %v3326 = vunpack.c.h.b16 %v2703
    %v3327 = vunpack.c.l.b16 %v2704
    %v3328 = vunpack.c.h.b16 %v2704
    %v3329 = vunpack.c.l.b16 %v2705
    %v3330 = vunpack.c.h.b16 %v2705
    %v3331 = vunpack.c.l.b16 %v2706
    %v3332 = vunpack.c.h.b16 %v2706
    %v3333 = vunpack.c.l.b16 %v2707
    %v3334 = vunpack.c.h.b16 %v2707
    %v3335 = vunpack.c.l.b16 %v2708
    %v3336 = vunpack.c.h.b16 %v2708
    %v3337 = vunpack.c.l.b16 %v2709
    %v3338 = vunpack.c.h.b16 %v2709
    %v3339 = vunpack.c.l.b16 %v2710
    %v3340 = vunpack.c.h.b16 %v2710
    %v3341 = vunpack.c.l.b16 %v2711
    %v3342 = vunpack.c.h.b16 %v2711
    %v3343 = vunpack.c.l.b16 %v2712
    %v3344 = vunpack.c.h.b16 %v2712
    %v3345 = vunpack.c.l.b16 %v2713
    %v3346 = vunpack.c.h.b16 %v2713
    %v3347 = vunpack.c.l.b16 %v2714
    %v3348 = vunpack.c.h.b16 %v2714
    %v3349 = vunpack.c.l.b16 %v2715
    %v3350 = vunpack.c.h.b16 %v2715
    %v3351 = vunpack.c.l.b16 %v2716
    %v3352 = vunpack.c.h.b16 %v2716
    %v3353 = vunpack.c.l.b16 %v2717
    %v3354 = vunpack.c.h.b16 %v2717
    %v3355 = vunpack.c.l.b16 %v2718
    %v3356 = vunpack.c.h.b16 %v2718
    %v3357 = vunpack.c.l.b16 %v2719
    %v3358 = vunpack.c.h.b16 %v2719
    %v3359 = vunpack.c.l.b16 %v2720
    %v3360 = vunpack.c.h.b16 %v2720
    %v3361 = vunpack.c.l.b16 %v2721
    %v3362 = vunpack.c.h.b16 %v2721
    %v3363 = vunpack.c.l.b16 %v2722
    %v3364 = vunpack.c.h.b16 %v2722
    %v3365 = vunpack.c.l.b16 %v2723
    %v3366 = vunpack.c.h.b16 %v2723
    %v3367 = vunpack.c.l.b16 %v2724
    %v3368 = vunpack.c.h.b16 %v2724
    %v3369 = vunpack.c.l.b16 %v2725
    %v3370 = vunpack.c.h.b16 %v2725
    %v3371 = vunpack.c.l.b16 %v2726
    %v3372 = vunpack.c.h.b16 %v2726
    %v3373 = vunpack.c.l.b16 %v2727
    %v3374 = vunpack.c.h.b16 %v2727
    %v3375 = vunpack.c.l.b16 %v2728
    %v3376 = vunpack.c.h.b16 %v2728
    %v3377 = vunpack.c.l.b16 %v2729
    %v3378 = vunpack.c.h.b16 %v2729
    %v3379 = vunpack.c.l.b16 %v2730
    %v3380 = vunpack.c.h.b16 %v2730
    %v3381 = vunpack.c.l.b16 %v2731
    %v3382 = vunpack.c.h.b16 %v2731
    %v3383 = vunpack.c.l.b16 %v2732
    %v3384 = vunpack.c.h.b16 %v2732
    %v3385 = vunpack.c.l.b16 %v2733
    %v3386 = vunpack.c.h.b16 %v2733
    %v3387 = vunpack.c.l.b16 %v2734
    %v3388 = vunpack.c.h.b16 %v2734
    %v3389 = vunpack.c.l.b16 %v2735
    %v3390 = vunpack.c.h.b16 %v2735
    %v3391 = vunpack.c.l.b16 %v2736
    %v3392 = vunpack.c.h.b16 %v2736
    %v3393 = vunpack.c.l.b16 %v2737
    %v3394 = vunpack.c.h.b16 %v2737
    %v3395 = vunpack.c.l.b16 %v2738
    %v3396 = vunpack.c.h.b16 %v2738
    %v3397 = vunpack.c.l.b16 %v2739
    %v3398 = vunpack.c.h.b16 %v2739
    %v3399 = vunpack.c.l.b16 %v2740
    %v3400 = vunpack.c.h.b16 %v2740
    %v3401 = vunpack.c.l.b16 %v2741
    %v3402 = vunpack.c.h.b16 %v2741
    %v3403 = vunpack.c.l.b16 %v2742
    %v3404 = vunpack.c.h.b16 %v2742
    %v3405 = vunpack.c.l.b16 %v2743
    %v3406 = vunpack.c.h.b16 %v2743
    %v3407 = vunpack.c.l.b16 %v2744
    %v3408 = vunpack.c.h.b16 %v2744
    %v3409 = vunpack.c.l.b16 %v2745
    %v3410 = vunpack.c.h.b16 %v2745
    %v3411 = vunpack.c.l.b16 %v2746
    %v3412 = vunpack.c.h.b16 %v2746
    %v3413 = vunpack.c.l.b16 %v2747
    %v3414 = vunpack.c.h.b16 %v2747
    %v3415 = vunpack.c.l.b16 %v2748
    %v3416 = vunpack.c.h.b16 %v2748
    %v3417 = vunpack.c.l.b16 %v2749
    %v3418 = vunpack.c.h.b16 %v2749
    %v3419 = vunpack.c.l.b16 %v2750
    %v3420 = vunpack.c.h.b16 %v2750
    %v3421 = vunpack.c.l.b16 %v2751
    %v3422 = vunpack.c.h.b16 %v2751
    %v3423 = vunpack.c.l.b16 %v2752
    %v3424 = vunpack.c.h.b16 %v2752
    %v3425 = vunpack.c.l.b16 %v2753
    %v3426 = vunpack.c.h.b16 %v2753
    %v3427 = vunpack.c.l.b16 %v2754
    %v3428 = vunpack.c.h.b16 %v2754
    %v3429 = vunpack.c.l.b16 %v2755
    %v3430 = vunpack.c.h.b16 %v2755
    %v3431 = vunpack.c.l.b16 %v2756
    %v3432 = vunpack.c.h.b16 %v2756
    %v3433 = vunpack.c.l.b16 %v2757
    %v3434 = vunpack.c.h.b16 %v2757
    %v3435 = vunpack.c.l.b16 %v2758
    %v3436 = vunpack.c.h.b16 %v2758
    %v3437 = vunpack.c.l.b16 %v2759
    %v3438 = vunpack.c.h.b16 %v2759
    %v3439 = vunpack.c.l.b16 %v2760
    %v3440 = vunpack.c.h.b16 %v2760
    %v3441 = vunpack.c.l.b16 %v2761
    %v3442 = vunpack.c.h.b16 %v2761
    %v3443 = vunpack.c.l.b16 %v2762
    %v3444 = vunpack.c.h.b16 %v2762
    %v3445 = vunpack.c.l.b16 %v2763
    %v3446 = vunpack.c.h.b16 %v2763
    %v3447 = vunpack.c.l.b16 %v2764
    %v3448 = vunpack.c.h.b16 %v2764
    %v3449 = vunpack.c.l.b16 %v2765
    %v3450 = vunpack.c.h.b16 %v2765
    %v3451 = vunpack.c.l.b16 %v2766
    %v3452 = vunpack.c.h.b16 %v2766
    %v3453 = vunpack.c.l.b16 %v2767
    %v3454 = vunpack.c.h.b16 %v2767
    %v3455 = vunpack.c.l.b16 %v2768
    %v3456 = vunpack.c.h.b16 %v2768
    %v3457 = vunpack.c.l.b16 %v2769
    %v3458 = vunpack.c.h.b16 %v2769
    %v3459 = vunpack.c.l.b16 %v2770
    %v3460 = vunpack.c.h.b16 %v2770
    %v3461 = vunpack.c.l.b16 %v2771
    %v3462 = vunpack.c.h.b16 %v2771
    %v3463 = vunpack.c.l.b16 %v2772
    %v3464 = vunpack.c.h.b16 %v2772
    %v3465 = vunpack.c.l.b16 %v2773
    %v3466 = vunpack.c.h.b16 %v2773
    %v3467 = vunpack.c.l.b16 %v2774
    %v3468 = vunpack.c.h.b16 %v2774
    %v3469 = vunpack.c.l.b16 %v2775
    %v3470 = vunpack.c.h.b16 %v2775
    %v3471 = vunpack.c.l.b16 %v2776
    %v3472 = vunpack.c.h.b16 %v2776
    %v3473 = vunpack.c.l.b16 %v2777
    %v3474 = vunpack.c.h.b16 %v2777
    %v3475 = vunpack.c.l.b16 %v2778
    %v3476 = vunpack.c.h.b16 %v2778
    %v3477 = vunpack.c.l.b16 %v2779
    %v3478 = vunpack.c.h.b16 %v2779
    %v3479 = vunpack.c.l.b16 %v2780
    %v3480 = vunpack.c.h.b16 %v2780
    %v3481 = vunpack.c.l.b16 %v2781
    %v3482 = vunpack.c.h.b16 %v2781
    %v3483 = vunpack.c.l.b16 %v2782
    %v3484 = vunpack.c.h.b16 %v2782
    %v3485 = vunpack.c.l.b16 %v2783
    %v3486 = vunpack.c.h.b16 %v2783
    %v3487 = vunpack.c.l.b16 %v2784
    %v3488 = vunpack.c.h.b16 %v2784
    %v3489 = vunpack.c.l.b16 %v2785
    %v3490 = vunpack.c.h.b16 %v2785
    %v3491 = vunpack.c.l.b16 %v2786
    %v3492 = vunpack.c.h.b16 %v2786
    %v3493 = vunpack.c.l.b16 %v2787
    %v3494 = vunpack.c.h.b16 %v2787
    %v3495 = vunpack.c.l.b16 %v2788
    %v3496 = vunpack.c.h.b16 %v2788
    %v3497 = vunpack.c.l.b16 %v2789
    %v3498 = vunpack.c.h.b16 %v2789
    %v3499 = vunpack.c.l.b16 %v2790
    %v3500 = vunpack.c.h.b16 %v2790
    %v3501 = vunpack.c.l.b16 %v2791
    %v3502 = vunpack.c.h.b16 %v2791
    %v3503 = vunpack.c.l.b16 %v2792
    %v3504 = vunpack.c.h.b16 %v2792
    %v3505 = vunpack.c.l.b16 %v2793
    %v3506 = vunpack.c.h.b16 %v2793
    %v3507 = vunpack.c.l.b16 %v2794
    %v3508 = vunpack.c.h.b16 %v2794
    %v3509 = vunpack.c.l.b16 %v2795
    %v3510 = vunpack.c.h.b16 %v2795
    %v3511 = vunpack.c.l.b16 %v2796
    %v3512 = vunpack.c.h.b16 %v2796
    %v3513 = vunpack.c.l.b16 %v2797
    %v3514 = vunpack.c.h.b16 %v2797
    %v3515 = vunpack.c.l.b16 %v2798
    %v3516 = vunpack.c.h.b16 %v2798
    %v3517 = vunpack.c.l.b16 %v2799
    %v3518 = vunpack.c.h.b16 %v2799
    %v3519 = vunpack.c.l.b16 %v2800
    %v3520 = vunpack.c.h.b16 %v2800
    %v3521 = vunpack.c.l.b16 %v2801
    %v3522 = vunpack.c.h.b16 %v2801
    %v3523 = vunpack.c.l.b16 %v2802
    %v3524 = vunpack.c.h.b16 %v2802
    %v3525 = vunpack.c.l.b16 %v2803
    %v3526 = vunpack.c.h.b16 %v2803
    %v3527 = vunpack.c.l.b16 %v2804
    %v3528 = vunpack.c.h.b16 %v2804
    %v3529 = vunpack.c.l.b16 %v2805
    %v3530 = vunpack.c.h.b16 %v2805
    %v3531 = vunpack.c.l.b16 %v2806
    %v3532 = vunpack.c.h.b16 %v2806
    %v3533 = vunpack.c.l.b16 %v2807
    %v3534 = vunpack.c.h.b16 %v2807
    %v3535 = vunpack.c.l.b16 %v2808
    %v3536 = vunpack.c.h.b16 %v2808
    %v3537 = vunpack.c.l.b16 %v2809
    %v3538 = vunpack.c.h.b16 %v2809
    %v3539 = vunpack.c.l.b16 %v2810
    %v3540 = vunpack.c.h.b16 %v2810
    %v3541 = vunpack.c.l.b16 %v2811
    %v3542 = vunpack.c.h.b16 %v2811
    %v3543 = vunpack.c.l.b16 %v2812
    %v3544 = vunpack.c.h.b16 %v2812
    %v3545 = vunpack.c.l.b16 %v2813
    %v3546 = vunpack.c.h.b16 %v2813
    %v3547 = vunpack.c.l.b16 %v2814
    %v3548 = vunpack.c.h.b16 %v2814
    %v3549 = vunpack.c.l.b16 %v2815
    %v3550 = vunpack.c.h.b16 %v2815
    %v3551 = vunpack.c.l.b16 %v2816
    %v3552 = vunpack.c.h.b16 %v2816
    %v3553 = vunpack.c.l.b16 %v2817
    %v3554 = vunpack.c.h.b16 %v2817
    %v3555 = vunpack.c.l.b16 %v2818
    %v3556 = vunpack.c.h.b16 %v2818
    %v3557 = vunpack.c.l.b16 %v2819
    %v3558 = vunpack.c.h.b16 %v2819
    %v3559 = vunpack.c.l.b16 %v2820
    %v3560 = vunpack.c.h.b16 %v2820
    %v3561 = vunpack.c.l.b16 %v2821
    %v3562 = vunpack.c.h.b16 %v2821
    %v3563 = vunpack.c.l.b16 %v2822
    %v3564 = vunpack.c.h.b16 %v2822
    %v3565 = vunpack.c.l.b16 %v2823
    %v3566 = vunpack.c.h.b16 %v2823
    %v3567 = vunpack.c.l.b16 %v2824
    %v3568 = vunpack.c.h.b16 %v2824
    %v3569 = vunpack.c.l.b16 %v2825
    %v3570 = vunpack.c.h.b16 %v2825
    %v3571 = vunpack.c.l.b16 %v2826
    %v3572 = vunpack.c.h.b16 %v2826
    %v3573 = vunpack.c.l.b16 %v2827
    %v3574 = vunpack.c.h.b16 %v2827
    %v3575 = vunpack.c.l.b16 %v2828
    %v3576 = vunpack.c.h.b16 %v2828
    %v3577 = vunpack.c.l.b16 %v2829
    %v3578 = vunpack.c.h.b16 %v2829
    %v3579 = vunpack.c.l.b16 %v2830
    %v3580 = vunpack.c.h.b16 %v2830
    %v3581 = vunpack.c.l.b16 %v2831
    %v3582 = vunpack.c.h.b16 %v2831
    %v3583 = vunpack.c.l.b16 %v2832
    %v3584 = vunpack.c.h.b16 %v2832
    %v3585 = vunpack.c.l.b16 %v2833
    %v3586 = vunpack.c.h.b16 %v2833
    %v3587 = vunpack.c.l.b16 %v2834
    %v3588 = vunpack.c.h.b16 %v2834
    %v3589 = vunpack.c.l.b16 %v2835
    %v3590 = vunpack.c.h.b16 %v2835
    %v3591 = vunpack.c.l.b16 %v2836
    %v3592 = vunpack.c.h.b16 %v2836
    %v3593 = vunpack.c.l.b16 %v2837
    %v3594 = vunpack.c.h.b16 %v2837
    %v3595 = vunpack.c.l.b16 %v2838
    %v3596 = vunpack.c.h.b16 %v2838
    %v3597 = vunpack.c.l.b16 %v2839
    %v3598 = vunpack.c.h.b16 %v2839
    %v3599 = vunpack.c.l.b16 %v2840
    %v3600 = vunpack.c.h.b16 %v2840
    %v3601 = vunpack.c.l.b16 %v2841
    %v3602 = vunpack.c.h.b16 %v2841
    %v3603 = vunpack.c.l.b16 %v2842
    %v3604 = vunpack.c.h.b16 %v2842
    %v3605 = vunpack.c.l.b16 %v2843
    %v3606 = vunpack.c.h.b16 %v2843
    %v3607 = vunpack.c.l.b16 %v2844
    %v3608 = vunpack.c.h.b16 %v2844
    %v3609 = vunpack.c.l.b16 %v2845
    %v3610 = vunpack.c.h.b16 %v2845
    %v3611 = vunpack.c.l.b16 %v2846
    %v3612 = vunpack.c.h.b16 %v2846
    %v3613 = vunpack.c.l.b16 %v2847
    %v3614 = vunpack.c.h.b16 %v2847
    %v3615 = vunpack.c.l.b16 %v2848
    %v3616 = vunpack.c.h.b16 %v2848
    %v3617 = vunpack.c.l.b16 %v2849
    %v3618 = vunpack.c.h.b16 %v2849
    %v3619 = vunpack.c.l.b16 %v2850
    %v3620 = vunpack.c.h.b16 %v2850
    %v3621 = vunpack.c.l.b16 %v2851
    %v3622 = vunpack.c.h.b16 %v2851
    %v3623 = vunpack.c.l.b16 %v2852
    %v3624 = vunpack.c.h.b16 %v2852
    %v3625 = vunpack.c.l.b16 %v2853
    %v3626 = vunpack.c.h.b16 %v2853
    %v3627 = vunpack.c.l.b16 %v2854
    %v3628 = vunpack.c.h.b16 %v2854
    %v3629 = vunpack.c.l.b16 %v2855
    %v3630 = vunpack.c.h.b16 %v2855
    %v3631 = vunpack.c.l.b16 %v2856
    %v3632 = vunpack.c.h.b16 %v2856
    %v3633 = vunpack.c.l.b16 %v2857
    %v3634 = vunpack.c.h.b16 %v2857
    %v3635 = vunpack.c.l.b16 %v2858
    %v3636 = vunpack.c.h.b16 %v2858
    %v3637 = vunpack.c.l.b16 %v2859
    %v3638 = vunpack.c.h.b16 %v2859
    %v3639 = vunpack.c.l.b16 %v2860
    %v3640 = vunpack.c.h.b16 %v2860
    %v3641 = vunpack.c.l.b16 %v2861
    %v3642 = vunpack.c.h.b16 %v2861
    %v3643 = vunpack.c.l.b16 %v2862
    %v3644 = vunpack.c.h.b16 %v2862
    %v3645 = vunpack.c.l.b16 %v2863
    %v3646 = vunpack.c.h.b16 %v2863
    %v3647 = vunpack.c.l.b16 %v2864
    %v3648 = vunpack.c.h.b16 %v2864
    %v3649 = vunpack.c.l.b16 %v2865
    %v3650 = vunpack.c.h.b16 %v2865
    %v3651 = vunpack.c.l.b16 %v2866
    %v3652 = vunpack.c.h.b16 %v2866
    %v3653 = vunpack.c.l.b16 %v2867
    %v3654 = vunpack.c.h.b16 %v2867
    %v3655 = vunpack.c.l.b16 %v2868
    %v3656 = vunpack.c.h.b16 %v2868
    %v3657 = vunpack.c.l.b16 %v2869
    %v3658 = vunpack.c.h.b16 %v2869
    %v3659 = vunpack.c.l.b16 %v2870
    %v3660 = vunpack.c.h.b16 %v2870
    %v3661 = vunpack.c.l.b16 %v2871
    %v3662 = vunpack.c.h.b16 %v2871
    %v3663 = vunpack.c.l.b16 %v2872
    %v3664 = vunpack.c.h.b16 %v2872
    %v3665 = vunpack.c.l.b16 %v2873
    %v3666 = vunpack.c.h.b16 %v2873
    %v3667 = vunpack.c.l.b16 %v2874
    %v3668 = vunpack.c.h.b16 %v2874
    %v3669 = vunpack.c.l.b16 %v2875
    %v3670 = vunpack.c.h.b16 %v2875
    %v3671 = vunpack.c.l.b16 %v2876
    %v3672 = vunpack.c.h.b16 %v2876
    %v3673 = vunpack.c.l.b16 %v2877
    %v3674 = vunpack.c.h.b16 %v2877
    %v3675 = vunpack.c.l.b16 %v2878
    %v3676 = vunpack.c.h.b16 %v2878
    %v3677 = vunpack.c.l.b16 %v2879
    %v3678 = vunpack.c.h.b16 %v2879
    %v3679 = vunpack.c.l.b16 %v2880
    %v3680 = vunpack.c.h.b16 %v2880
    %v3681 = vunpack.c.l.b16 %v2881
    %v3682 = vunpack.c.h.b16 %v2881
    %v3683 = vunpack.c.l.b16 %v2882
    %v3684 = vunpack.c.h.b16 %v2882
    %v3685 = vunpack.c.l.b16 %v2883
    %v3686 = vunpack.c.h.b16 %v2883
    %v3687 = vunpack.c.l.b16 %v2884
    %v3688 = vunpack.c.h.b16 %v2884
    %v3689 = vunpack.c.l.b16 %v2885
    %v3690 = vunpack.c.h.b16 %v2885
    %v3691 = vunpack.c.l.b16 %v2886
    %v3692 = vunpack.c.h.b16 %v2886
    %v3693 = vunpack.c.l.b16 %v2887
    %v3694 = vunpack.c.h.b16 %v2887
    %v3695 = vunpack.c.l.b16 %v2888
    %v3696 = vunpack.c.h.b16 %v2888
    %v3697 = vunpack.c.l.b16 %v2889
    %v3698 = vunpack.c.h.b16 %v2889
    %v3699 = vunpack.c.l.b16 %v2890
    %v3700 = vunpack.c.h.b16 %v2890
    %v3701 = vunpack.c.l.b16 %v2891
    %v3702 = vunpack.c.h.b16 %v2891
    %v3703 = vunpack.c.l.b16 %v2892
    %v3704 = vunpack.c.h.b16 %v2892
    %v3705 = vunpack.c.l.b16 %v2893
    %v3706 = vunpack.c.h.b16 %v2893
    %v3707 = vunpack.c.l.b16 %v2894
    %v3708 = vunpack.c.h.b16 %v2894
    %v3709 = vunpack.c.l.b16 %v2895
    %v3710 = vunpack.c.h.b16 %v2895
    %v3711 = vunpack.c.l.b16 %v2896
    %v3712 = vunpack.c.h.b16 %v2896
    %v3713 = vunpack.c.l.b16 %v2897
    %v3714 = vunpack.c.h.b16 %v2897
    %v3715 = vunpack.c.l.b16 %v2898
    %v3716 = vunpack.c.h.b16 %v2898
    %v3717 = vpack.c.b16 %v3209, %v3205
    %v3718 = vpack.c.b16 %v3210, %v3206
    %v3719 = vpack.c.b16 %v3211, %v3207
    %v3720 = vpack.c.b16 %v3212, %v3208
    %v3721 = vpack.c.b16 %v3217, %v3213
    %v3722 = vpack.c.b16 %v3218, %v3214
    %v3723 = vpack.c.b16 %v3219, %v3215
    %v3724 = vpack.c.b16 %v3220, %v3216
    %v3725 = vpack.c.b16 %v3225, %v3221
    %v3726 = vpack.c.b16 %v3226, %v3222
    %v3727 = vpack.c.b16 %v3227, %v3223
    %v3728 = vpack.c.b16 %v3228, %v3224
    %v3729 = vpack.c.b16 %v3233, %v3229
    %v3730 = vpack.c.b16 %v3234, %v3230
    %v3731 = vpack.c.b16 %v3235, %v3231
    %v3732 = vpack.c.b16 %v3236, %v3232
    %v3733 = vpack.c.b16 %v3241, %v3237
    %v3734 = vpack.c.b16 %v3242, %v3238
    %v3735 = vpack.c.b16 %v3243, %v3239
    %v3736 = vpack.c.b16 %v3244, %v3240
    %v3737 = vpack.c.b16 %v3249, %v3245
    %v3738 = vpack.c.b16 %v3250, %v3246
    %v3739 = vpack.c.b16 %v3251, %v3247
    %v3740 = vpack.c.b16 %v3252, %v3248
    %v3741 = vpack.c.b16 %v3257, %v3253
    %v3742 = vpack.c.b16 %v3258, %v3254
    %v3743 = vpack.c.b16 %v3259, %v3255
    %v3744 = vpack.c.b16 %v3260, %v3256
    %v3745 = vpack.c.b16 %v3265, %v3261
    %v3746 = vpack.c.b16 %v3266, %v3262
    %v3747 = vpack.c.b16 %v3267, %v3263
    %v3748 = vpack.c.b16 %v3268, %v3264
    %v3749 = vpack.c.b16 %v3273, %v3269
    %v3750 = vpack.c.b16 %v3274, %v3270
    %v3751 = vpack.c.b16 %v3275, %v3271
    %v3752 = vpack.c.b16 %v3276, %v3272
    %v3753 = vpack.c.b16 %v3281, %v3277
    %v3754 = vpack.c.b16 %v3282, %v3278
    %v3755 = vpack.c.b16 %v3283, %v3279
    %v3756 = vpack.c.b16 %v3284, %v3280
    %v3757 = vpack.c.b16 %v3289, %v3285
    %v3758 = vpack.c.b16 %v3290, %v3286
    %v3759 = vpack.c.b16 %v3291, %v3287
    %v3760 = vpack.c.b16 %v3292, %v3288
    %v3761 = vpack.c.b16 %v3297, %v3293
    %v3762 = vpack.c.b16 %v3298, %v3294
    %v3763 = vpack.c.b16 %v3299, %v3295
    %v3764 = vpack.c.b16 %v3300, %v3296
    %v3765 = vpack.c.b16 %v3305, %v3301
    %v3766 = vpack.c.b16 %v3306, %v3302
    %v3767 = vpack.c.b16 %v3307, %v3303
    %v3768 = vpack.c.b16 %v3308, %v3304
    %v3769 = vpack.c.b16 %v3313, %v3309
    %v3770 = vpack.c.b16 %v3314, %v3310
    %v3771 = vpack.c.b16 %v3315, %v3311
    %v3772 = vpack.c.b16 %v3316, %v3312
    %v3773 = vpack.c.b16 %v3321, %v3317
    %v3774 = vpack.c.b16 %v3322, %v3318
    %v3775 = vpack.c.b16 %v3323, %v3319
    %v3776 = vpack.c.b16 %v3324, %v3320
    %v3777 = vpack.c.b16 %v3329, %v3325
    %v3778 = vpack.c.b16 %v3330, %v3326
    %v3779 = vpack.c.b16 %v3331, %v3327
    %v3780 = vpack.c.b16 %v3332, %v3328
    %v3781 = vpack.c.b16 %v3337, %v3333
    %v3782 = vpack.c.b16 %v3338, %v3334
    %v3783 = vpack.c.b16 %v3339, %v3335
    %v3784 = vpack.c.b16 %v3340, %v3336
    %v3785 = vpack.c.b16 %v3345, %v3341
    %v3786 = vpack.c.b16 %v3346, %v3342
    %v3787 = vpack.c.b16 %v3347, %v3343
    %v3788 = vpack.c.b16 %v3348, %v3344
    %v3789 = vpack.c.b16 %v3353, %v3349
    %v3790 = vpack.c.b16 %v3354, %v3350
    %v3791 = vpack.c.b16 %v3355, %v3351
    %v3792 = vpack.c.b16 %v3356, %v3352
    %v3793 = vpack.c.b16 %v3361, %v3357
    %v3794 = vpack.c.b16 %v3362, %v3358
    %v3795 = vpack.c.b16 %v3363, %v3359
    %v3796 = vpack.c.b16 %v3364, %v3360
    %v3797 = vpack.c.b16 %v3369, %v3365
    %v3798 = vpack.c.b16 %v3370, %v3366
    %v3799 = vpack.c.b16 %v3371, %v3367
    %v3800 = vpack.c.b16 %v3372, %v3368
    %v3801 = vpack.c.b16 %v3377, %v3373
    %v3802 = vpack.c.b16 %v3378, %v3374
    %v3803 = vpack.c.b16 %v3379, %v3375
    %v3804 = vpack.c.b16 %v3380, %v3376
    %v3805 = vpack.c.b16 %v3385, %v3381
    %v3806 = vpack.c.b16 %v3386, %v3382
    %v3807 = vpack.c.b16 %v3387, %v3383
    %v3808 = vpack.c.b16 %v3388, %v3384
    %v3809 = vpack.c.b16 %v3393, %v3389
    %v3810 = vpack.c.b16 %v3394, %v3390
    %v3811 = vpack.c.b16 %v3395, %v3391
    %v3812 = vpack.c.b16 %v3396, %v3392
    %v3813 = vpack.c.b16 %v3401, %v3397
    %v3814 = vpack.c.b16 %v3402, %v3398
    %v3815 = vpack.c.b16 %v3403, %v3399
    %v3816 = vpack.c.b16 %v3404, %v3400
    %v3817 = vpack.c.b16 %v3409, %v3405
    %v3818 = vpack.c.b16 %v3410, %v3406
    %v3819 = vpack.c.b16 %v3411, %v3407
    %v3820 = vpack.c.b16 %v3412, %v3408
    %v3821 = vpack.c.b16 %v3417, %v3413
    %v3822 = vpack.c.b16 %v3418, %v3414
    %v3823 = vpack.c.b16 %v3419, %v3415
    %v3824 = vpack.c.b16 %v3420, %v3416
    %v3825 = vpack.c.b16 %v3425, %v3421
    %v3826 = vpack.c.b16 %v3426, %v3422
    %v3827 = vpack.c.b16 %v3427, %v3423
    %v3828 = vpack.c.b16 %v3428, %v3424
    %v3829 = vpack.c.b16 %v3433, %v3429
    %v3830 = vpack.c.b16 %v3434, %v3430
    %v3831 = vpack.c.b16 %v3435, %v3431
    %v3832 = vpack.c.b16 %v3436, %v3432
    %v3833 = vpack.c.b16 %v3441, %v3437
    %v3834 = vpack.c.b16 %v3442, %v3438
    %v3835 = vpack.c.b16 %v3443, %v3439
    %v3836 = vpack.c.b16 %v3444, %v3440
    %v3837 = vpack.c.b16 %v3449, %v3445
    %v3838 = vpack.c.b16 %v3450, %v3446
    %v3839 = vpack.c.b16 %v3451, %v3447
    %v3840 = vpack.c.b16 %v3452, %v3448
    %v3841 = vpack.c.b16 %v3457, %v3453
    %v3842 = vpack.c.b16 %v3458, %v3454
    %v3843 = vpack.c.b16 %v3459, %v3455
    %v3844 = vpack.c.b16 %v3460, %v3456
    %v3845 = vpack.c.b16 %v3465, %v3461
    %v3846 = vpack.c.b16 %v3466, %v3462
    %v3847 = vpack.c.b16 %v3467, %v3463
    %v3848 = vpack.c.b16 %v3468, %v3464
    %v3849 = vpack.c.b16 %v3473, %v3469
    %v3850 = vpack.c.b16 %v3474, %v3470
    %v3851 = vpack.c.b16 %v3475, %v3471
    %v3852 = vpack.c.b16 %v3476, %v3472
    %v3853 = vpack.c.b16 %v3481, %v3477
    %v3854 = vpack.c.b16 %v3482, %v3478
    %v3855 = vpack.c.b16 %v3483, %v3479
    %v3856 = vpack.c.b16 %v3484, %v3480
    %v3857 = vpack.c.b16 %v3489, %v3485
    %v3858 = vpack.c.b16 %v3490, %v3486
    %v3859 = vpack.c.b16 %v3491, %v3487
    %v3860 = vpack.c.b16 %v3492, %v3488
    %v3861 = vpack.c.b16 %v3497, %v3493
    %v3862 = vpack.c.b16 %v3498, %v3494
    %v3863 = vpack.c.b16 %v3499, %v3495
    %v3864 = vpack.c.b16 %v3500, %v3496
    %v3865 = vpack.c.b16 %v3505, %v3501
    %v3866 = vpack.c.b16 %v3506, %v3502
    %v3867 = vpack.c.b16 %v3507, %v3503
    %v3868 = vpack.c.b16 %v3508, %v3504
    %v3869 = vpack.c.b16 %v3513, %v3509
    %v3870 = vpack.c.b16 %v3514, %v3510
    %v3871 = vpack.c.b16 %v3515, %v3511
    %v3872 = vpack.c.b16 %v3516, %v3512
    %v3873 = vpack.c.b16 %v3521, %v3517
    %v3874 = vpack.c.b16 %v3522, %v3518
    %v3875 = vpack.c.b16 %v3523, %v3519
    %v3876 = vpack.c.b16 %v3524, %v3520
    %v3877 = vpack.c.b16 %v3529, %v3525
    %v3878 = vpack.c.b16 %v3530, %v3526
    %v3879 = vpack.c.b16 %v3531, %v3527
    %v3880 = vpack.c.b16 %v3532, %v3528
    %v3881 = vpack.c.b16 %v3537, %v3533
    %v3882 = vpack.c.b16 %v3538, %v3534
    %v3883 = vpack.c.b16 %v3539, %v3535
    %v3884 = vpack.c.b16 %v3540, %v3536
    %v3885 = vpack.c.b16 %v3545, %v3541
    %v3886 = vpack.c.b16 %v3546, %v3542
    %v3887 = vpack.c.b16 %v3547, %v3543
    %v3888 = vpack.c.b16 %v3548, %v3544
    %v3889 = vpack.c.b16 %v3553, %v3549
    %v3890 = vpack.c.b16 %v3554, %v3550
    %v3891 = vpack.c.b16 %v3555, %v3551
    %v3892 = vpack.c.b16 %v3556, %v3552
    %v3893 = vpack.c.b16 %v3561, %v3557
    %v3894 = vpack.c.b16 %v3562, %v3558
    %v3895 = vpack.c.b16 %v3563, %v3559
    %v3896 = vpack.c.b16 %v3564, %v3560
    %v3897 = vpack.c.b16 %v3569, %v3565
    %v3898 = vpack.c.b16 %v3570, %v3566
    %v3899 = vpack.c.b16 %v3571, %v3567
    %v3900 = vpack.c.b16 %v3572, %v3568
    %v3901 = vpack.c.b16 %v3577, %v3573
    %v3902 = vpack.c.b16 %v3578, %v3574
    %v3903 = vpack.c.b16 %v3579, %v3575
    %v3904 = vpack.c.b16 %v3580, %v3576
    %v3905 = vpack.c.b16 %v3585, %v3581
    %v3906 = vpack.c.b16 %v3586, %v3582
    %v3907 = vpack.c.b16 %v3587, %v3583
    %v3908 = vpack.c.b16 %v3588, %v3584
    %v3909 = vpack.c.b16 %v3593, %v3589
    %v3910 = vpack.c.b16 %v3594, %v3590
    %v3911 = vpack.c.b16 %v3595, %v3591
    %v3912 = vpack.c.b16 %v3596, %v3592
    %v3913 = vpack.c.b16 %v3601, %v3597
    %v3914 = vpack.c.b16 %v3602, %v3598
    %v3915 = vpack.c.b16 %v3603, %v3599
    %v3916 = vpack.c.b16 %v3604, %v3600
    %v3917 = vpack.c.b16 %v3609, %v3605
    %v3918 = vpack.c.b16 %v3610, %v3606
    %v3919 = vpack.c.b16 %v3611, %v3607
    %v3920 = vpack.c.b16 %v3612, %v3608
    %v3921 = vpack.c.b16 %v3617, %v3613
    %v3922 = vpack.c.b16 %v3618, %v3614
    %v3923 = vpack.c.b16 %v3619, %v3615
    %v3924 = vpack.c.b16 %v3620, %v3616
    %v3925 = vpack.c.b16 %v3625, %v3621
    %v3926 = vpack.c.b16 %v3626, %v3622
    %v3927 = vpack.c.b16 %v3627, %v3623
    %v3928 = vpack.c.b16 %v3628, %v3624
    %v3929 = vpack.c.b16 %v3633, %v3629
    %v3930 = vpack.c.b16 %v3634, %v3630
    %v3931 = vpack.c.b16 %v3635, %v3631
    %v3932 = vpack.c.b16 %v3636, %v3632
    %v3933 = vpack.c.b16 %v3641, %v3637
    %v3934 = vpack.c.b16 %v3642, %v3638
    %v3935 = vpack.c.b16 %v3643, %v3639
    %v3936 = vpack.c.b16 %v3644, %v3640
    %v3937 = vpack.c.b16 %v3649, %v3645
    %v3938 = vpack.c.b16 %v3650, %v3646
    %v3939 = vpack.c.b16 %v3651, %v3647
    %v3940 = vpack.c.b16 %v3652, %v3648
    %v3941 = vpack.c.b16 %v3657, %v3653
    %v3942 = vpack.c.b16 %v3658, %v3654
    %v3943 = vpack.c.b16 %v3659, %v3655
    %v3944 = vpack.c.b16 %v3660, %v3656
    %v3945 = vpack.c.b16 %v3665, %v3661
    %v3946 = vpack.c.b16 %v3666, %v3662
    %v3947 = vpack.c.b16 %v3667, %v3663
    %v3948 = vpack.c.b16 %v3668, %v3664
    %v3949 = vpack.c.b16 %v3673, %v3669
    %v3950 = vpack.c.b16 %v3674, %v3670
    %v3951 = vpack.c.b16 %v3675, %v3671
    %v3952 = vpack.c.b16 %v3676, %v3672
    %v3953 = vpack.c.b16 %v3681, %v3677
    %v3954 = vpack.c.b16 %v3682, %v3678
    %v3955 = vpack.c.b16 %v3683, %v3679
    %v3956 = vpack.c.b16 %v3684, %v3680
    %v3957 = vpack.c.b16 %v3689, %v3685
    %v3958 = vpack.c.b16 %v3690, %v3686
    %v3959 = vpack.c.b16 %v3691, %v3687
    %v3960 = vpack.c.b16 %v3692, %v3688
    %v3961 = vpack.c.b16 %v3697, %v3693
    %v3962 = vpack.c.b16 %v3698, %v3694
    %v3963 = vpack.c.b16 %v3699, %v3695
    %v3964 = vpack.c.b16 %v3700, %v3696
    %v3965 = vpack.c.b16 %v3705, %v3701
    %v3966 = vpack.c.b16 %v3706, %v3702
    %v3967 = vpack.c.b16 %v3707, %v3703
    %v3968 = vpack.c.b16 %v3708, %v3704
    %v3969 = vpack.c.b16 %v3713, %v3709
    %v3970 = vpack.c.b16 %v3714, %v3710
    %v3971 = vpack.c.b16 %v3715, %v3711
    %v3972 = vpack.c.b16 %v3716, %v3712
    %4229 = vmatpush.bf16.msra.mxu0 %v3745
    %4230 = vmatpush.bf16.msra.mxu0 %v3741
    %4231 = vmatpush.bf16.msra.mxu0 %v3737
    %4232 = vmatpush.bf16.msra.mxu0 %v3733
    %4233 = vmatpush.bf16.msra.mxu0 %v3729
    %4234 = vmatpush.bf16.msra.mxu0 %v3725
    %4235 = vmatpush.bf16.msra.mxu0 %v3721
    %4236 = vmatpush.bf16.msra.mxu0 %v3717
    %4237 = vmatmul.bf16.gmra.mxu0 %v2933
    %v4238 = vpop.f32.mrf.mxu0
    %v4239 = vadd.f32 %v2901, %v4238
    %v4240 = vpop.f32.mrf.mxu0
    %v4241 = vadd.f32 %v2901, %v4240
    %4242 = vdwg.mxu0
    %4243 = vmatpush.bf16.msra.mxu0 %v3777
    %4244 = vmatpush.bf16.msra.mxu0 %v3773
    %4245 = vmatpush.bf16.msra.mxu0 %v3769
    %4246 = vmatpush.bf16.msra.mxu0 %v3765
    %4247 = vmatpush.bf16.msra.mxu0 %v3761
    %4248 = vmatpush.bf16.msra.mxu0 %v3757
    %4249 = vmatpush.bf16.msra.mxu0 %v3753
    %4250 = vmatpush.bf16.msra.mxu0 %v3749
    %4251 = vmatmul.bf16.gmra.mxu0 %v2934
    %v4252 = vpop.f32.mrf.mxu0
    %v4253 = vadd.f32 %v4239, %v4252
    %v4254 = vpop.f32.mrf.mxu0
    %v4255 = vadd.f32 %v4241, %v4254
    %4256 = vdwg.mxu0
    %4257 = vmatpush.bf16.msra.mxu0 %v3809
    %4258 = vmatpush.bf16.msra.mxu0 %v3805
    %4259 = vmatpush.bf16.msra.mxu0 %v3801
    %4260 = vmatpush.bf16.msra.mxu0 %v3797
    %4261 = vmatpush.bf16.msra.mxu0 %v3793
    %4262 = vmatpush.bf16.msra.mxu0 %v3789
    %4263 = vmatpush.bf16.msra.mxu0 %v3785
    %4264 = vmatpush.bf16.msra.mxu0 %v3781
    %4265 = vmatmul.bf16.gmra.mxu0 %v2935
    %v4266 = vpop.f32.mrf.mxu0
    %v4267 = vadd.f32 %v4253, %v4266
    %v4268 = vpop.f32.mrf.mxu0
    %v4269 = vadd.f32 %v4255, %v4268
    %4270 = vdwg.mxu0
    %4271 = vmatpush.bf16.msra.mxu0 %v3841
    %4272 = vmatpush.bf16.msra.mxu0 %v3837
    %4273 = vmatpush.bf16.msra.mxu0 %v3833
    %4274 = vmatpush.bf16.msra.mxu0 %v3829
    %4275 = vmatpush.bf16.msra.mxu0 %v3825
    %4276 = vmatpush.bf16.msra.mxu0 %v3821
    %4277 = vmatpush.bf16.msra.mxu0 %v3817
    %4278 = vmatpush.bf16.msra.mxu0 %v3813
    %4279 = vmatmul.bf16.gmra.mxu0 %v2936
    %v4280 = vpop.f32.mrf.mxu0
    %v4281 = vadd.f32 %v4267, %v4280
    %v4282 = vpop.f32.mrf.mxu0
    %v4283 = vadd.f32 %v4269, %v4282
    %4284 = vdwg.mxu0
    %4285 = vmatpush.bf16.msra.mxu0 %v3873
    %4286 = vmatpush.bf16.msra.mxu0 %v3869
    %4287 = vmatpush.bf16.msra.mxu0 %v3865
    %4288 = vmatpush.bf16.msra.mxu0 %v3861
    %4289 = vmatpush.bf16.msra.mxu0 %v3857
    %4290 = vmatpush.bf16.msra.mxu0 %v3853
    %4291 = vmatpush.bf16.msra.mxu0 %v3849
    %4292 = vmatpush.bf16.msra.mxu0 %v3845
    %4293 = vmatmul.bf16.gmra.mxu0 %v2937
    %v4294 = vpop.f32.mrf.mxu0
    %v4295 = vadd.f32 %v4281, %v4294
    %v4296 = vpop.f32.mrf.mxu0
    %v4297 = vadd.f32 %v4283, %v4296
    %4298 = vdwg.mxu0
    %4299 = vmatpush.bf16.msra.mxu0 %v3905
    %4300 = vmatpush.bf16.msra.mxu0 %v3901
    %4301 = vmatpush.bf16.msra.mxu0 %v3897
    %4302 = vmatpush.bf16.msra.mxu0 %v3893
    %4303 = vmatpush.bf16.msra.mxu0 %v3889
    %4304 = vmatpush.bf16.msra.mxu0 %v3885
    %4305 = vmatpush.bf16.msra.mxu0 %v3881
    %4306 = vmatpush.bf16.msra.mxu0 %v3877
    %4307 = vmatmul.bf16.gmra.mxu0 %v2938
    %v4308 = vpop.f32.mrf.mxu0
    %v4309 = vadd.f32 %v4295, %v4308
    %v4310 = vpop.f32.mrf.mxu0
    %v4311 = vadd.f32 %v4297, %v4310
    %4312 = vdwg.mxu0
    %4313 = vmatpush.bf16.msra.mxu0 %v3937
    %4314 = vmatpush.bf16.msra.mxu0 %v3933
    %4315 = vmatpush.bf16.msra.mxu0 %v3929
    %4316 = vmatpush.bf16.msra.mxu0 %v3925
    %4317 = vmatpush.bf16.msra.mxu0 %v3921
    %4318 = vmatpush.bf16.msra.mxu0 %v3917
    %4319 = vmatpush.bf16.msra.mxu0 %v3913
    %4320 = vmatpush.bf16.msra.mxu0 %v3909
    %4321 = vmatmul.bf16.gmra.mxu0 %v2939
    %v4322 = vpop.f32.mrf.mxu0
    %v4323 = vadd.f32 %v4309, %v4322
    %v4324 = vpop.f32.mrf.mxu0
    %v4325 = vadd.f32 %v4311, %v4324
    %4326 = vdwg.mxu0
    %4327 = vmatpush.bf16.msra.mxu0 %v3969
    %4328 = vmatpush.bf16.msra.mxu0 %v3965
    %4329 = vmatpush.bf16.msra.mxu0 %v3961
    %4330 = vmatpush.bf16.msra.mxu0 %v3957
    %4331 = vmatpush.bf16.msra.mxu0 %v3953
    %4332 = vmatpush.bf16.msra.mxu0 %v3949
    %4333 = vmatpush.bf16.msra.mxu0 %v3945
    %4334 = vmatpush.bf16.msra.mxu0 %v3941
    %4335 = vmatmul.bf16.gmra.mxu0 %v2940
    %v4336 = vpop.f32.mrf.mxu0
    %v4337 = vadd.f32 %v4323, %v4336
    %v4338 = vpop.f32.mrf.mxu0
    %v4339 = vadd.f32 %v4325, %v4338
    %4340 = vdwg.mxu0
    %4341 = vmatpush.bf16.msra.mxu0 %v3746
    %4342 = vmatpush.bf16.msra.mxu0 %v3742
    %4343 = vmatpush.bf16.msra.mxu0 %v3738
    %4344 = vmatpush.bf16.msra.mxu0 %v3734
    %4345 = vmatpush.bf16.msra.mxu0 %v3730
    %4346 = vmatpush.bf16.msra.mxu0 %v3726
    %4347 = vmatpush.bf16.msra.mxu0 %v3722
    %4348 = vmatpush.bf16.msra.mxu0 %v3718
    %4349 = vmatmul.bf16.gmra.mxu0 %v2933
    %v4350 = vpop.f32.mrf.mxu0
    %v4351 = vadd.f32 %v2902, %v4350
    %v4352 = vpop.f32.mrf.mxu0
    %v4353 = vadd.f32 %v2902, %v4352
    %4354 = vdwg.mxu0
    %4355 = vmatpush.bf16.msra.mxu0 %v3778
    %4356 = vmatpush.bf16.msra.mxu0 %v3774
    %4357 = vmatpush.bf16.msra.mxu0 %v3770
    %4358 = vmatpush.bf16.msra.mxu0 %v3766
    %4359 = vmatpush.bf16.msra.mxu0 %v3762
    %4360 = vmatpush.bf16.msra.mxu0 %v3758
    %4361 = vmatpush.bf16.msra.mxu0 %v3754
    %4362 = vmatpush.bf16.msra.mxu0 %v3750
    %4363 = vmatmul.bf16.gmra.mxu0 %v2934
    %v4364 = vpop.f32.mrf.mxu0
    %v4365 = vadd.f32 %v4351, %v4364
    %v4366 = vpop.f32.mrf.mxu0
    %v4367 = vadd.f32 %v4353, %v4366
    %4368 = vdwg.mxu0
    %4369 = vmatpush.bf16.msra.mxu0 %v3810
    %4370 = vmatpush.bf16.msra.mxu0 %v3806
    %4371 = vmatpush.bf16.msra.mxu0 %v3802
    %4372 = vmatpush.bf16.msra.mxu0 %v3798
    %4373 = vmatpush.bf16.msra.mxu0 %v3794
    %4374 = vmatpush.bf16.msra.mxu0 %v3790
    %4375 = vmatpush.bf16.msra.mxu0 %v3786
    %4376 = vmatpush.bf16.msra.mxu0 %v3782
    %4377 = vmatmul.bf16.gmra.mxu0 %v2935
    %v4378 = vpop.f32.mrf.mxu0
    %v4379 = vadd.f32 %v4365, %v4378
    %v4380 = vpop.f32.mrf.mxu0
    %v4381 = vadd.f32 %v4367, %v4380
    %4382 = vdwg.mxu0
    %4383 = vmatpush.bf16.msra.mxu0 %v3842
    %4384 = vmatpush.bf16.msra.mxu0 %v3838
    %4385 = vmatpush.bf16.msra.mxu0 %v3834
    %4386 = vmatpush.bf16.msra.mxu0 %v3830
    %4387 = vmatpush.bf16.msra.mxu0 %v3826
    %4388 = vmatpush.bf16.msra.mxu0 %v3822
    %4389 = vmatpush.bf16.msra.mxu0 %v3818
    %4390 = vmatpush.bf16.msra.mxu0 %v3814
    %4391 = vmatmul.bf16.gmra.mxu0 %v2936
    %v4392 = vpop.f32.mrf.mxu0
    %v4393 = vadd.f32 %v4379, %v4392
    %v4394 = vpop.f32.mrf.mxu0
    %v4395 = vadd.f32 %v4381, %v4394
    %4396 = vdwg.mxu0
    %4397 = vmatpush.bf16.msra.mxu0 %v3874
    %4398 = vmatpush.bf16.msra.mxu0 %v3870
    %4399 = vmatpush.bf16.msra.mxu0 %v3866
    %4400 = vmatpush.bf16.msra.mxu0 %v3862
    %4401 = vmatpush.bf16.msra.mxu0 %v3858
    %4402 = vmatpush.bf16.msra.mxu0 %v3854
    %4403 = vmatpush.bf16.msra.mxu0 %v3850
    %4404 = vmatpush.bf16.msra.mxu0 %v3846
    %4405 = vmatmul.bf16.gmra.mxu0 %v2937
    %v4406 = vpop.f32.mrf.mxu0
    %v4407 = vadd.f32 %v4393, %v4406
    %v4408 = vpop.f32.mrf.mxu0
    %v4409 = vadd.f32 %v4395, %v4408
    %4410 = vdwg.mxu0
    %4411 = vmatpush.bf16.msra.mxu0 %v3906
    %4412 = vmatpush.bf16.msra.mxu0 %v3902
    %4413 = vmatpush.bf16.msra.mxu0 %v3898
    %4414 = vmatpush.bf16.msra.mxu0 %v3894
    %4415 = vmatpush.bf16.msra.mxu0 %v3890
    %4416 = vmatpush.bf16.msra.mxu0 %v3886
    %4417 = vmatpush.bf16.msra.mxu0 %v3882
    %4418 = vmatpush.bf16.msra.mxu0 %v3878
    %4419 = vmatmul.bf16.gmra.mxu0 %v2938
    %v4420 = vpop.f32.mrf.mxu0
    %v4421 = vadd.f32 %v4407, %v4420
    %v4422 = vpop.f32.mrf.mxu0
    %v4423 = vadd.f32 %v4409, %v4422
    %4424 = vdwg.mxu0
    %4425 = vmatpush.bf16.msra.mxu0 %v3938
    %4426 = vmatpush.bf16.msra.mxu0 %v3934
    %4427 = vmatpush.bf16.msra.mxu0 %v3930
    %4428 = vmatpush.bf16.msra.mxu0 %v3926
    %4429 = vmatpush.bf16.msra.mxu0 %v3922
    %4430 = vmatpush.bf16.msra.mxu0 %v3918
    %4431 = vmatpush.bf16.msra.mxu0 %v3914
    %4432 = vmatpush.bf16.msra.mxu0 %v3910
    %4433 = vmatmul.bf16.gmra.mxu0 %v2939
    %v4434 = vpop.f32.mrf.mxu0
    %v4435 = vadd.f32 %v4421, %v4434
    %v4436 = vpop.f32.mrf.mxu0
    %v4437 = vadd.f32 %v4423, %v4436
    %4438 = vdwg.mxu0
    %4439 = vmatpush.bf16.msra.mxu0 %v3970
    %4440 = vmatpush.bf16.msra.mxu0 %v3966
    %4441 = vmatpush.bf16.msra.mxu0 %v3962
    %4442 = vmatpush.bf16.msra.mxu0 %v3958
    %4443 = vmatpush.bf16.msra.mxu0 %v3954
    %4444 = vmatpush.bf16.msra.mxu0 %v3950
    %4445 = vmatpush.bf16.msra.mxu0 %v3946
    %4446 = vmatpush.bf16.msra.mxu0 %v3942
    %4447 = vmatmul.bf16.gmra.mxu0 %v2940
    %v4448 = vpop.f32.mrf.mxu0
    %v4449 = vadd.f32 %v4435, %v4448
    %v4450 = vpop.f32.mrf.mxu0
    %v4451 = vadd.f32 %v4437, %v4450
    %4452 = vdwg.mxu0
    %4453 = vmatpush.bf16.msra.mxu0 %v3747
    %4454 = vmatpush.bf16.msra.mxu0 %v3743
    %4455 = vmatpush.bf16.msra.mxu0 %v3739
    %4456 = vmatpush.bf16.msra.mxu0 %v3735
    %4457 = vmatpush.bf16.msra.mxu0 %v3731
    %4458 = vmatpush.bf16.msra.mxu0 %v3727
    %4459 = vmatpush.bf16.msra.mxu0 %v3723
    %4460 = vmatpush.bf16.msra.mxu0 %v3719
    %4461 = vmatmul.bf16.gmra.mxu0 %v2933
    %v4462 = vpop.f32.mrf.mxu0
    %v4463 = vadd.f32 %v2903, %v4462
    %v4464 = vpop.f32.mrf.mxu0
    %v4465 = vadd.f32 %v2903, %v4464
    %4466 = vdwg.mxu0
    %4467 = vmatpush.bf16.msra.mxu0 %v3779
    %4468 = vmatpush.bf16.msra.mxu0 %v3775
    %4469 = vmatpush.bf16.msra.mxu0 %v3771
    %4470 = vmatpush.bf16.msra.mxu0 %v3767
    %4471 = vmatpush.bf16.msra.mxu0 %v3763
    %4472 = vmatpush.bf16.msra.mxu0 %v3759
    %4473 = vmatpush.bf16.msra.mxu0 %v3755
    %4474 = vmatpush.bf16.msra.mxu0 %v3751
    %4475 = vmatmul.bf16.gmra.mxu0 %v2934
    %v4476 = vpop.f32.mrf.mxu0
    %v4477 = vadd.f32 %v4463, %v4476
    %v4478 = vpop.f32.mrf.mxu0
    %v4479 = vadd.f32 %v4465, %v4478
    %4480 = vdwg.mxu0
    %4481 = vmatpush.bf16.msra.mxu0 %v3811
    %4482 = vmatpush.bf16.msra.mxu0 %v3807
    %4483 = vmatpush.bf16.msra.mxu0 %v3803
    %4484 = vmatpush.bf16.msra.mxu0 %v3799
    %4485 = vmatpush.bf16.msra.mxu0 %v3795
    %4486 = vmatpush.bf16.msra.mxu0 %v3791
    %4487 = vmatpush.bf16.msra.mxu0 %v3787
    %4488 = vmatpush.bf16.msra.mxu0 %v3783
    %4489 = vmatmul.bf16.gmra.mxu0 %v2935
    %v4490 = vpop.f32.mrf.mxu0
    %v4491 = vadd.f32 %v4477, %v4490
    %v4492 = vpop.f32.mrf.mxu0
    %v4493 = vadd.f32 %v4479, %v4492
    %4494 = vdwg.mxu0
    %4495 = vmatpush.bf16.msra.mxu0 %v3843
    %4496 = vmatpush.bf16.msra.mxu0 %v3839
    %4497 = vmatpush.bf16.msra.mxu0 %v3835
    %4498 = vmatpush.bf16.msra.mxu0 %v3831
    %4499 = vmatpush.bf16.msra.mxu0 %v3827
    %4500 = vmatpush.bf16.msra.mxu0 %v3823
    %4501 = vmatpush.bf16.msra.mxu0 %v3819
    %4502 = vmatpush.bf16.msra.mxu0 %v3815
    %4503 = vmatmul.bf16.gmra.mxu0 %v2936
    %v4504 = vpop.f32.mrf.mxu0
    %v4505 = vadd.f32 %v4491, %v4504
    %v4506 = vpop.f32.mrf.mxu0
    %v4507 = vadd.f32 %v4493, %v4506
    %4508 = vdwg.mxu0
    %4509 = vmatpush.bf16.msra.mxu0 %v3875
    %4510 = vmatpush.bf16.msra.mxu0 %v3871
    %4511 = vmatpush.bf16.msra.mxu0 %v3867
    %4512 = vmatpush.bf16.msra.mxu0 %v3863
    %4513 = vmatpush.bf16.msra.mxu0 %v3859
    %4514 = vmatpush.bf16.msra.mxu0 %v3855
    %4515 = vmatpush.bf16.msra.mxu0 %v3851
    %4516 = vmatpush.bf16.msra.mxu0 %v3847
    %4517 = vmatmul.bf16.gmra.mxu0 %v2937
    %v4518 = vpop.f32.mrf.mxu0
    %v4519 = vadd.f32 %v4505, %v4518
    %v4520 = vpop.f32.mrf.mxu0
    %v4521 = vadd.f32 %v4507, %v4520
    %4522 = vdwg.mxu0
    %4523 = vmatpush.bf16.msra.mxu0 %v3907
    %4524 = vmatpush.bf16.msra.mxu0 %v3903
    %4525 = vmatpush.bf16.msra.mxu0 %v3899
    %4526 = vmatpush.bf16.msra.mxu0 %v3895
    %4527 = vmatpush.bf16.msra.mxu0 %v3891
    %4528 = vmatpush.bf16.msra.mxu0 %v3887
    %4529 = vmatpush.bf16.msra.mxu0 %v3883
    %4530 = vmatpush.bf16.msra.mxu0 %v3879
    %4531 = vmatmul.bf16.gmra.mxu0 %v2938
    %v4532 = vpop.f32.mrf.mxu0
    %v4533 = vadd.f32 %v4519, %v4532
    %v4534 = vpop.f32.mrf.mxu0
    %v4535 = vadd.f32 %v4521, %v4534
    %4536 = vdwg.mxu0
    %4537 = vmatpush.bf16.msra.mxu0 %v3939
    %4538 = vmatpush.bf16.msra.mxu0 %v3935
    %4539 = vmatpush.bf16.msra.mxu0 %v3931
    %4540 = vmatpush.bf16.msra.mxu0 %v3927
    %4541 = vmatpush.bf16.msra.mxu0 %v3923
    %4542 = vmatpush.bf16.msra.mxu0 %v3919
    %4543 = vmatpush.bf16.msra.mxu0 %v3915
    %4544 = vmatpush.bf16.msra.mxu0 %v3911
    %4545 = vmatmul.bf16.gmra.mxu0 %v2939
    %v4546 = vpop.f32.mrf.mxu0
    %v4547 = vadd.f32 %v4533, %v4546
    %v4548 = vpop.f32.mrf.mxu0
    %v4549 = vadd.f32 %v4535, %v4548
    %4550 = vdwg.mxu0
    %4551 = vmatpush.bf16.msra.mxu0 %v3971
    %4552 = vmatpush.bf16.msra.mxu0 %v3967
    %4553 = vmatpush.bf16.msra.mxu0 %v3963
    %4554 = vmatpush.bf16.msra.mxu0 %v3959
    %4555 = vmatpush.bf16.msra.mxu0 %v3955
    %4556 = vmatpush.bf16.msra.mxu0 %v3951
    %4557 = vmatpush.bf16.msra.mxu0 %v3947
    %4558 = vmatpush.bf16.msra.mxu0 %v3943
    %4559 = vmatmul.bf16.gmra.mxu0 %v2940
    %v4560 = vpop.f32.mrf.mxu0
    %v4561 = vadd.f32 %v4547, %v4560
    %v4562 = vpop.f32.mrf.mxu0
    %v4563 = vadd.f32 %v4549, %v4562
    %4564 = vdwg.mxu0
    %4565 = vmatpush.bf16.msra.mxu0 %v3748
    %4566 = vmatpush.bf16.msra.mxu0 %v3744
    %4567 = vmatpush.bf16.msra.mxu0 %v3740
    %4568 = vmatpush.bf16.msra.mxu0 %v3736
    %4569 = vmatpush.bf16.msra.mxu0 %v3732
    %4570 = vmatpush.bf16.msra.mxu0 %v3728
    %4571 = vmatpush.bf16.msra.mxu0 %v3724
    %4572 = vmatpush.bf16.msra.mxu0 %v3720
    %4573 = vmatmul.bf16.gmra.mxu0 %v2933
    %v4574 = vpop.f32.mrf.mxu0
    %v4575 = vadd.f32 %v2904, %v4574
    %v4576 = vpop.f32.mrf.mxu0
    %v4577 = vadd.f32 %v2904, %v4576
    %4578 = vdwg.mxu0
    %4579 = vmatpush.bf16.msra.mxu0 %v3780
    %4580 = vmatpush.bf16.msra.mxu0 %v3776
    %4581 = vmatpush.bf16.msra.mxu0 %v3772
    %4582 = vmatpush.bf16.msra.mxu0 %v3768
    %4583 = vmatpush.bf16.msra.mxu0 %v3764
    %4584 = vmatpush.bf16.msra.mxu0 %v3760
    %4585 = vmatpush.bf16.msra.mxu0 %v3756
    %4586 = vmatpush.bf16.msra.mxu0 %v3752
    %4587 = vmatmul.bf16.gmra.mxu0 %v2934
    %v4588 = vpop.f32.mrf.mxu0
    %v4589 = vadd.f32 %v4575, %v4588
    %v4590 = vpop.f32.mrf.mxu0
    %v4591 = vadd.f32 %v4577, %v4590
    %4592 = vdwg.mxu0
    %4593 = vmatpush.bf16.msra.mxu0 %v3812
    %4594 = vmatpush.bf16.msra.mxu0 %v3808
    %4595 = vmatpush.bf16.msra.mxu0 %v3804
    %4596 = vmatpush.bf16.msra.mxu0 %v3800
    %4597 = vmatpush.bf16.msra.mxu0 %v3796
    %4598 = vmatpush.bf16.msra.mxu0 %v3792
    %4599 = vmatpush.bf16.msra.mxu0 %v3788
    %4600 = vmatpush.bf16.msra.mxu0 %v3784
    %4601 = vmatmul.bf16.gmra.mxu0 %v2935
    %v4602 = vpop.f32.mrf.mxu0
    %v4603 = vadd.f32 %v4589, %v4602
    %v4604 = vpop.f32.mrf.mxu0
    %v4605 = vadd.f32 %v4591, %v4604
    %4606 = vdwg.mxu0
    %4607 = vmatpush.bf16.msra.mxu0 %v3844
    %4608 = vmatpush.bf16.msra.mxu0 %v3840
    %4609 = vmatpush.bf16.msra.mxu0 %v3836
    %4610 = vmatpush.bf16.msra.mxu0 %v3832
    %4611 = vmatpush.bf16.msra.mxu0 %v3828
    %4612 = vmatpush.bf16.msra.mxu0 %v3824
    %4613 = vmatpush.bf16.msra.mxu0 %v3820
    %4614 = vmatpush.bf16.msra.mxu0 %v3816
    %4615 = vmatmul.bf16.gmra.mxu0 %v2936
    %v4616 = vpop.f32.mrf.mxu0
    %v4617 = vadd.f32 %v4603, %v4616
    %v4618 = vpop.f32.mrf.mxu0
    %v4619 = vadd.f32 %v4605, %v4618
    %4620 = vdwg.mxu0
    %4621 = vmatpush.bf16.msra.mxu0 %v3876
    %4622 = vmatpush.bf16.msra.mxu0 %v3872
    %4623 = vmatpush.bf16.msra.mxu0 %v3868
    %4624 = vmatpush.bf16.msra.mxu0 %v3864
    %4625 = vmatpush.bf16.msra.mxu0 %v3860
    %4626 = vmatpush.bf16.msra.mxu0 %v3856
    %4627 = vmatpush.bf16.msra.mxu0 %v3852
    %4628 = vmatpush.bf16.msra.mxu0 %v3848
    %4629 = vmatmul.bf16.gmra.mxu0 %v2937
    %v4630 = vpop.f32.mrf.mxu0
    %v4631 = vadd.f32 %v4617, %v4630
    %v4632 = vpop.f32.mrf.mxu0
    %v4633 = vadd.f32 %v4619, %v4632
    %4634 = vdwg.mxu0
    %4635 = vmatpush.bf16.msra.mxu0 %v3908
    %4636 = vmatpush.bf16.msra.mxu0 %v3904
    %4637 = vmatpush.bf16.msra.mxu0 %v3900
    %4638 = vmatpush.bf16.msra.mxu0 %v3896
    %4639 = vmatpush.bf16.msra.mxu0 %v3892
    %4640 = vmatpush.bf16.msra.mxu0 %v3888
    %4641 = vmatpush.bf16.msra.mxu0 %v3884
    %4642 = vmatpush.bf16.msra.mxu0 %v3880
    %4643 = vmatmul.bf16.gmra.mxu0 %v2938
    %v4644 = vpop.f32.mrf.mxu0
    %v4645 = vadd.f32 %v4631, %v4644
    %v4646 = vpop.f32.mrf.mxu0
    %v4647 = vadd.f32 %v4633, %v4646
    %4648 = vdwg.mxu0
    %4649 = vmatpush.bf16.msra.mxu0 %v3940
    %4650 = vmatpush.bf16.msra.mxu0 %v3936
    %4651 = vmatpush.bf16.msra.mxu0 %v3932
    %4652 = vmatpush.bf16.msra.mxu0 %v3928
    %4653 = vmatpush.bf16.msra.mxu0 %v3924
    %4654 = vmatpush.bf16.msra.mxu0 %v3920
    %4655 = vmatpush.bf16.msra.mxu0 %v3916
    %4656 = vmatpush.bf16.msra.mxu0 %v3912
    %4657 = vmatmul.bf16.gmra.mxu0 %v2939
    %v4658 = vpop.f32.mrf.mxu0
    %v4659 = vadd.f32 %v4645, %v4658
    %v4660 = vpop.f32.mrf.mxu0
    %v4661 = vadd.f32 %v4647, %v4660
    %4662 = vdwg.mxu0
    %4663 = vmatpush.bf16.msra.mxu0 %v3972
    %4664 = vmatpush.bf16.msra.mxu0 %v3968
    %4665 = vmatpush.bf16.msra.mxu0 %v3964
    %4666 = vmatpush.bf16.msra.mxu0 %v3960
    %4667 = vmatpush.bf16.msra.mxu0 %v3956
    %4668 = vmatpush.bf16.msra.mxu0 %v3952
    %4669 = vmatpush.bf16.msra.mxu0 %v3948
    %4670 = vmatpush.bf16.msra.mxu0 %v3944
    %4671 = vmatmul.bf16.gmra.mxu0 %v2940
    %v4672 = vpop.f32.mrf.mxu0
    %v4673 = vadd.f32 %v4659, %v4672
    %v4674 = vpop.f32.mrf.mxu0
    %v4675 = vadd.f32 %v4661, %v4674
    %4676 = vdwg.mxu0
    %v4677 = vmul.f32 %v4337, 0.5
    %v4678 = vmul.f32 %v4449, 0.5
    %v4679 = vmul.f32 %v4561, 0.5
    %v4680 = vmul.f32 %v4673, 0.5
    %v4681 = vmul.f32 %v4339, 0.5
    %v4682 = vmul.f32 %v4451, 0.5
    %v4683 = vmul.f32 %v4563, 0.5
    %v4684 = vmul.f32 %v4675, 0.5
    %v4685 = vmul.f32 %v4337, 0.70710677
    %v4686 = vmul.f32 %v4449, 0.70710677
    %v4687 = vmul.f32 %v4561, 0.70710677
    %v4688 = vmul.f32 %v4673, 0.70710677
    %v4689 = vmul.f32 %v4339, 0.70710677
    %v4690 = vmul.f32 %v4451, 0.70710677
    %v4691 = vmul.f32 %v4563, 0.70710677
    %v4692 = vmul.f32 %v4675, 0.70710677
    %v4693 = vmul.f32 %v4685, %v4685
    %v4694 = vmin.f32 16.0, %v4693
    %v4695 = vmul.f32 %v4694, 2.1237322e-06
    %v4696 = vadd.f32 %v4695, 0.00028619796
    %v4697 = vmul.f32 %v4694, %v4696
    %v4698 = vadd.f32 %v4697, 0.0036580483
    %v4699 = vmul.f32 %v4694, %v4698
    %v4700 = vadd.f32 %v4699, 0.05243302
    %v4701 = vmul.f32 %v4694, %v4700
    %v4702 = vadd.f32 %v4701, 0.18741608
    %v4703 = vmul.f32 %v4694, %v4702
    %v4704 = vadd.f32 %v4703, 1.1283791
    %v4705 = vmul.f32 %v4685, %v4704
    %v4706 = vmul.f32 %v4694, 3.8918573e-05
    %v4707 = vadd.f32 %v4706, 0.001143296
    %v4708 = vmul.f32 %v4694, %v4707
    %v4709 = vadd.f32 %v4708, 0.014752088
    %v4710 = vmul.f32 %v4694, %v4709
    %v4711 = vadd.f32 %v4710, 0.112945676
    %v4712 = vmul.f32 %v4694, %v4711
    %v4713 = vadd.f32 %v4712, 0.4994258
    %v4714 = vmul.f32 %v4694, %v4713
    %v4715 = vadd.f32 %v4714, 1.0
    %v4716 = vrcp.pop %v4715
    %v4717 = vmul.f32 %v4715, %v4716
    %v4718 = vsub.f32 1.0, %v4717
    %v4719 = vmul.f32 %v4716, %v4718
    %v4720 = vadd.f32 %v4716, %v4719
    %vm4721 = vweird.f32 %v4715
    %vm4722 = vweird.f32 %v4716
    %vm4723 = vmor %vm4721, %vm4722
    %v4724 = vsel %vm4723, %v4716, %v4720
    %v4725 = vand.u32 2147483647, %v4715
    %vm4726 = vcmp.eq.f32.partialorder %v4725, 8.507059e+37
    %v4727 = vand.u32 %v4715, 2147483648
    %v4728 = vor.u32 1.1754944e-38, %v4727
    %v4729 = vsel %vm4726, %v4728, %v4724
    %v4730 = vmul.f32 %v4705, %v4729
    %v4731 = vmin.f32 %v4730, 1.0
    %v4732 = vmax.f32 %v4731, -1.0
    %v4733 = vmul.f32 %v4686, %v4686
    %v4734 = vmin.f32 16.0, %v4733
    %v4735 = vmul.f32 %v4734, 2.1237322e-06
    %v4736 = vadd.f32 %v4735, 0.00028619796
    %v4737 = vmul.f32 %v4734, %v4736
    %v4738 = vadd.f32 %v4737, 0.0036580483
    %v4739 = vmul.f32 %v4734, %v4738
    %v4740 = vadd.f32 %v4739, 0.05243302
    %v4741 = vmul.f32 %v4734, %v4740
    %v4742 = vadd.f32 %v4741, 0.18741608
    %v4743 = vmul.f32 %v4734, %v4742
    %v4744 = vadd.f32 %v4743, 1.1283791
    %v4745 = vmul.f32 %v4686, %v4744
    %v4746 = vmul.f32 %v4734, 3.8918573e-05
    %v4747 = vadd.f32 %v4746, 0.001143296
    %v4748 = vmul.f32 %v4734, %v4747
    %v4749 = vadd.f32 %v4748, 0.014752088
    %v4750 = vmul.f32 %v4734, %v4749
    %v4751 = vadd.f32 %v4750, 0.112945676
    %v4752 = vmul.f32 %v4734, %v4751
    %v4753 = vadd.f32 %v4752, 0.4994258
    %v4754 = vmul.f32 %v4734, %v4753
    %v4755 = vadd.f32 %v4754, 1.0
    %v4756 = vrcp.pop %v4755
    %v4757 = vmul.f32 %v4755, %v4756
    %v4758 = vsub.f32 1.0, %v4757
    %v4759 = vmul.f32 %v4756, %v4758
    %v4760 = vadd.f32 %v4756, %v4759
    %vm4761 = vweird.f32 %v4755
    %vm4762 = vweird.f32 %v4756
    %vm4763 = vmor %vm4761, %vm4762
    %v4764 = vsel %vm4763, %v4756, %v4760
    %v4765 = vand.u32 2147483647, %v4755
    %vm4766 = vcmp.eq.f32.partialorder %v4765, 8.507059e+37
    %v4767 = vand.u32 %v4755, 2147483648
    %v4768 = vor.u32 1.1754944e-38, %v4767
    %v4769 = vsel %vm4766, %v4768, %v4764
    %v4770 = vmul.f32 %v4745, %v4769
    %v4771 = vmin.f32 %v4770, 1.0
    %v4772 = vmax.f32 %v4771, -1.0
    %v4773 = vmul.f32 %v4687, %v4687
    %v4774 = vmin.f32 16.0, %v4773
    %v4775 = vmul.f32 %v4774, 2.1237322e-06
    %v4776 = vadd.f32 %v4775, 0.00028619796
    %v4777 = vmul.f32 %v4774, %v4776
    %v4778 = vadd.f32 %v4777, 0.0036580483
    %v4779 = vmul.f32 %v4774, %v4778
    %v4780 = vadd.f32 %v4779, 0.05243302
    %v4781 = vmul.f32 %v4774, %v4780
    %v4782 = vadd.f32 %v4781, 0.18741608
    %v4783 = vmul.f32 %v4774, %v4782
    %v4784 = vadd.f32 %v4783, 1.1283791
    %v4785 = vmul.f32 %v4687, %v4784
    %v4786 = vmul.f32 %v4774, 3.8918573e-05
    %v4787 = vadd.f32 %v4786, 0.001143296
    %v4788 = vmul.f32 %v4774, %v4787
    %v4789 = vadd.f32 %v4788, 0.014752088
    %v4790 = vmul.f32 %v4774, %v4789
    %v4791 = vadd.f32 %v4790, 0.112945676
    %v4792 = vmul.f32 %v4774, %v4791
    %v4793 = vadd.f32 %v4792, 0.4994258
    %v4794 = vmul.f32 %v4774, %v4793
    %v4795 = vadd.f32 %v4794, 1.0
    %v4796 = vrcp.pop %v4795
    %v4797 = vmul.f32 %v4795, %v4796
    %v4798 = vsub.f32 1.0, %v4797
    %v4799 = vmul.f32 %v4796, %v4798
    %v4800 = vadd.f32 %v4796, %v4799
    %vm4801 = vweird.f32 %v4795
    %vm4802 = vweird.f32 %v4796
    %vm4803 = vmor %vm4801, %vm4802
    %v4804 = vsel %vm4803, %v4796, %v4800
    %v4805 = vand.u32 2147483647, %v4795
    %vm4806 = vcmp.eq.f32.partialorder %v4805, 8.507059e+37
    %v4807 = vand.u32 %v4795, 2147483648
    %v4808 = vor.u32 1.1754944e-38, %v4807
    %v4809 = vsel %vm4806, %v4808, %v4804
    %v4810 = vmul.f32 %v4785, %v4809
    %v4811 = vmin.f32 %v4810, 1.0
    %v4812 = vmax.f32 %v4811, -1.0
    %v4813 = vmul.f32 %v4688, %v4688
    %v4814 = vmin.f32 16.0, %v4813
    %v4815 = vmul.f32 %v4814, 2.1237322e-06
    %v4816 = vadd.f32 %v4815, 0.00028619796
    %v4817 = vmul.f32 %v4814, %v4816
    %v4818 = vadd.f32 %v4817, 0.0036580483
    %v4819 = vmul.f32 %v4814, %v4818
    %v4820 = vadd.f32 %v4819, 0.05243302
    %v4821 = vmul.f32 %v4814, %v4820
    %v4822 = vadd.f32 %v4821, 0.18741608
    %v4823 = vmul.f32 %v4814, %v4822
    %v4824 = vadd.f32 %v4823, 1.1283791
    %v4825 = vmul.f32 %v4688, %v4824
    %v4826 = vmul.f32 %v4814, 3.8918573e-05
    %v4827 = vadd.f32 %v4826, 0.001143296
    %v4828 = vmul.f32 %v4814, %v4827
    %v4829 = vadd.f32 %v4828, 0.014752088
    %v4830 = vmul.f32 %v4814, %v4829
    %v4831 = vadd.f32 %v4830, 0.112945676
    %v4832 = vmul.f32 %v4814, %v4831
    %v4833 = vadd.f32 %v4832, 0.4994258
    %v4834 = vmul.f32 %v4814, %v4833
    %v4835 = vadd.f32 %v4834, 1.0
    %v4836 = vrcp.pop %v4835
    %v4837 = vmul.f32 %v4835, %v4836
    %v4838 = vsub.f32 1.0, %v4837
    %v4839 = vmul.f32 %v4836, %v4838
    %v4840 = vadd.f32 %v4836, %v4839
    %vm4841 = vweird.f32 %v4835
    %vm4842 = vweird.f32 %v4836
    %vm4843 = vmor %vm4841, %vm4842
    %v4844 = vsel %vm4843, %v4836, %v4840
    %v4845 = vand.u32 2147483647, %v4835
    %vm4846 = vcmp.eq.f32.partialorder %v4845, 8.507059e+37
    %v4847 = vand.u32 %v4835, 2147483648
    %v4848 = vor.u32 1.1754944e-38, %v4847
    %v4849 = vsel %vm4846, %v4848, %v4844
    %v4850 = vmul.f32 %v4825, %v4849
    %v4851 = vmin.f32 %v4850, 1.0
    %v4852 = vmax.f32 %v4851, -1.0
    %v4853 = vmul.f32 %v4689, %v4689
    %v4854 = vmin.f32 16.0, %v4853
    %v4855 = vmul.f32 %v4854, 2.1237322e-06
    %v4856 = vadd.f32 %v4855, 0.00028619796
    %v4857 = vmul.f32 %v4854, %v4856
    %v4858 = vadd.f32 %v4857, 0.0036580483
    %v4859 = vmul.f32 %v4854, %v4858
    %v4860 = vadd.f32 %v4859, 0.05243302
    %v4861 = vmul.f32 %v4854, %v4860
    %v4862 = vadd.f32 %v4861, 0.18741608
    %v4863 = vmul.f32 %v4854, %v4862
    %v4864 = vadd.f32 %v4863, 1.1283791
    %v4865 = vmul.f32 %v4689, %v4864
    %v4866 = vmul.f32 %v4854, 3.8918573e-05
    %v4867 = vadd.f32 %v4866, 0.001143296
    %v4868 = vmul.f32 %v4854, %v4867
    %v4869 = vadd.f32 %v4868, 0.014752088
    %v4870 = vmul.f32 %v4854, %v4869
    %v4871 = vadd.f32 %v4870, 0.112945676
    %v4872 = vmul.f32 %v4854, %v4871
    %v4873 = vadd.f32 %v4872, 0.4994258
    %v4874 = vmul.f32 %v4854, %v4873
    %v4875 = vadd.f32 %v4874, 1.0
    %v4876 = vrcp.pop %v4875
    %v4877 = vmul.f32 %v4875, %v4876
    %v4878 = vsub.f32 1.0, %v4877
    %v4879 = vmul.f32 %v4876, %v4878
    %v4880 = vadd.f32 %v4876, %v4879
    %vm4881 = vweird.f32 %v4875
    %vm4882 = vweird.f32 %v4876
    %vm4883 = vmor %vm4881, %vm4882
    %v4884 = vsel %vm4883, %v4876, %v4880
    %v4885 = vand.u32 2147483647, %v4875
    %vm4886 = vcmp.eq.f32.partialorder %v4885, 8.507059e+37
    %v4887 = vand.u32 %v4875, 2147483648
    %v4888 = vor.u32 1.1754944e-38, %v4887
    %v4889 = vsel %vm4886, %v4888, %v4884
    %v4890 = vmul.f32 %v4865, %v4889
    %v4891 = vmin.f32 %v4890, 1.0
    %v4892 = vmax.f32 %v4891, -1.0
    %v4893 = vmul.f32 %v4690, %v4690
    %v4894 = vmin.f32 16.0, %v4893
    %v4895 = vmul.f32 %v4894, 2.1237322e-06
    %v4896 = vadd.f32 %v4895, 0.00028619796
    %v4897 = vmul.f32 %v4894, %v4896
    %v4898 = vadd.f32 %v4897, 0.0036580483
    %v4899 = vmul.f32 %v4894, %v4898
    %v4900 = vadd.f32 %v4899, 0.05243302
    %v4901 = vmul.f32 %v4894, %v4900
    %v4902 = vadd.f32 %v4901, 0.18741608
    %v4903 = vmul.f32 %v4894, %v4902
    %v4904 = vadd.f32 %v4903, 1.1283791
    %v4905 = vmul.f32 %v4690, %v4904
    %v4906 = vmul.f32 %v4894, 3.8918573e-05
    %v4907 = vadd.f32 %v4906, 0.001143296
    %v4908 = vmul.f32 %v4894, %v4907
    %v4909 = vadd.f32 %v4908, 0.014752088
    %v4910 = vmul.f32 %v4894, %v4909
    %v4911 = vadd.f32 %v4910, 0.112945676
    %v4912 = vmul.f32 %v4894, %v4911
    %v4913 = vadd.f32 %v4912, 0.4994258
    %v4914 = vmul.f32 %v4894, %v4913
    %v4915 = vadd.f32 %v4914, 1.0
    %v4916 = vrcp.pop %v4915
    %v4917 = vmul.f32 %v4915, %v4916
    %v4918 = vsub.f32 1.0, %v4917
    %v4919 = vmul.f32 %v4916, %v4918
    %v4920 = vadd.f32 %v4916, %v4919
    %vm4921 = vweird.f32 %v4915
    %vm4922 = vweird.f32 %v4916
    %vm4923 = vmor %vm4921, %vm4922
    %v4924 = vsel %vm4923, %v4916, %v4920
    %v4925 = vand.u32 2147483647, %v4915
    %vm4926 = vcmp.eq.f32.partialorder %v4925, 8.507059e+37
    %v4927 = vand.u32 %v4915, 2147483648
    %v4928 = vor.u32 1.1754944e-38, %v4927
    %v4929 = vsel %vm4926, %v4928, %v4924
    %v4930 = vmul.f32 %v4905, %v4929
    %v4931 = vmin.f32 %v4930, 1.0
    %v4932 = vmax.f32 %v4931, -1.0
    %v4933 = vmul.f32 %v4691, %v4691
    %v4934 = vmin.f32 16.0, %v4933
    %v4935 = vmul.f32 %v4934, 2.1237322e-06
    %v4936 = vadd.f32 %v4935, 0.00028619796
    %v4937 = vmul.f32 %v4934, %v4936
    %v4938 = vadd.f32 %v4937, 0.0036580483
    %v4939 = vmul.f32 %v4934, %v4938
    %v4940 = vadd.f32 %v4939, 0.05243302
    %v4941 = vmul.f32 %v4934, %v4940
    %v4942 = vadd.f32 %v4941, 0.18741608
    %v4943 = vmul.f32 %v4934, %v4942
    %v4944 = vadd.f32 %v4943, 1.1283791
    %v4945 = vmul.f32 %v4691, %v4944
    %v4946 = vmul.f32 %v4934, 3.8918573e-05
    %v4947 = vadd.f32 %v4946, 0.001143296
    %v4948 = vmul.f32 %v4934, %v4947
    %v4949 = vadd.f32 %v4948, 0.014752088
    %v4950 = vmul.f32 %v4934, %v4949
    %v4951 = vadd.f32 %v4950, 0.112945676
    %v4952 = vmul.f32 %v4934, %v4951
    %v4953 = vadd.f32 %v4952, 0.4994258
    %v4954 = vmul.f32 %v4934, %v4953
    %v4955 = vadd.f32 %v4954, 1.0
    %v4956 = vrcp.pop %v4955
    %v4957 = vmul.f32 %v4955, %v4956
    %v4958 = vsub.f32 1.0, %v4957
    %v4959 = vmul.f32 %v4956, %v4958
    %v4960 = vadd.f32 %v4956, %v4959
    %vm4961 = vweird.f32 %v4955
    %vm4962 = vweird.f32 %v4956
    %vm4963 = vmor %vm4961, %vm4962
    %v4964 = vsel %vm4963, %v4956, %v4960
    %v4965 = vand.u32 2147483647, %v4955
    %vm4966 = vcmp.eq.f32.partialorder %v4965, 8.507059e+37
    %v4967 = vand.u32 %v4955, 2147483648
    %v4968 = vor.u32 1.1754944e-38, %v4967
    %v4969 = vsel %vm4966, %v4968, %v4964
    %v4970 = vmul.f32 %v4945, %v4969
    %v4971 = vmin.f32 %v4970, 1.0
    %v4972 = vmax.f32 %v4971, -1.0
    %v4973 = vmul.f32 %v4692, %v4692
    %v4974 = vmin.f32 16.0, %v4973
    %v4975 = vmul.f32 %v4974, 2.1237322e-06
    %v4976 = vadd.f32 %v4975, 0.00028619796
    %v4977 = vmul.f32 %v4974, %v4976
    %v4978 = vadd.f32 %v4977, 0.0036580483
    %v4979 = vmul.f32 %v4974, %v4978
    %v4980 = vadd.f32 %v4979, 0.05243302
    %v4981 = vmul.f32 %v4974, %v4980
    %v4982 = vadd.f32 %v4981, 0.18741608
    %v4983 = vmul.f32 %v4974, %v4982
    %v4984 = vadd.f32 %v4983, 1.1283791
    %v4985 = vmul.f32 %v4692, %v4984
    %v4986 = vmul.f32 %v4974, 3.8918573e-05
    %v4987 = vadd.f32 %v4986, 0.001143296
    %v4988 = vmul.f32 %v4974, %v4987
    %v4989 = vadd.f32 %v4988, 0.014752088
    %v4990 = vmul.f32 %v4974, %v4989
    %v4991 = vadd.f32 %v4990, 0.112945676
    %v4992 = vmul.f32 %v4974, %v4991
    %v4993 = vadd.f32 %v4992, 0.4994258
    %v4994 = vmul.f32 %v4974, %v4993
    %v4995 = vadd.f32 %v4994, 1.0
    %v4996 = vrcp.pop %v4995
    %v4997 = vmul.f32 %v4995, %v4996
    %v4998 = vsub.f32 1.0, %v4997
    %v4999 = vmul.f32 %v4996, %v4998
    %v5000 = vadd.f32 %v4996, %v4999
    %vm5001 = vweird.f32 %v4995
    %vm5002 = vweird.f32 %v4996
    %vm5003 = vmor %vm5001, %vm5002
    %v5004 = vsel %vm5003, %v4996, %v5000
    %v5005 = vand.u32 2147483647, %v4995
    %vm5006 = vcmp.eq.f32.partialorder %v5005, 8.507059e+37
    %v5007 = vand.u32 %v4995, 2147483648
    %v5008 = vor.u32 1.1754944e-38, %v5007
    %v5009 = vsel %vm5006, %v5008, %v5004
    %v5010 = vmul.f32 %v4985, %v5009
    %v5011 = vmin.f32 %v5010, 1.0
    %v5012 = vmax.f32 %v5011, -1.0
    %v5013 = vadd.f32 %v4732, 1.0
    %v5014 = vadd.f32 %v4772, 1.0
    %v5015 = vadd.f32 %v4812, 1.0
    %v5016 = vadd.f32 %v4852, 1.0
    %v5017 = vadd.f32 %v4892, 1.0
    %v5018 = vadd.f32 %v4932, 1.0
    %v5019 = vadd.f32 %v4972, 1.0
    %v5020 = vadd.f32 %v5012, 1.0
    %v5021 = vmul.f32 %v4677, %v5013
    %v5022 = vmul.f32 %v4678, %v5014
    %v5023 = vmul.f32 %v4679, %v5015
    %v5024 = vmul.f32 %v4680, %v5016
    %v5025 = vmul.f32 %v4681, %v5017
    %v5026 = vmul.f32 %v4682, %v5018
    %v5027 = vmul.f32 %v4683, %v5019
    %v5028 = vmul.f32 %v4684, %v5020
    %v5029 = vpack.c.bf16 %v5025, %v5021
    %v5030 = vpack.c.bf16 %v5026, %v5022
    %v5031 = vpack.c.bf16 %v5027, %v5023
    %v5032 = vpack.c.bf16 %v5028, %v5024
    %v5033 = vld [vmem:[#allocation6] sm:$0xf]
    %v5034 = vld [vmem:[#allocation6 + $0x4] sm:$0xf]
    %v5035 = vld [vmem:[#allocation6 + $0x8] sm:$0xf]
    %v5036 = vld [vmem:[#allocation6 + $0xc] sm:$0xf]
    %v5037 = vld [vmem:[#allocation6 + $0x10] sm:$0xf]
    %v5038 = vld [vmem:[#allocation6 + $0x14] sm:$0xf]
    %v5039 = vld [vmem:[#allocation6 + $0x18] sm:$0xf]
    %v5040 = vld [vmem:[#allocation6 + $0x1c] sm:$0xf]
    %v5041 = vld [vmem:[#allocation6 + $0x20] sm:$0xf]
    %v5042 = vld [vmem:[#allocation6 + $0x24] sm:$0xf]
    %v5043 = vld [vmem:[#allocation6 + $0x28] sm:$0xf]
    %v5044 = vld [vmem:[#allocation6 + $0x2c] sm:$0xf]
    %v5045 = vld [vmem:[#allocation6 + $0x30] sm:$0xf]
    %v5046 = vld [vmem:[#allocation6 + $0x34] sm:$0xf]
    %v5047 = vld [vmem:[#allocation6 + $0x38] sm:$0xf]
    %v5048 = vld [vmem:[#allocation6 + $0x3c] sm:$0xf]
    %v5049 = vld [vmem:[#allocation6 + $0x40] sm:$0xf]
    %v5050 = vld [vmem:[#allocation6 + $0x44] sm:$0xf]
    %v5051 = vld [vmem:[#allocation6 + $0x48] sm:$0xf]
    %v5052 = vld [vmem:[#allocation6 + $0x4c] sm:$0xf]
    %v5053 = vld [vmem:[#allocation6 + $0x50] sm:$0xf]
    %v5054 = vld [vmem:[#allocation6 + $0x54] sm:$0xf]
    %v5055 = vld [vmem:[#allocation6 + $0x58] sm:$0xf]
    %v5056 = vld [vmem:[#allocation6 + $0x5c] sm:$0xf]
    %v5057 = vld [vmem:[#allocation6 + $0x60] sm:$0xf]
    %v5058 = vld [vmem:[#allocation6 + $0x64] sm:$0xf]
    %v5059 = vld [vmem:[#allocation6 + $0x68] sm:$0xf]
    %v5060 = vld [vmem:[#allocation6 + $0x6c] sm:$0xf]
    %v5061 = vld [vmem:[#allocation6 + $0x70] sm:$0xf]
    %v5062 = vld [vmem:[#allocation6 + $0x74] sm:$0xf]
    %v5063 = vld [vmem:[#allocation6 + $0x78] sm:$0xf]
    %v5064 = vld [vmem:[#allocation6 + $0x7c] sm:$0xf]
    %v5065 = vld [vmem:[#allocation6 + $0x80] sm:$0xf]
    %v5066 = vld [vmem:[#allocation6 + $0x84] sm:$0xf]
    %v5067 = vld [vmem:[#allocation6 + $0x88] sm:$0xf]
    %v5068 = vld [vmem:[#allocation6 + $0x8c] sm:$0xf]
    %v5069 = vld [vmem:[#allocation6 + $0x90] sm:$0xf]
    %v5070 = vld [vmem:[#allocation6 + $0x94] sm:$0xf]
    %v5071 = vld [vmem:[#allocation6 + $0x98] sm:$0xf]
    %v5072 = vld [vmem:[#allocation6 + $0x9c] sm:$0xf]
    %v5073 = vld [vmem:[#allocation6 + $0xa0] sm:$0xf]
    %v5074 = vld [vmem:[#allocation6 + $0xa4] sm:$0xf]
    %v5075 = vld [vmem:[#allocation6 + $0xa8] sm:$0xf]
    %v5076 = vld [vmem:[#allocation6 + $0xac] sm:$0xf]
    %v5077 = vld [vmem:[#allocation6 + $0xb0] sm:$0xf]
    %v5078 = vld [vmem:[#allocation6 + $0xb4] sm:$0xf]
    %v5079 = vld [vmem:[#allocation6 + $0xb8] sm:$0xf]
    %v5080 = vld [vmem:[#allocation6 + $0xbc] sm:$0xf]
    %v5081 = vld [vmem:[#allocation6 + $0xc0] sm:$0xf]
    %v5082 = vld [vmem:[#allocation6 + $0xc4] sm:$0xf]
    %v5083 = vld [vmem:[#allocation6 + $0xc8] sm:$0xf]
    %v5084 = vld [vmem:[#allocation6 + $0xcc] sm:$0xf]
    %v5085 = vld [vmem:[#allocation6 + $0xd0] sm:$0xf]
    %v5086 = vld [vmem:[#allocation6 + $0xd4] sm:$0xf]
    %v5087 = vld [vmem:[#allocation6 + $0xd8] sm:$0xf]
    %v5088 = vld [vmem:[#allocation6 + $0xdc] sm:$0xf]
    %v5089 = vld [vmem:[#allocation6 + $0xe0] sm:$0xf]
    %v5090 = vld [vmem:[#allocation6 + $0xe4] sm:$0xf]
    %v5091 = vld [vmem:[#allocation6 + $0xe8] sm:$0xf]
    %v5092 = vld [vmem:[#allocation6 + $0xec] sm:$0xf]
    %v5093 = vld [vmem:[#allocation6 + $0xf0] sm:$0xf]
    %v5094 = vld [vmem:[#allocation6 + $0xf4] sm:$0xf]
    %v5095 = vld [vmem:[#allocation6 + $0xf8] sm:$0xf]
    %v5096 = vld [vmem:[#allocation6 + $0xfc] sm:$0xf]
    %v5097 = vld [vmem:[#allocation7] sm:$0xf]
    %v5098 = vld [vmem:[#allocation7 + $0x4] sm:$0xf]
    %v5099 = vld [vmem:[#allocation7 + $0x8] sm:$0xf]
    %v5100 = vld [vmem:[#allocation7 + $0xc] sm:$0xf]
    %v5101 = vld [vmem:[#allocation7 + $0x10] sm:$0xf]
    %v5102 = vld [vmem:[#allocation7 + $0x14] sm:$0xf]
    %v5103 = vld [vmem:[#allocation7 + $0x18] sm:$0xf]
    %v5104 = vld [vmem:[#allocation7 + $0x1c] sm:$0xf]
    %v5105 = vld [vmem:[#allocation7 + $0x20] sm:$0xf]
    %v5106 = vld [vmem:[#allocation7 + $0x24] sm:$0xf]
    %v5107 = vld [vmem:[#allocation7 + $0x28] sm:$0xf]
    %v5108 = vld [vmem:[#allocation7 + $0x2c] sm:$0xf]
    %v5109 = vld [vmem:[#allocation7 + $0x30] sm:$0xf]
    %v5110 = vld [vmem:[#allocation7 + $0x34] sm:$0xf]
    %v5111 = vld [vmem:[#allocation7 + $0x38] sm:$0xf]
    %v5112 = vld [vmem:[#allocation7 + $0x3c] sm:$0xf]
    %v5113 = vld [vmem:[#allocation7 + $0x40] sm:$0xf]
    %v5114 = vld [vmem:[#allocation7 + $0x44] sm:$0xf]
    %v5115 = vld [vmem:[#allocation7 + $0x48] sm:$0xf]
    %v5116 = vld [vmem:[#allocation7 + $0x4c] sm:$0xf]
    %v5117 = vld [vmem:[#allocation7 + $0x50] sm:$0xf]
    %v5118 = vld [vmem:[#allocation7 + $0x54] sm:$0xf]
    %v5119 = vld [vmem:[#allocation7 + $0x58] sm:$0xf]
    %v5120 = vld [vmem:[#allocation7 + $0x5c] sm:$0xf]
    %v5121 = vld [vmem:[#allocation7 + $0x60] sm:$0xf]
    %v5122 = vld [vmem:[#allocation7 + $0x64] sm:$0xf]
    %v5123 = vld [vmem:[#allocation7 + $0x68] sm:$0xf]
    %v5124 = vld [vmem:[#allocation7 + $0x6c] sm:$0xf]
    %v5125 = vld [vmem:[#allocation7 + $0x70] sm:$0xf]
    %v5126 = vld [vmem:[#allocation7 + $0x74] sm:$0xf]
    %v5127 = vld [vmem:[#allocation7 + $0x78] sm:$0xf]
    %v5128 = vld [vmem:[#allocation7 + $0x7c] sm:$0xf]
    %v5131 = vunpack.c.l.b16 %v2637
    %v5132 = vunpack.c.h.b16 %v2637
    %v5133 = vunpack.c.l.b16 %v2642
    %v5134 = vunpack.c.h.b16 %v2642
    %v5135 = vpack.c.b16 %v5133, %v5131
    %v5136 = vpack.c.b16 %v5134, %v5132
    %v5171 = vunpack.c.l.b16 %v5097
    %v5172 = vunpack.c.l.b16 %v5098
    %v5173 = vunpack.c.l.b16 %v5099
    %v5174 = vunpack.c.l.b16 %v5100
    %v5175 = vunpack.c.l.b16 %v5101
    %v5176 = vunpack.c.l.b16 %v5102
    %v5177 = vunpack.c.l.b16 %v5103
    %v5178 = vunpack.c.l.b16 %v5104
    %v5179 = vunpack.c.l.b16 %v5105
    %v5180 = vunpack.c.l.b16 %v5106
    %v5181 = vunpack.c.l.b16 %v5107
    %v5182 = vunpack.c.l.b16 %v5108
    %v5183 = vunpack.c.l.b16 %v5109
    %v5184 = vunpack.c.l.b16 %v5110
    %v5185 = vunpack.c.l.b16 %v5111
    %v5186 = vunpack.c.l.b16 %v5112
    %v5187 = vunpack.c.l.b16 %v5113
    %v5188 = vunpack.c.l.b16 %v5114
    %v5189 = vunpack.c.l.b16 %v5115
    %v5190 = vunpack.c.l.b16 %v5116
    %v5191 = vunpack.c.l.b16 %v5117
    %v5192 = vunpack.c.l.b16 %v5118
    %v5193 = vunpack.c.l.b16 %v5119
    %v5194 = vunpack.c.l.b16 %v5120
    %v5195 = vunpack.c.l.b16 %v5121
    %v5196 = vunpack.c.l.b16 %v5122
    %v5197 = vunpack.c.l.b16 %v5123
    %v5198 = vunpack.c.l.b16 %v5124
    %v5199 = vunpack.c.l.b16 %v5125
    %v5200 = vunpack.c.l.b16 %v5126
    %v5201 = vunpack.c.l.b16 %v5127
    %v5202 = vunpack.c.l.b16 %v5128
    %v5203 = vpack.c.b16 %v5172, %v5171
    %v5204 = vpack.c.b16 %v5174, %v5173
    %v5205 = vpack.c.b16 %v5176, %v5175
    %v5206 = vpack.c.b16 %v5178, %v5177
    %v5207 = vpack.c.b16 %v5180, %v5179
    %v5208 = vpack.c.b16 %v5182, %v5181
    %v5209 = vpack.c.b16 %v5184, %v5183
    %v5210 = vpack.c.b16 %v5186, %v5185
    %v5211 = vpack.c.b16 %v5188, %v5187
    %v5212 = vpack.c.b16 %v5190, %v5189
    %v5213 = vpack.c.b16 %v5192, %v5191
    %v5214 = vpack.c.b16 %v5194, %v5193
    %v5215 = vpack.c.b16 %v5196, %v5195
    %v5216 = vpack.c.b16 %v5198, %v5197
    %v5217 = vpack.c.b16 %v5200, %v5199
    %v5218 = vpack.c.b16 %v5202, %v5201
    %5235 = vmatpush.bf16.msra.mxu0 %v5210
    %5236 = vmatpush.bf16.msra.mxu0 %v5209
    %5237 = vmatpush.bf16.msra.mxu0 %v5208
    %5238 = vmatpush.bf16.msra.mxu0 %v5207
    %5239 = vmatpush.bf16.msra.mxu0 %v5206
    %5240 = vmatpush.bf16.msra.mxu0 %v5205
    %5241 = vmatpush.bf16.msra.mxu0 %v5204
    %5242 = vmatpush.bf16.msra.mxu0 %v5203
    %5243 = vmatmul.bf16.gmra.mxu0 %v5135
    %v5244 = vpop.f32.mrf.mxu0
    %v5245 = vadd.f32 0.0, %v5244
    %v5246 = vpop.f32.mrf.mxu0
    %v5247 = vadd.f32 0.0, %v5246
    %5248 = vdwg.mxu0
    %5249 = vmatpush.bf16.msra.mxu0 %v5218
    %5250 = vmatpush.bf16.msra.mxu0 %v5217
    %5251 = vmatpush.bf16.msra.mxu0 %v5216
    %5252 = vmatpush.bf16.msra.mxu0 %v5215
    %5253 = vmatpush.bf16.msra.mxu0 %v5214
    %5254 = vmatpush.bf16.msra.mxu0 %v5213
    %5255 = vmatpush.bf16.msra.mxu0 %v5212
    %5256 = vmatpush.bf16.msra.mxu0 %v5211
    %5257 = vmatmul.bf16.gmra.mxu0 %v5136
    %v5258 = vpop.f32.mrf.mxu0
    %v5259 = vadd.f32 %v5245, %v5258
    %v5260 = vpop.f32.mrf.mxu0
    %v5261 = vadd.f32 %v5247, %v5260
    %5262 = vdwg.mxu0
    %v5327 = vunpack.c.l.b16 %v5033
    %v5328 = vunpack.c.l.b16 %v5034
    %v5329 = vunpack.c.l.b16 %v5035
    %v5330 = vunpack.c.l.b16 %v5036
    %v5331 = vunpack.c.l.b16 %v5037
    %v5332 = vunpack.c.l.b16 %v5038
    %v5333 = vunpack.c.l.b16 %v5039
    %v5334 = vunpack.c.l.b16 %v5040
    %v5335 = vunpack.c.l.b16 %v5041
    %v5336 = vunpack.c.l.b16 %v5042
    %v5337 = vunpack.c.l.b16 %v5043
    %v5338 = vunpack.c.l.b16 %v5044
    %v5339 = vunpack.c.l.b16 %v5045
    %v5340 = vunpack.c.l.b16 %v5046
    %v5341 = vunpack.c.l.b16 %v5047
    %v5342 = vunpack.c.l.b16 %v5048
    %v5343 = vunpack.c.l.b16 %v5049
    %v5344 = vunpack.c.l.b16 %v5050
    %v5345 = vunpack.c.l.b16 %v5051
    %v5346 = vunpack.c.l.b16 %v5052
    %v5347 = vunpack.c.l.b16 %v5053
    %v5348 = vunpack.c.l.b16 %v5054
    %v5349 = vunpack.c.l.b16 %v5055
    %v5350 = vunpack.c.l.b16 %v5056
    %v5351 = vunpack.c.l.b16 %v5057
    %v5352 = vunpack.c.l.b16 %v5058
    %v5353 = vunpack.c.l.b16 %v5059
    %v5354 = vunpack.c.l.b16 %v5060
    %v5355 = vunpack.c.l.b16 %v5061
    %v5356 = vunpack.c.l.b16 %v5062
    %v5357 = vunpack.c.l.b16 %v5063
    %v5358 = vunpack.c.l.b16 %v5064
    %v5359 = vunpack.c.l.b16 %v5065
    %v5360 = vunpack.c.l.b16 %v5066
    %v5361 = vunpack.c.l.b16 %v5067
    %v5362 = vunpack.c.l.b16 %v5068
    %v5363 = vunpack.c.l.b16 %v5069
    %v5364 = vunpack.c.l.b16 %v5070
    %v5365 = vunpack.c.l.b16 %v5071
    %v5366 = vunpack.c.l.b16 %v5072
    %v5367 = vunpack.c.l.b16 %v5073
    %v5368 = vunpack.c.l.b16 %v5074
    %v5369 = vunpack.c.l.b16 %v5075
    %v5370 = vunpack.c.l.b16 %v5076
    %v5371 = vunpack.c.l.b16 %v5077
    %v5372 = vunpack.c.l.b16 %v5078
    %v5373 = vunpack.c.l.b16 %v5079
    %v5374 = vunpack.c.l.b16 %v5080
    %v5375 = vunpack.c.l.b16 %v5081
    %v5376 = vunpack.c.l.b16 %v5082
    %v5377 = vunpack.c.l.b16 %v5083
    %v5378 = vunpack.c.l.b16 %v5084
    %v5379 = vunpack.c.l.b16 %v5085
    %v5380 = vunpack.c.l.b16 %v5086
    %v5381 = vunpack.c.l.b16 %v5087
    %v5382 = vunpack.c.l.b16 %v5088
    %v5383 = vunpack.c.l.b16 %v5089
    %v5384 = vunpack.c.l.b16 %v5090
    %v5385 = vunpack.c.l.b16 %v5091
    %v5386 = vunpack.c.l.b16 %v5092
    %v5387 = vunpack.c.l.b16 %v5093
    %v5388 = vunpack.c.l.b16 %v5094
    %v5389 = vunpack.c.l.b16 %v5095
    %v5390 = vunpack.c.l.b16 %v5096
    %v5391 = vpack.c.b16 %v5328, %v5327
    %v5392 = vpack.c.b16 %v5330, %v5329
    %v5393 = vpack.c.b16 %v5332, %v5331
    %v5394 = vpack.c.b16 %v5334, %v5333
    %v5395 = vpack.c.b16 %v5336, %v5335
    %v5396 = vpack.c.b16 %v5338, %v5337
    %v5397 = vpack.c.b16 %v5340, %v5339
    %v5398 = vpack.c.b16 %v5342, %v5341
    %v5399 = vpack.c.b16 %v5344, %v5343
    %v5400 = vpack.c.b16 %v5346, %v5345
    %v5401 = vpack.c.b16 %v5348, %v5347
    %v5402 = vpack.c.b16 %v5350, %v5349
    %v5403 = vpack.c.b16 %v5352, %v5351
    %v5404 = vpack.c.b16 %v5354, %v5353
    %v5405 = vpack.c.b16 %v5356, %v5355
    %v5406 = vpack.c.b16 %v5358, %v5357
    %v5407 = vpack.c.b16 %v5360, %v5359
    %v5408 = vpack.c.b16 %v5362, %v5361
    %v5409 = vpack.c.b16 %v5364, %v5363
    %v5410 = vpack.c.b16 %v5366, %v5365
    %v5411 = vpack.c.b16 %v5368, %v5367
    %v5412 = vpack.c.b16 %v5370, %v5369
    %v5413 = vpack.c.b16 %v5372, %v5371
    %v5414 = vpack.c.b16 %v5374, %v5373
    %v5415 = vpack.c.b16 %v5376, %v5375
    %v5416 = vpack.c.b16 %v5378, %v5377
    %v5417 = vpack.c.b16 %v5380, %v5379
    %v5418 = vpack.c.b16 %v5382, %v5381
    %v5419 = vpack.c.b16 %v5384, %v5383
    %v5420 = vpack.c.b16 %v5386, %v5385
    %v5421 = vpack.c.b16 %v5388, %v5387
    %v5422 = vpack.c.b16 %v5390, %v5389
    %5455 = vmatpush.bf16.msra.mxu0 %v5398
    %5456 = vmatpush.bf16.msra.mxu0 %v5397
    %5457 = vmatpush.bf16.msra.mxu0 %v5396
    %5458 = vmatpush.bf16.msra.mxu0 %v5395
    %5459 = vmatpush.bf16.msra.mxu0 %v5394
    %5460 = vmatpush.bf16.msra.mxu0 %v5393
    %5461 = vmatpush.bf16.msra.mxu0 %v5392
    %5462 = vmatpush.bf16.msra.mxu0 %v5391
    %5463 = vmatmul.bf16.gmra.mxu0 %v5029
    %v5464 = vpop.f32.mrf.mxu0
    %v5465 = vadd.f32 %v5259, %v5464
    %v5466 = vpop.f32.mrf.mxu0
    %v5467 = vadd.f32 %v5261, %v5466
    %5468 = vdwg.mxu0
    %5469 = vmatpush.bf16.msra.mxu0 %v5406
    %5470 = vmatpush.bf16.msra.mxu0 %v5405
    %5471 = vmatpush.bf16.msra.mxu0 %v5404
    %5472 = vmatpush.bf16.msra.mxu0 %v5403
    %5473 = vmatpush.bf16.msra.mxu0 %v5402
    %5474 = vmatpush.bf16.msra.mxu0 %v5401
    %5475 = vmatpush.bf16.msra.mxu0 %v5400
    %5476 = vmatpush.bf16.msra.mxu0 %v5399
    %5477 = vmatmul.bf16.gmra.mxu0 %v5030
    %v5478 = vpop.f32.mrf.mxu0
    %v5479 = vadd.f32 %v5465, %v5478
    %v5480 = vpop.f32.mrf.mxu0
    %v5481 = vadd.f32 %v5467, %v5480
    %5482 = vdwg.mxu0
    %5483 = vmatpush.bf16.msra.mxu0 %v5414
    %5484 = vmatpush.bf16.msra.mxu0 %v5413
    %5485 = vmatpush.bf16.msra.mxu0 %v5412
    %5486 = vmatpush.bf16.msra.mxu0 %v5411
    %5487 = vmatpush.bf16.msra.mxu0 %v5410
    %5488 = vmatpush.bf16.msra.mxu0 %v5409
    %5489 = vmatpush.bf16.msra.mxu0 %v5408
    %5490 = vmatpush.bf16.msra.mxu0 %v5407
    %5491 = vmatmul.bf16.gmra.mxu0 %v5031
    %v5492 = vpop.f32.mrf.mxu0
    %v5493 = vadd.f32 %v5479, %v5492
    %v5494 = vpop.f32.mrf.mxu0
    %v5495 = vadd.f32 %v5481, %v5494
    %5496 = vdwg.mxu0
    %5497 = vmatpush.bf16.msra.mxu0 %v5422
    %5498 = vmatpush.bf16.msra.mxu0 %v5421
    %5499 = vmatpush.bf16.msra.mxu0 %v5420
    %5500 = vmatpush.bf16.msra.mxu0 %v5419
    %5501 = vmatpush.bf16.msra.mxu0 %v5418
    %5502 = vmatpush.bf16.msra.mxu0 %v5417
    %5503 = vmatpush.bf16.msra.mxu0 %v5416
    %5504 = vmatpush.bf16.msra.mxu0 %v5415
    %5505 = vmatmul.bf16.gmra.mxu0 %v5032
    %v5506 = vpop.f32.mrf.mxu0
    %v5507 = vadd.f32 %v5493, %v5506
    %v5508 = vpop.f32.mrf.mxu0
    %v5509 = vadd.f32 %v5495, %v5508
    %5510 = vdwg.mxu0
    %v5511 = vld [vmem:[%s9] sm:$0x1]
    %v5513 = vperm.slane %v5511, 0
    %v5515 = vadd.f32 %v5507, %v5513
    %v5516 = vadd.f32 %v5509, %v5513
    %v5517 = vmul.f32 %v5515, 0.5
    %v5518 = vmul.f32 %v5516, 0.5
    %v5519 = vtanh.pop %v5517
    %v5520 = vtanh.pop %v5518
    %v5521 = vadd.f32 %v5519, 1.0
    %v5522 = vadd.f32 %v5520, 1.0
    %v5523 = vmul.f32 %v5521, 0.5
    %v5524 = vmul.f32 %v5522, 0.5
    %v5525 = vld [vmem:[%s10] sm:$0x1]
    %v5527 = vperm.slane %v5525, 0
    %v5529 = vmul.f32 %v5523, %v5527
    %v5530 = vmul.f32 %v5524, %v5527
    %5531 = vadd.xlane.f32.xlu0 %v5529
    %v5532 = vpop.xlane.xlu0 %5531
    %5533 = vadd.xlane.f32.xlu0 %v5530
    %v5534 = vpop.xlane.xlu0 %5533
    %v5535 = vadd.f32 %v5532, 0.3
    %v5536 = vadd.f32 %v5534, 0.3
    %vm5537 = vcmp.eq.s32.totalorder %v2375, 39
    %vm5538 = vcmp.lt.s32.totalorder %v2375, 39
    %v5539 = vsel %vm5538, %v5523, 0.0
    %v5540 = vsel %vm5538, %v5524, 0.0
    %v5541 = vsel %vm5537, %v5535, %v5539
    %v5542 = vsel %vm5537, %v5536, %v5540
    %5543 = vst [vmem:[%s11] sm:$0xff] %v5541
    %5544 = vst [vmem:[%s11 + $0x8] sm:$0xff] %v5542
    // Predicated region
    $region62: #{strategy_evaluator.1} parent=1 // pred_check
      _
    $region63: #{strategy_evaluator.1} parent=1 // pred_check_branch
      %5546 = sbr.rel (0) target = $region65
    $region64: #{strategy_evaluator.1} parent=1 // pred_region
      _
    $region65: #{strategy_evaluator.1} parent=1 // pred_fallthru
      _
    // Predicated region
    $region66: #{strategy_evaluator.1} parent=1 // pred_check
      _
    $region67: #{strategy_evaluator.1} parent=1 // pred_check_branch
      %5548 = sbr.rel (0) target = $region69
    $region68: #{strategy_evaluator.1} parent=1 // pred_region
      _
    $region69: #{strategy_evaluator.1} parent=1 // pred_fallthru
      _
    %5549 = vsyncpa [#allocation3], 1
    %5550 = vsyncpa [#allocation5], 1
    %5551 = vsyncpa [#allocation8], 1

</llo_original>
